<compile_context>
chip_gen: v7x
topology: tpu7x:2x2x1
jax: 0.10.0
libtpu: 0.0.40
codegen_flags: <defaults>
</compile_context>

<pallas_src>
import numpy as np
import jax
import jax.numpy as jnp
from jax.experimental import pallas as pl
from jax.experimental.pallas import tpu as pltpu


# ---------------------------------------------------------------------------
# helpers
# ---------------------------------------------------------------------------
def _round_up(x, m):
    return ((x + m - 1) // m) * m


def _choose_tm(M, cap=512):
    """Largest multiple-of-128 tile <= cap dividing M; else a single full block."""
    if M <= cap or M % 128 != 0:
        return M
    best = 128
    t = 256
    while t <= cap:
        if M % t == 0:
            best = t
        t += 128
    return best


# ---------------------------------------------------------------------------
# Pallas kernels
# ---------------------------------------------------------------------------
def _matmul_bias_relu_kernel(x_ref, w_ref, b_ref, o_ref):
    # bf16 operands on the MXU, f32 accumulation; bias+ReLU epilogue in f32.
    acc = jnp.dot(x_ref[...], w_ref[...], preferred_element_type=jnp.float32)
    o_ref[...] = jnp.maximum(acc + b_ref[...], 0.0)


def matmul_bias_relu(x_bf16, w_bf16, b_f32):
    """ReLU(x @ w + b). x:(M,K) bf16, w:(K,N) bf16 (N % 128 == 0), b:(1,N) f32."""
    M, K = x_bf16.shape
    K2, N = w_bf16.shape
    assert K == K2 and N % 128 == 0
    tm = _choose_tm(M)
    return pl.pallas_call(
        _matmul_bias_relu_kernel,
        out_shape=jax.ShapeDtypeStruct((M, N), jnp.float32),
        grid=(M // tm,),
        in_specs=[
            pl.BlockSpec((tm, K), lambda i: (i, 0)),
            pl.BlockSpec((K, N), lambda i: (0, 0)),
            pl.BlockSpec((1, N), lambda i: (0, 0)),
        ],
        out_specs=pl.BlockSpec((tm, N), lambda i: (i, 0)),
        compiler_params=pltpu.CompilerParams(dimension_semantics=("parallel",)),
    )(x_bf16, w_bf16, b_f32)


def _fc_tail_kernel(x_ref, w1_ref, b1_ref, wn_ref, bn_ref, wc_ref, bc_ref,
                    num_ref, col_ref):
    """fc1 + ReLU, then both heads + log_softmax, fused in one kernel."""
    h = jnp.dot(x_ref[...], w1_ref[...], preferred_element_type=jnp.float32)
    h = jnp.maximum(h + b1_ref[...], 0.0).astype(jnp.bfloat16)

    def head(w_ref, b_ref):
        z = jnp.dot(h, w_ref[...], preferred_element_type=jnp.float32) + b_ref[...]
        m = jnp.max(z, axis=-1, keepdims=True)
        s = z - m
        return s - jnp.log(jnp.sum(jnp.exp(s), axis=-1, keepdims=True))

    num_ref[...] = head(wn_ref, bn_ref)
    col_ref[...] = head(wc_ref, bc_ref)


def fc_tail(flat_bf16, w1, b1, wn, bn, wc, bc):
    M, K = flat_bf16.shape
    H = w1.shape[1]           # 512 (padded 500)
    NO = wn.shape[1]          # 128 (padded 10)
    tm = _choose_tm(M)
    return pl.pallas_call(
        _fc_tail_kernel,
        out_shape=(jax.ShapeDtypeStruct((M, NO), jnp.float32),
                   jax.ShapeDtypeStruct((M, NO), jnp.float32)),
        grid=(M // tm,),
        in_specs=[
            pl.BlockSpec((tm, K), lambda i: (i, 0)),
            pl.BlockSpec((K, H), lambda i: (0, 0)),
            pl.BlockSpec((1, H), lambda i: (0, 0)),
            pl.BlockSpec((H, NO), lambda i: (0, 0)),
            pl.BlockSpec((1, NO), lambda i: (0, 0)),
            pl.BlockSpec((H, NO), lambda i: (0, 0)),
            pl.BlockSpec((1, NO), lambda i: (0, 0)),
        ],
        out_specs=(pl.BlockSpec((tm, NO), lambda i: (i, 0)),
                   pl.BlockSpec((tm, NO), lambda i: (i, 0))),
        compiler_params=pltpu.CompilerParams(dimension_semantics=("parallel",)),
    )(flat_bf16, w1, b1, wn, bn, wc, bc)


# ---------------------------------------------------------------------------
# Plain-JAX glue (patch extraction, 2x2 pool) and parameter preparation
# ---------------------------------------------------------------------------
def _extract_patches(x_nhwc, k):
    """Valid, stride-1 kxk patches (NHWC). Feature order = (Cin, kH, kW)."""
    B, H, W, C = x_nhwc.shape
    Ho, Wo = H - k + 1, W - k + 1
    p = jax.lax.conv_general_dilated_patches(
        x_nhwc, (k, k), (1, 1), "VALID",
        dimension_numbers=("NHWC", "HWIO", "NHWC"))
    return p.reshape(B * Ho * Wo, C * k * k), (B, Ho, Wo)


def _maxpool2x2(x):
    """2x2 / stride-2 max pool on NHWC via strided-slice max (C stays on lanes)."""
    return jnp.maximum(
        jnp.maximum(x[:, 0::2, 0::2, :], x[:, 0::2, 1::2, :]),
        jnp.maximum(x[:, 1::2, 0::2, :], x[:, 1::2, 1::2, :]))


def _pad_cast_cols(x, k_pad):
    K = x.shape[1]
    if k_pad > K:
        x = jnp.pad(x, ((0, 0), (0, k_pad - K)))
    return x.astype(jnp.bfloat16)


def prepare_params(params):
    """One-time reorder / pad / bf16-cast of PyTorch-layout parameters."""
    def pad2(a, rows, cols):
        return jnp.pad(a, ((0, rows - a.shape[0]), (0, cols - a.shape[1])))

    def conv_w(w_oihw):
        o, c, kh, kw = w_oihw.shape
        k = c * kh * kw
        # match patches' channel-major (Cin, kH, kW) feature order
        m = w_oihw.transpose(1, 2, 3, 0).reshape(k, o)
        return pad2(m, _round_up(k, 16), _round_up(o, 128)).astype(jnp.bfloat16)

    def pad_bias(b, n, fill=0.0):
        return jnp.pad(b, (0, n - b.shape[0]),
                       constant_values=fill).astype(jnp.float32).reshape(1, n)

    # fc1 columns reordered from PyTorch NCHW flatten -> our NHWC flatten
    fc1_w = params["fc1_w"].reshape(500, 50, 4, 4).transpose(0, 2, 3, 1).reshape(500, 800)

    H = _round_up(500, 128)      # 512
    NO = _round_up(10, 128)      # 128
    return {
        "w1": conv_w(params["conv1_w"]), "b1": pad_bias(params["conv1_b"], 128),
        "w2": conv_w(params["conv2_w"]), "b2": pad_bias(params["conv2_b"], 128),
        "fc1_w": pad2(fc1_w.T, 800, H).astype(jnp.bfloat16),
        "fc1_b": pad_bias(params["fc1_b"], H),
        # head padding gets bias -1e9 so padded logits vanish under log-softmax
        "fc2n_w": pad2(params["fc2n_w"].T, H, NO).astype(jnp.bfloat16),
        "fc2n_b": pad_bias(params["fc2n_b"], NO, fill=-1e9),
        "fc2c_w": pad2(params["fc2c_w"].T, H, NO).astype(jnp.bfloat16),
        "fc2c_b": pad_bias(params["fc2c_b"], NO, fill=-1e9),
    }


# ---------------------------------------------------------------------------
# Forward pass
# ---------------------------------------------------------------------------
def net_forward_pallas(x_nchw, pp):
    B = x_nchw.shape[0]
    x = jnp.transpose(x_nchw, (0, 2, 3, 1))                    # NCHW -> NHWC

    # conv1 (5x5, stride 1, valid) + ReLU
    p, (_, Ho, Wo) = _extract_patches(x, 5)                    # (B*24*24, 75)
    p = _pad_cast_cols(p, pp["w1"].shape[0])
    y = matmul_bias_relu(p, pp["w1"], pp["b1"])[:, :20]
    y = _maxpool2x2(y.reshape(B, Ho, Wo, 20))                  # (B, 12, 12, 20)

    # conv2 (5x5, stride 1, valid) + ReLU
    p, (_, Ho, Wo) = _extract_patches(y, 5)                    # (B*8*8, 500)
    p = _pad_cast_cols(p, pp["w2"].shape[0])
    y = matmul_bias_relu(p, pp["w2"], pp["b2"])[:, :50]
    y = _maxpool2x2(y.reshape(B, Ho, Wo, 50))                  # (B, 4, 4, 50)

    # NHWC flatten (fc1 columns were reordered to match at param-prep time)
    flat = y.reshape(B, 4 * 4 * 50).astype(jnp.bfloat16)

    num, col = fc_tail(flat, pp["fc1_w"], pp["fc1_b"],
                       pp["fc2n_w"], pp["fc2n_b"],
                       pp["fc2c_w"], pp["fc2c_b"])
    return num[:, :10], col[:, :10]


# ---------------------------------------------------------------------------
# Parameter init and pure-JAX reference (validation only)
# ---------------------------------------------------------------------------
def init_params(key):
    ks = jax.random.split(key, 10)

    def u(k, shape, fan_in):
        bound = 1.0 / np.sqrt(fan_in)
        return jax.random.uniform(k, shape, jnp.float32, -bound, bound)

    return {
        "conv1_w": u(ks[0], (20, 3, 5, 5), 3 * 5 * 5),   # OIHW, like PyTorch
        "conv1_b": u(ks[1], (20,), 3 * 5 * 5),
        "conv2_w": u(ks[2], (50, 20, 5, 5), 20 * 5 * 5),
        "conv2_b": u(ks[3], (50,), 20 * 5 * 5),
        "fc1_w": u(ks[4], (500, 800), 800),              # (out, in), like PyTorch
        "fc1_b": u(ks[5], (500,), 800),
        "fc2n_w": u(ks[6], (10, 500), 500),
        "fc2n_b": u(ks[7], (10,), 500),
        "fc2c_w": u(ks[8], (10, 500), 500),
        "fc2c_b": u(ks[9], (10,), 500),
    }


def net_forward_reference(x_nchw, params):
    hp = jax.lax.Precision.HIGHEST
    y = jax.lax.conv_general_dilated(
        x_nchw, params["conv1_w"], (1, 1), "VALID",
        dimension_numbers=("NCHW", "OIHW", "NCHW"), precision=hp)
    y = jax.nn.relu(y + params["conv1_b"][None, :, None, None])
    y = jax.lax.reduce_window(y, -jnp.inf, jax.lax.max,
                              (1, 1, 2, 2), (1, 1, 2, 2), "VALID")
    y = jax.lax.conv_general_dilated(
        y, params["conv2_w"], (1, 1), "VALID",
        dimension_numbers=("NCHW", "OIHW", "NCHW"), precision=hp)
    y = jax.nn.relu(y + params["conv2_b"][None, :, None, None])
    y = jax.lax.reduce_window(y, -jnp.inf, jax.lax.max,
                              (1, 1, 2, 2), (1, 1, 2, 2), "VALID")
    flat = y.reshape(y.shape[0], -1)
    h = jax.nn.relu(jnp.dot(flat, params["fc1_w"].T, precision=hp) + params["fc1_b"])
    num = jax.nn.log_softmax(jnp.dot(h, params["fc2n_w"].T, precision=hp) + params["fc2n_b"], axis=1)
    col = jax.nn.log_softmax(jnp.dot(h, params["fc2c_w"].T, precision=hp) + params["fc2c_b"], axis=1)
    return num, col


if __name__ == "__main__":
    key = jax.random.PRNGKey(0)
    kx, kp = jax.random.split(key)
    x = jax.random.normal(kx, (2, 3, 28, 28), jnp.float32)   # batch=2, NCHW
    params = init_params(kp)
    prepped = prepare_params(params)                          # one-time weight prep

    fwd = jax.jit(net_forward_pallas)
    num, col = jax.block_until_ready(fwd(x, prepped))
    rnum, rcol = net_forward_reference(x, params)

    assert num.shape == (2, 10) and col.shape == (2, 10)
    # log-softmax rows must exponentiate-sum to 1 (exact in f32)
    assert np.allclose(np.sum(np.exp(np.asarray(num)), axis=1), 1.0, atol=1e-3)
    assert np.allclose(np.sum(np.exp(np.asarray(col)), axis=1), 1.0, atol=1e-3)
    # match the f32 reference (bf16 MXU operands -> slightly looser tolerance)
    assert np.allclose(np.asarray(num), np.asarray(rnum), atol=3e-2, rtol=3e-2)
    assert np.allclose(np.asarray(col), np.asarray(rcol), atol=3e-2, rtol=3e-2)

    print("KERNEL_OK")
</pallas_src>

<mosaic_0001>
module attributes {stable_mosaic.version = 11 : i64} {
  func.func @_matmul_bias_relu_kernel(%arg0: i32, %arg1: memref<384x80xbf16, #tpu.memory_space<vmem>>, %arg2: memref<80x128xbf16, #tpu.memory_space<vmem>>, %arg3: memref<1x128xf32, #tpu.memory_space<vmem>>, %arg4: memref<384x128xf32, #tpu.memory_space<vmem>>) attributes {dimension_semantics = [#tpu.dimension_semantics<parallel>], iteration_bounds = array<i64: 3>, scalar_prefetch = 0 : i64, scratch_operands = 0 : i64, tpu.core_type = #tpu.core_type<tc>, window_params = [{transform_indices = @transform_0, window_bounds = array<i64: 384, 80>}, {pipeline_mode = #tpu.pipeline_mode<synchronous>, transform_indices = @transform_1, window_bounds = array<i64: 80, 128>}, {pipeline_mode = #tpu.pipeline_mode<synchronous>, transform_indices = @transform_2, window_bounds = array<i64: 1, 128>}, {transform_indices = @transform_3, window_bounds = array<i64: 384, 128>}]} {
    %c0 = arith.constant 0 : index
    %c0_0 = arith.constant 0 : index
    %0 = vector.load %arg1[%c0, %c0_0] : memref<384x80xbf16, #tpu.memory_space<vmem>>, vector<384x80xbf16>
    %c0_1 = arith.constant 0 : index
    %c0_2 = arith.constant 0 : index
    %1 = vector.load %arg2[%c0_1, %c0_2] : memref<80x128xbf16, #tpu.memory_space<vmem>>, vector<80x128xbf16>
    %cst = arith.constant dense<0.000000e+00> : vector<384x128xf32>
    %2 = tpu.matmul %0, %1, %cst {dimension_numbers = #tpu.dot_dimension_numbers<[1], [0], [0], [1], [0, 0, 1, 1], [], []>} : vector<384x80xbf16>, vector<80x128xbf16>, vector<384x128xf32> -> vector<384x128xf32>
    %c0_3 = arith.constant 0 : index
    %c0_4 = arith.constant 0 : index
    %3 = vector.load %arg3[%c0_3, %c0_4] : memref<1x128xf32, #tpu.memory_space<vmem>>, vector<1x128xf32>
    %4 = vector.broadcast %3 : vector<1x128xf32> to vector<384x128xf32>
    %5 = arith.addf %2, %4 : vector<384x128xf32>
    %cst_5 = arith.constant 0.000000e+00 : f32
    %6 = vector.broadcast %cst_5 : f32 to vector<384x128xf32>
    %7 = arith.maximumf %5, %6 : vector<384x128xf32>
    %c0_6 = arith.constant 0 : index
    %c0_7 = arith.constant 0 : index
    %8 = vector.load %arg4[%c0_6, %c0_7] : memref<384x128xf32, #tpu.memory_space<vmem>>, vector<384x128xf32>
    tpu.vector_store %arg4[%c0_6, %c0_7], %7 {strides = array<i32>} : memref<384x128xf32, #tpu.memory_space<vmem>>, vector<384x128xf32>,
    return
  }
  func.func @transform_0(%arg0: i32) -> (i32, i32) {
    %c0_i32 = arith.constant 0 : i32
    %c0_i32_0 = arith.constant 0 : i32
    return %arg0, %c0_i32 : i32, i32
  }
  func.func @transform_1(%arg0: i32) -> (i32, i32) {
    %c0_i32 = arith.constant 0 : i32
    %c0_i32_0 = arith.constant 0 : i32
    %c0_i32_1 = arith.constant 0 : i32
    return %c0_i32, %c0_i32_0 : i32, i32
  }
  func.func @transform_2(%arg0: i32) -> (i32, i32) {
    %c0_i32 = arith.constant 0 : i32
    %c0_i32_0 = arith.constant 0 : i32
    %c0_i32_1 = arith.constant 0 : i32
    return %c0_i32, %c0_i32_0 : i32, i32
  }
  func.func @transform_3(%arg0: i32) -> (i32, i32) {
    %c0_i32 = arith.constant 0 : i32
    %c0_i32_0 = arith.constant 0 : i32
    return %arg0, %c0_i32 : i32, i32
  }
}

module attributes {stable_mosaic.version = 11 : i64} {
  func.func @_matmul_bias_relu_kernel(%arg0: i32, %arg1: memref<128x512xbf16, #tpu.memory_space<vmem>>, %arg2: memref<512x128xbf16, #tpu.memory_space<vmem>>, %arg3: memref<1x128xf32, #tpu.memory_space<vmem>>, %arg4: memref<128x128xf32, #tpu.memory_space<vmem>>) attributes {dimension_semantics = [#tpu.dimension_semantics<parallel>], iteration_bounds = array<i64: 1>, scalar_prefetch = 0 : i64, scratch_operands = 0 : i64, tpu.core_type = #tpu.core_type<tc>, window_params = [{transform_indices = @transform_0, window_bounds = array<i64: 128, 512>}, {pipeline_mode = #tpu.pipeline_mode<synchronous>, transform_indices = @transform_1, window_bounds = array<i64: 512, 128>}, {pipeline_mode = #tpu.pipeline_mode<synchronous>, transform_indices = @transform_2, window_bounds = array<i64: 1, 128>}, {transform_indices = @transform_3, window_bounds = array<i64: 128, 128>}]} {
    %c0 = arith.constant 0 : index
    %c0_0 = arith.constant 0 : index
    %0 = vector.load %arg1[%c0, %c0_0] : memref<128x512xbf16, #tpu.memory_space<vmem>>, vector<128x512xbf16>
    %c0_1 = arith.constant 0 : index
    %c0_2 = arith.constant 0 : index
    %1 = vector.load %arg2[%c0_1, %c0_2] : memref<512x128xbf16, #tpu.memory_space<vmem>>, vector<512x128xbf16>
    %cst = arith.constant dense<0.000000e+00> : vector<128x128xf32>
    %2 = tpu.matmul %0, %1, %cst {dimension_numbers = #tpu.dot_dimension_numbers<[1], [0], [0], [1], [0, 0, 1, 1], [], []>} : vector<128x512xbf16>, vector<512x128xbf16>, vector<128x128xf32> -> vector<128x128xf32>
    %c0_3 = arith.constant 0 : index
    %c0_4 = arith.constant 0 : index
    %3 = vector.load %arg3[%c0_3, %c0_4] : memref<1x128xf32, #tpu.memory_space<vmem>>, vector<1x128xf32>
    %4 = vector.broadcast %3 : vector<1x128xf32> to vector<128x128xf32>
    %5 = arith.addf %2, %4 : vector<128x128xf32>
    %cst_5 = arith.constant 0.000000e+00 : f32
    %6 = vector.broadcast %cst_5 : f32 to vector<128x128xf32>
    %7 = arith.maximumf %5, %6 : vector<128x128xf32>
    %c0_6 = arith.constant 0 : index
    %c0_7 = arith.constant 0 : index
    %8 = vector.load %arg4[%c0_6, %c0_7] : memref<128x128xf32, #tpu.memory_space<vmem>>, vector<128x128xf32>
    tpu.vector_store %arg4[%c0_6, %c0_7], %7 {strides = array<i32>} : memref<128x128xf32, #tpu.memory_space<vmem>>, vector<128x128xf32>,
    return
  }
  func.func @transform_0(%arg0: i32) -> (i32, i32) {
    %c0_i32 = arith.constant 0 : i32
    %c0_i32_0 = arith.constant 0 : i32
    return %arg0, %c0_i32 : i32, i32
  }
  func.func @transform_1(%arg0: i32) -> (i32, i32) {
    %c0_i32 = arith.constant 0 : i32
    %c0_i32_0 = arith.constant 0 : i32
    %c0_i32_1 = arith.constant 0 : i32
    return %c0_i32, %c0_i32_0 : i32, i32
  }
  func.func @transform_2(%arg0: i32) -> (i32, i32) {
    %c0_i32 = arith.constant 0 : i32
    %c0_i32_0 = arith.constant 0 : i32
    %c0_i32_1 = arith.constant 0 : i32
    return %c0_i32, %c0_i32_0 : i32, i32
  }
  func.func @transform_3(%arg0: i32) -> (i32, i32) {
    %c0_i32 = arith.constant 0 : i32
    %c0_i32_0 = arith.constant 0 : i32
    return %arg0, %c0_i32 : i32, i32
  }
}

module attributes {stable_mosaic.version = 11 : i64} {
  func.func @_fc_tail_kernel(%arg0: i32, %arg1: memref<2x800xbf16, #tpu.memory_space<vmem>>, %arg2: memref<800x512xbf16, #tpu.memory_space<vmem>>, %arg3: memref<1x512xf32, #tpu.memory_space<vmem>>, %arg4: memref<512x128xbf16, #tpu.memory_space<vmem>>, %arg5: memref<1x128xf32, #tpu.memory_space<vmem>>, %arg6: memref<512x128xbf16, #tpu.memory_space<vmem>>, %arg7: memref<1x128xf32, #tpu.memory_space<vmem>>, %arg8: memref<2x128xf32, #tpu.memory_space<vmem>>, %arg9: memref<2x128xf32, #tpu.memory_space<vmem>>) attributes {dimension_semantics = [#tpu.dimension_semantics<parallel>], iteration_bounds = array<i64: 1>, scalar_prefetch = 0 : i64, scratch_operands = 0 : i64, tpu.core_type = #tpu.core_type<tc>, window_params = [{transform_indices = @transform_0, window_bounds = array<i64: 2, 800>}, {pipeline_mode = #tpu.pipeline_mode<synchronous>, transform_indices = @transform_1, window_bounds = array<i64: 800, 512>}, {pipeline_mode = #tpu.pipeline_mode<synchronous>, transform_indices = @transform_2, window_bounds = array<i64: 1, 512>}, {pipeline_mode = #tpu.pipeline_mode<synchronous>, transform_indices = @transform_3, window_bounds = array<i64: 512, 128>}, {pipeline_mode = #tpu.pipeline_mode<synchronous>, transform_indices = @transform_4, window_bounds = array<i64: 1, 128>}, {pipeline_mode = #tpu.pipeline_mode<synchronous>, transform_indices = @transform_5, window_bounds = array<i64: 512, 128>}, {pipeline_mode = #tpu.pipeline_mode<synchronous>, transform_indices = @transform_6, window_bounds = array<i64: 1, 128>}, {transform_indices = @transform_7, window_bounds = array<i64: 2, 128>}, {transform_indices = @transform_8, window_bounds = array<i64: 2, 128>}]} {
    %c0 = arith.constant 0 : index
    %c0_0 = arith.constant 0 : index
    %0 = vector.load %arg1[%c0, %c0_0] : memref<2x800xbf16, #tpu.memory_space<vmem>>, vector<2x800xbf16>
    %c0_1 = arith.constant 0 : index
    %c0_2 = arith.constant 0 : index
    %1 = vector.load %arg2[%c0_1, %c0_2] : memref<800x512xbf16, #tpu.memory_space<vmem>>, vector<800x512xbf16>
    %cst = arith.constant dense<0.000000e+00> : vector<2x512xf32>
    %2 = tpu.matmul %0, %1, %cst {dimension_numbers = #tpu.dot_dimension_numbers<[1], [0], [0], [1], [0, 0, 1, 1], [], []>} : vector<2x800xbf16>, vector<800x512xbf16>, vector<2x512xf32> -> vector<2x512xf32>
    %c0_3 = arith.constant 0 : index
    %c0_4 = arith.constant 0 : index
    %3 = vector.load %arg3[%c0_3, %c0_4] : memref<1x512xf32, #tpu.memory_space<vmem>>, vector<1x512xf32>
    %4 = vector.broadcast %3 : vector<1x512xf32> to vector<2x512xf32>
    %5 = arith.addf %2, %4 : vector<2x512xf32>
    %cst_5 = arith.constant 0.000000e+00 : f32
    %6 = vector.broadcast %cst_5 : f32 to vector<2x512xf32>
    %7 = arith.maximumf %5, %6 : vector<2x512xf32>
    %8 = arith.truncf %7 : vector<2x512xf32> to vector<2x512xbf16>
    %c0_6 = arith.constant 0 : index
    %c0_7 = arith.constant 0 : index
    %9 = vector.load %arg4[%c0_6, %c0_7] : memref<512x128xbf16, #tpu.memory_space<vmem>>, vector<512x128xbf16>
    %cst_8 = arith.constant dense<0.000000e+00> : vector<2x128xf32>
    %10 = tpu.matmul %8, %9, %cst_8 {dimension_numbers = #tpu.dot_dimension_numbers<[1], [0], [0], [1], [0, 0, 1, 1], [], []>} : vector<2x512xbf16>, vector<512x128xbf16>, vector<2x128xf32> -> vector<2x128xf32>
    %c0_9 = arith.constant 0 : index
    %c0_10 = arith.constant 0 : index
    %11 = vector.load %arg5[%c0_9, %c0_10] : memref<1x128xf32, #tpu.memory_space<vmem>>, vector<1x128xf32>
    %12 = vector.broadcast %11 : vector<1x128xf32> to vector<2x128xf32>
    %13 = arith.addf %10, %12 : vector<2x128xf32>
    %cst_11 = arith.constant dense<0xFF800000> : vector<2xf32>
    %14 = vector.multi_reduction <maximumf>, %13, %cst_11 [1] : vector<2x128xf32> to vector<2xf32>
    %15 = vector.shape_cast %14 : vector<2xf32> to vector<2x1xf32>
    %16 = vector.broadcast %15 : vector<2x1xf32> to vector<2x128xf32>
    %17 = arith.subf %13, %16 : vector<2x128xf32>
    %18 = math.exp %17 : vector<2x128xf32>
    %cst_12 = arith.constant dense<0.000000e+00> : vector<2xf32>
    %19 = vector.multi_reduction <add>, %18, %cst_12 [1] : vector<2x128xf32> to vector<2xf32>
    %20 = vector.shape_cast %19 : vector<2xf32> to vector<2x1xf32>
    %21 = math.log %20 : vector<2x1xf32>
    %22 = vector.broadcast %21 : vector<2x1xf32> to vector<2x128xf32>
    %23 = arith.subf %17, %22 : vector<2x128xf32>
    %c0_13 = arith.constant 0 : index
    %c0_14 = arith.constant 0 : index
    %24 = vector.load %arg8[%c0_13, %c0_14] : memref<2x128xf32, #tpu.memory_space<vmem>>, vector<2x128xf32>
    tpu.vector_store %arg8[%c0_13, %c0_14], %23 {strides = array<i32>} : memref<2x128xf32, #tpu.memory_space<vmem>>, vector<2x128xf32>,
    %c0_15 = arith.constant 0 : index
    %c0_16 = arith.constant 0 : index
    %25 = vector.load %arg6[%c0_15, %c0_16] : memref<512x128xbf16, #tpu.memory_space<vmem>>, vector<512x128xbf16>
    %cst_17 = arith.constant dense<0.000000e+00> : vector<2x128xf32>
    %26 = tpu.matmul %8, %25, %cst_17 {dimension_numbers = #tpu.dot_dimension_numbers<[1], [0], [0], [1], [0, 0, 1, 1], [], []>} : vector<2x512xbf16>, vector<512x128xbf16>, vector<2x128xf32> -> vector<2x128xf32>
    %c0_18 = arith.constant 0 : index
    %c0_19 = arith.constant 0 : index
    %27 = vector.load %arg7[%c0_18, %c0_19] : memref<1x128xf32, #tpu.memory_space<vmem>>, vector<1x128xf32>
    %28 = vector.broadcast %27 : vector<1x128xf32> to vector<2x128xf32>
    %29 = arith.addf %26, %28 : vector<2x128xf32>
    %cst_20 = arith.constant dense<0xFF800000> : vector<2xf32>
    %30 = vector.multi_reduction <maximumf>, %29, %cst_20 [1] : vector<2x128xf32> to vector<2xf32>
    %31 = vector.shape_cast %30 : vector<2xf32> to vector<2x1xf32>
    %32 = vector.broadcast %31 : vector<2x1xf32> to vector<2x128xf32>
    %33 = arith.subf %29, %32 : vector<2x128xf32>
    %34 = math.exp %33 : vector<2x128xf32>
    %cst_21 = arith.constant dense<0.000000e+00> : vector<2xf32>
    %35 = vector.multi_reduction <add>, %34, %cst_21 [1] : vector<2x128xf32> to vector<2xf32>
    %36 = vector.shape_cast %35 : vector<2xf32> to vector<2x1xf32>
    %37 = math.log %36 : vector<2x1xf32>
    %38 = vector.broadcast %37 : vector<2x1xf32> to vector<2x128xf32>
    %39 = arith.subf %33, %38 : vector<2x128xf32>
    %c0_22 = arith.constant 0 : index
    %c0_23 = arith.constant 0 : index
    %40 = vector.load %arg9[%c0_22, %c0_23] : memref<2x128xf32, #tpu.memory_space<vmem>>, vector<2x128xf32>
    tpu.vector_store %arg9[%c0_22, %c0_23], %39 {strides = array<i32>} : memref<2x128xf32, #tpu.memory_space<vmem>>, vector<2x128xf32>,
    return
  }
  func.func @transform_0(%arg0: i32) -> (i32, i32) {
    %c0_i32 = arith.constant 0 : i32
    %c0_i32_0 = arith.constant 0 : i32
    return %arg0, %c0_i32 : i32, i32
  }
  func.func @transform_1(%arg0: i32) -> (i32, i32) {
    %c0_i32 = arith.constant 0 : i32
    %c0_i32_0 = arith.constant 0 : i32
    %c0_i32_1 = arith.constant 0 : i32
    return %c0_i32, %c0_i32_0 : i32, i32
  }
  func.func @transform_2(%arg0: i32) -> (i32, i32) {
    %c0_i32 = arith.constant 0 : i32
    %c0_i32_0 = arith.constant 0 : i32
    %c0_i32_1 = arith.constant 0 : i32
    return %c0_i32, %c0_i32_0 : i32, i32
  }
  func.func @transform_3(%arg0: i32) -> (i32, i32) {
    %c0_i32 = arith.constant 0 : i32
    %c0_i32_0 = arith.constant 0 : i32
    %c0_i32_1 = arith.constant 0 : i32
    return %c0_i32, %c0_i32_0 : i32, i32
  }
  func.func @transform_4(%arg0: i32) -> (i32, i32) {
    %c0_i32 = arith.constant 0 : i32
    %c0_i32_0 = arith.constant 0 : i32
    %c0_i32_1 = arith.constant 0 : i32
    return %c0_i32, %c0_i32_0 : i32, i32
  }
  func.func @transform_5(%arg0: i32) -> (i32, i32) {
    %c0_i32 = arith.constant 0 : i32
    %c0_i32_0 = arith.constant 0 : i32
    %c0_i32_1 = arith.constant 0 : i32
    return %c0_i32, %c0_i32_0 : i32, i32
  }
  func.func @transform_6(%arg0: i32) -> (i32, i32) {
    %c0_i32 = arith.constant 0 : i32
    %c0_i32_0 = arith.constant 0 : i32
    %c0_i32_1 = arith.constant 0 : i32
    return %c0_i32, %c0_i32_0 : i32, i32
  }
  func.func @transform_7(%arg0: i32) -> (i32, i32) {
    %c0_i32 = arith.constant 0 : i32
    %c0_i32_0 = arith.constant 0 : i32
    return %arg0, %c0_i32 : i32, i32
  }
  func.func @transform_8(%arg0: i32) -> (i32, i32) {
    %c0_i32 = arith.constant 0 : i32
    %c0_i32_0 = arith.constant 0 : i32
    return %arg0, %c0_i32 : i32, i32
  }
}

</mosaic_0001>

<llo_original>
// kernel: net_forward_pallas.3
$region0: #{net_forward_pallas.3}
  #allocation0 [shape = 'u32[]', space=smem, size = 0x4, offset = 0x4, fixed_abs, tag = 'smem constant byte address 0x4 - core index']
  #allocation1 [shape = 'u32[144,128]{1,0:T(1,128)}', space=vmem, size = 0x12000, scoped, tag = 'internal scratch']
  %s0 = inlined_call_operand.vmem [shape: bf16[1152,80], index: 0, kind: input, shape index: {}]
  %s1 = inlined_call_operand.vmem [shape: bf16[80,128], index: 1, kind: input, shape index: {}]
  %s2 = inlined_call_operand.vmem [shape: f32[1,128], index: 2, kind: input, shape index: {}]
  %s3 = inlined_call_operand.vmem [shape: f32[1152,128], index: 3, kind: output, shape index: {}]
  %s4 = sld [smem:[#allocation0]]
  $region45: #{net_forward_pallas.3} parent=0
    _
  %s6 = ssub.s32 1, %s4
  %s7 = scalar_select 0, %s6, %s4
  loop: start=0, step=1, limit=5
  $region2: #{net_forward_pallas.3} parent=0 // loop_pre_header
    _
  $region3: #{net_forward_pallas.3} parent=0 // loop_header
    %s9 = sphi 0, %s13
    %p10 = scmp.ge.s32.totalorder %s9, 5
    %s19 = sphi 0, %s21
    %s22 = sphi 0, %s19
    %s23 = sphi 0, %s22
    %s39 = sphi 0, %s23
    %s43 = sphi 0, %s43
    %s45 = sphi 0, %s43
    %s46 = sphi 0, %s45
    %s60 = sphi 0, %s46
    %s64 = sphi 0, %s64
    %s66 = sphi 0, %s64
    %s67 = sphi 0, %s66
    %s81 = sphi 0, %s67
    %s87 = sphi 0, %s89
    %s90 = sphi 0, %s87
    %s91 = sphi 0, %s90
    %s107 = sphi 0, %s91
  $region4: #{net_forward_pallas.3} parent=0 // loop_header_branch
    %12 = sbr.rel (%p10) target = $region8
  $region5: #{net_forward_pallas.3} parent=0 // loop_body
    %s14 = ssub.s32 %s9, 1
    %s15 = ssub.s32 %s9, 2
    %s16 = sadd.s32 %s9, 1
    %s17 = ssub.s32 %s9, %s16
    %p18 = scmp.eq.s32.totalorder %s17, 0
    %s20 = sadd.s32 %s19, 1
    %s21 = scalar_select %p18, %s19, %s20
    %p24 = pneg %p18
    %p25 = scmp.eq.s32.totalorder %s9, 2
    %p26 = por %p24, %p25
    %p27 = scmp.ne.s32.totalorder %s19, %s22
    %p28 = scmp.eq.s32.totalorder %s9, 0
    %p29 = por %p27, %p28
    %p30 = scmp.ne.s32.totalorder %s19, %s22
    %p31 = scmp.eq.s32.totalorder %s14, 2
    %p32 = por %p30, %p31
    %p33 = scmp.ne.s32.totalorder %s22, %s23
    %p34 = scmp.eq.s32.totalorder %s14, 0
    %p35 = por %p33, %p34
    %p36 = scmp.ne.s32.totalorder %s22, %s23
    %p37 = scmp.eq.s32.totalorder %s15, 2
    %p38 = por %p36, %p37
    %p40 = scmp.ne.s32.totalorder %s23, %s39
    %p41 = scmp.eq.s32.totalorder %s15, 0
    %p42 = por %p40, %p41
    %s44 = sadd.s32 %s43, 1
    %p47 = scmp.eq.s32.totalorder %s9, 2
    %p48 = scmp.ne.s32.totalorder %s43, %s45
    %p49 = scmp.eq.s32.totalorder %s9, 0
    %p50 = por %p48, %p49
    %p51 = scmp.ne.s32.totalorder %s43, %s45
    %p52 = scmp.eq.s32.totalorder %s14, 2
    %p53 = por %p51, %p52
    %p54 = scmp.ne.s32.totalorder %s45, %s46
    %p55 = scmp.eq.s32.totalorder %s14, 0
    %p56 = por %p54, %p55
    %p57 = scmp.ne.s32.totalorder %s45, %s46
    %p58 = scmp.eq.s32.totalorder %s15, 2
    %p59 = por %p57, %p58
    %p61 = scmp.ne.s32.totalorder %s46, %s60
    %p62 = scmp.eq.s32.totalorder %s15, 0
    %p63 = por %p61, %p62
    %s65 = sadd.s32 %s64, 1
    %p68 = scmp.eq.s32.totalorder %s9, 2
    %p69 = scmp.ne.s32.totalorder %s64, %s66
    %p70 = scmp.eq.s32.totalorder %s9, 0
    %p71 = por %p69, %p70
    %p72 = scmp.ne.s32.totalorder %s64, %s66
    %p73 = scmp.eq.s32.totalorder %s14, 2
    %p74 = por %p72, %p73
    %p75 = scmp.ne.s32.totalorder %s66, %s67
    %p76 = scmp.eq.s32.totalorder %s14, 0
    %p77 = por %p75, %p76
    %p78 = scmp.ne.s32.totalorder %s66, %s67
    %p79 = scmp.eq.s32.totalorder %s15, 2
    %p80 = por %p78, %p79
    %p82 = scmp.ne.s32.totalorder %s67, %s81
    %p83 = scmp.eq.s32.totalorder %s15, 0
    %p84 = por %p82, %p83
    %s85 = ssub.s32 %s9, %s16
    %p86 = scmp.eq.s32.totalorder %s85, 0
    %s88 = sadd.s32 %s87, 1
    %s89 = scalar_select %p86, %s87, %s88
    %p92 = pneg %p86
    %p93 = scmp.eq.s32.totalorder %s9, 2
    %p94 = por %p92, %p93
    %p95 = scmp.ne.s32.totalorder %s87, %s90
    %p96 = scmp.eq.s32.totalorder %s9, 0
    %p97 = por %p95, %p96
    %p98 = scmp.ne.s32.totalorder %s87, %s90
    %p99 = scmp.eq.s32.totalorder %s14, 2
    %p100 = por %p98, %p99
    %p101 = scmp.ne.s32.totalorder %s90, %s91
    %p102 = scmp.eq.s32.totalorder %s14, 0
    %p103 = por %p101, %p102
    %p104 = scmp.ne.s32.totalorder %s90, %s91
    %p105 = scmp.eq.s32.totalorder %s15, 2
    %p106 = por %p104, %p105
    %p108 = scmp.ne.s32.totalorder %s91, %s107
    %p109 = scmp.eq.s32.totalorder %s15, 0
    %p110 = por %p108, %p109
    %p111 = scmp.le.s32.totalorder 1, %s9
    %p112 = scmp.lt.s32.totalorder %s9, 4
    %p113 = pnand %p111, %p112
    %p114 = pneg %p113
    // Predicated region
    $region9: #{net_forward_pallas.3} parent=5 // pred_check
      _
    $region10: #{net_forward_pallas.3} parent=5 // pred_check_branch
      %116 = sbr.rel (%p113) target = $region12
    $region11: #{net_forward_pallas.3} parent=5 // pred_region
      %s117 = ssub.s32 %s9, 1
      // Predicated region
      $region13: #{net_forward_pallas.3} parent=11 // pred_check
        %p118 = pneg %p56
      $region14: #{net_forward_pallas.3} parent=11 // pred_check_branch
        %120 = sbr.rel (%p118) target = $region16
      $region15: #{net_forward_pallas.3} parent=11 // pred_region
        _
      $region16: #{net_forward_pallas.3} parent=11 // pred_fallthru
        _
      // Predicated region
      $region17: #{net_forward_pallas.3} parent=11 // pred_check
        %p121 = pneg %p77
      $region18: #{net_forward_pallas.3} parent=11 // pred_check_branch
        %123 = sbr.rel (%p121) target = $region20
      $region19: #{net_forward_pallas.3} parent=11 // pred_region
        _
      $region20: #{net_forward_pallas.3} parent=11 // pred_fallthru
        _
    $region12: #{net_forward_pallas.3} parent=5 // pred_fallthru
      _
    %p124 = scmp.lt.s32.totalorder %s9, 3
    // Predicated region
    $region21: #{net_forward_pallas.3} parent=5 // pred_check
      %p125 = pneg %p124
    $region22: #{net_forward_pallas.3} parent=5 // pred_check_branch
      %127 = sbr.rel (%p125) target = $region24
    $region23: #{net_forward_pallas.3} parent=5 // pred_region
      // Predicated region
      $region25: #{net_forward_pallas.3} parent=23 // pred_check
        %p128 = pneg %p29
      $region26: #{net_forward_pallas.3} parent=23 // pred_check_branch
        %130 = sbr.rel (%p128) target = $region28
      $region27: #{net_forward_pallas.3} parent=23 // pred_region
        %s131 = smul.u32 48, %s9
        %p132 = scmp.lt.s32.totalorder %s131, 143
        %s133 = scalar_select %p132, %s131, 143
        %s134 = smul.addr %s133, 4
        %s135 = scalar_lea.vmem %s0, %s134
        %s136 = smul.u32 48, %s9
      $region28: #{net_forward_pallas.3} parent=23 // pred_fallthru
        _
    $region24: #{net_forward_pallas.3} parent=5 // pred_fallthru
      _
    %p137 = scmp.le.s32.totalorder 1, %s9
    %p138 = scmp.lt.s32.totalorder %s9, 4
    %p139 = pnand %p137, %p138
    %p140 = pneg %p139
    // Predicated region
    $region29: #{net_forward_pallas.3} parent=5 // pred_check
      _
    $region30: #{net_forward_pallas.3} parent=5 // pred_check_branch
      %142 = sbr.rel (%p139) target = $region32
    $region31: #{net_forward_pallas.3} parent=5 // pred_region
      %s143 = ssub.s32 %s9, 1
      %s144 = smul.u32 48, %s14
      %p145 = scmp.lt.s32.totalorder %s144, 143
      %s146 = scalar_select %p145, %s144, 143
      %s147 = smul.addr %s146, 4
      %s148 = scalar_lea.vmem %s0, %s147
      %p149 = pneg %p35
      %p150 = pneg %p32
      %p151 = pneg %p56
      %p152 = pneg %p53
      %p153 = pneg %p77
      %p154 = pneg %p74
      %p155 = pneg %p103
      %p156 = pneg %p100
      %s157 = smul.u32 48, %s14
      %p158 = scmp.lt.s32.totalorder %s157, 143
      %s159 = scalar_select %p158, %s157, 143
      %s160 = smul.addr %s159, 8
      %s161 = scalar_lea.vmem %s3, %s160
      %s162 = smul.u32 48, %s14
      %p163 = scmp.lt.s32.totalorder %s162, 143
      %s164 = scalar_select %p163, %s162, 143
      %s165 = smul.addr %s164, 4
      %s166 = scalar_lea.vmem %s0, %s165
      %s167 = smul.u32 48, %s14
      %s168 = smul.u32 48, %s14
      %p169 = scmp.lt.s32.totalorder %s168, 143
      %s170 = scalar_select %p169, %s168, 143
      %s171 = smul.addr %s170, 8
      %s172 = scalar_lea.vmem %s3, %s171
      %s173 = smul.u32 48, %s14
      %v175 = vld [vmem:[%s166] sm:$0xf]
      %v176 = vld [vmem:[%s166 + $0x4] sm:$0xf]
      %v177 = vld [vmem:[%s166 + $0x8] sm:$0xf]
      %v178 = vld [vmem:[%s166 + $0xc] sm:$0xf]
      %v179 = vld [vmem:[%s166 + $0x10] sm:$0xf]
      %v180 = vld [vmem:[%s166 + $0x14] sm:$0xf]
      %v181 = vld [vmem:[%s166 + $0x18] sm:$0xf]
      %v182 = vld [vmem:[%s166 + $0x1c] sm:$0xf]
      %v183 = vld [vmem:[%s166 + $0x20] sm:$0xf]
      %v184 = vld [vmem:[%s166 + $0x24] sm:$0xf]
      %v185 = vld [vmem:[%s166 + $0x28] sm:$0xf]
      %v186 = vld [vmem:[%s166 + $0x2c] sm:$0xf]
      %v187 = vld [vmem:[%s166 + $0x30] sm:$0xf]
      %v188 = vld [vmem:[%s166 + $0x34] sm:$0xf]
      %v189 = vld [vmem:[%s166 + $0x38] sm:$0xf]
      %v190 = vld [vmem:[%s166 + $0x3c] sm:$0xf]
      %v191 = vld [vmem:[%s166 + $0x40] sm:$0xf]
      %v192 = vld [vmem:[%s166 + $0x44] sm:$0xf]
      %v193 = vld [vmem:[%s166 + $0x48] sm:$0xf]
      %v194 = vld [vmem:[%s166 + $0x4c] sm:$0xf]
      %v195 = vld [vmem:[%s166 + $0x50] sm:$0xf]
      %v196 = vld [vmem:[%s166 + $0x54] sm:$0xf]
      %v197 = vld [vmem:[%s166 + $0x58] sm:$0xf]
      %v198 = vld [vmem:[%s166 + $0x5c] sm:$0xf]
      %v199 = vld [vmem:[%s166 + $0x60] sm:$0xf]
      %v200 = vld [vmem:[%s166 + $0x64] sm:$0xf]
      %v201 = vld [vmem:[%s166 + $0x68] sm:$0xf]
      %v202 = vld [vmem:[%s166 + $0x6c] sm:$0xf]
      %v203 = vld [vmem:[%s166 + $0x70] sm:$0xf]
      %v204 = vld [vmem:[%s166 + $0x74] sm:$0xf]
      %v205 = vld [vmem:[%s166 + $0x78] sm:$0xf]
      %v206 = vld [vmem:[%s166 + $0x7c] sm:$0xf]
      %v207 = vld [vmem:[%s166 + $0x80] sm:$0xf]
      %v208 = vld [vmem:[%s166 + $0x84] sm:$0xf]
      %v209 = vld [vmem:[%s166 + $0x88] sm:$0xf]
      %v210 = vld [vmem:[%s166 + $0x8c] sm:$0xf]
      %v211 = vld [vmem:[%s166 + $0x90] sm:$0xf]
      %v212 = vld [vmem:[%s166 + $0x94] sm:$0xf]
      %v213 = vld [vmem:[%s166 + $0x98] sm:$0xf]
      %v214 = vld [vmem:[%s166 + $0x9c] sm:$0xf]
      %v215 = vld [vmem:[%s166 + $0xa0] sm:$0xf]
      %v216 = vld [vmem:[%s166 + $0xa4] sm:$0xf]
      %v217 = vld [vmem:[%s166 + $0xa8] sm:$0xf]
      %v218 = vld [vmem:[%s166 + $0xac] sm:$0xf]
      %v219 = vld [vmem:[%s166 + $0xb0] sm:$0xf]
      %v220 = vld [vmem:[%s166 + $0xb4] sm:$0xf]
      %v221 = vld [vmem:[%s166 + $0xb8] sm:$0xf]
      %v222 = vld [vmem:[%s166 + $0xbc] sm:$0xf]
      %v223 = vld [vmem:[%s1] sm:$0xf]
      %v224 = vld [vmem:[%s1 + $0x4] sm:$0xf]
      %v225 = vld [vmem:[%s1 + $0x8] sm:$0xf]
      %v226 = vld [vmem:[%s1 + $0xc] sm:$0xf]
      %v227 = vld [vmem:[%s1 + $0x10] sm:$0xf]
      %v228 = vld [vmem:[%s1 + $0x14] sm:$0xf]
      %v229 = vld [vmem:[%s1 + $0x18] sm:$0xf]
      %v230 = vld [vmem:[%s1 + $0x1c] sm:$0xf]
      %v231 = vld [vmem:[%s1 + $0x20] sm:$0xf]
      %v232 = vld [vmem:[%s1 + $0x24] sm:$0xf]
      %v233 = vld [vmem:[%s2] sm:$0x1]
      %v235 = vlaneseq
      %v236 = vshrl.u32 %v235, 7
      %v237 = vsub.s32 0, %v236
      %v238 = vrot.slane %v233, %v237
      %v288 = vunpack.c.l.b16 %v175
      %v289 = vunpack.c.l.b16 %v176
      %v290 = vunpack.c.l.b16 %v177
      %v291 = vunpack.c.l.b16 %v178
      %v292 = vunpack.c.l.b16 %v179
      %v293 = vunpack.c.l.b16 %v180
      %v294 = vunpack.c.l.b16 %v181
      %v295 = vunpack.c.l.b16 %v182
      %v296 = vunpack.c.l.b16 %v183
      %v297 = vunpack.c.l.b16 %v184
      %v298 = vunpack.c.l.b16 %v185
      %v299 = vunpack.c.l.b16 %v186
      %v300 = vunpack.c.l.b16 %v187
      %v301 = vunpack.c.l.b16 %v188
      %v302 = vunpack.c.l.b16 %v189
      %v303 = vunpack.c.l.b16 %v190
      %v304 = vunpack.c.l.b16 %v191
      %v305 = vunpack.c.l.b16 %v192
      %v306 = vunpack.c.l.b16 %v193
      %v307 = vunpack.c.l.b16 %v194
      %v308 = vunpack.c.l.b16 %v195
      %v309 = vunpack.c.l.b16 %v196
      %v310 = vunpack.c.l.b16 %v197
      %v311 = vunpack.c.l.b16 %v198
      %v312 = vunpack.c.l.b16 %v199
      %v313 = vunpack.c.l.b16 %v200
      %v314 = vunpack.c.l.b16 %v201
      %v315 = vunpack.c.l.b16 %v202
      %v316 = vunpack.c.l.b16 %v203
      %v317 = vunpack.c.l.b16 %v204
      %v318 = vunpack.c.l.b16 %v205
      %v319 = vunpack.c.l.b16 %v206
      %v320 = vunpack.c.l.b16 %v207
      %v321 = vunpack.c.l.b16 %v208
      %v322 = vunpack.c.l.b16 %v209
      %v323 = vunpack.c.l.b16 %v210
      %v324 = vunpack.c.l.b16 %v211
      %v325 = vunpack.c.l.b16 %v212
      %v326 = vunpack.c.l.b16 %v213
      %v327 = vunpack.c.l.b16 %v214
      %v328 = vunpack.c.l.b16 %v215
      %v329 = vunpack.c.l.b16 %v216
      %v330 = vunpack.c.l.b16 %v217
      %v331 = vunpack.c.l.b16 %v218
      %v332 = vunpack.c.l.b16 %v219
      %v333 = vunpack.c.l.b16 %v220
      %v334 = vunpack.c.l.b16 %v221
      %v335 = vunpack.c.l.b16 %v222
      %v336 = vpack.c.b16 %v289, %v288
      %v337 = vpack.c.b16 %v291, %v290
      %v338 = vpack.c.b16 %v293, %v292
      %v339 = vpack.c.b16 %v295, %v294
      %v340 = vpack.c.b16 %v297, %v296
      %v341 = vpack.c.b16 %v299, %v298
      %v342 = vpack.c.b16 %v301, %v300
      %v343 = vpack.c.b16 %v303, %v302
      %v344 = vpack.c.b16 %v305, %v304
      %v345 = vpack.c.b16 %v307, %v306
      %v346 = vpack.c.b16 %v309, %v308
      %v347 = vpack.c.b16 %v311, %v310
      %v348 = vpack.c.b16 %v313, %v312
      %v349 = vpack.c.b16 %v315, %v314
      %v350 = vpack.c.b16 %v317, %v316
      %v351 = vpack.c.b16 %v319, %v318
      %v352 = vpack.c.b16 %v321, %v320
      %v353 = vpack.c.b16 %v323, %v322
      %v354 = vpack.c.b16 %v325, %v324
      %v355 = vpack.c.b16 %v327, %v326
      %v356 = vpack.c.b16 %v329, %v328
      %v357 = vpack.c.b16 %v331, %v330
      %v358 = vpack.c.b16 %v333, %v332
      %v359 = vpack.c.b16 %v335, %v334
      %v370 = vunpack.c.l.b16 %v223
      %v371 = vunpack.c.l.b16 %v224
      %v372 = vunpack.c.l.b16 %v225
      %v373 = vunpack.c.l.b16 %v226
      %v374 = vunpack.c.l.b16 %v227
      %v375 = vunpack.c.l.b16 %v228
      %v376 = vunpack.c.l.b16 %v229
      %v377 = vunpack.c.l.b16 %v230
      %v378 = vunpack.c.l.b16 %v231
      %v379 = vunpack.c.l.b16 %v232
      %v380 = vpack.c.b16 %v371, %v370
      %v381 = vpack.c.b16 %v373, %v372
      %v382 = vpack.c.b16 %v375, %v374
      %v383 = vpack.c.b16 %v377, %v376
      %v384 = vpack.c.b16 %v379, %v378
      %vm390 = vcmask 654336
      %v392 = vsel %vm390, %v336, 0
      %v395 = vsel %vm390, %v337, 0
      %v398 = vsel %vm390, %v338, 0
      %v401 = vsel %vm390, %v339, 0
      %v404 = vsel %vm390, %v340, 0
      %v407 = vsel %vm390, %v341, 0
      %v410 = vsel %vm390, %v342, 0
      %v413 = vsel %vm390, %v343, 0
      %v416 = vsel %vm390, %v344, 0
      %v419 = vsel %vm390, %v345, 0
      %v422 = vsel %vm390, %v346, 0
      %v425 = vsel %vm390, %v347, 0
      %v428 = vsel %vm390, %v348, 0
      %v431 = vsel %vm390, %v349, 0
      %v434 = vsel %vm390, %v350, 0
      %v437 = vsel %vm390, %v351, 0
      %v440 = vsel %vm390, %v352, 0
      %v443 = vsel %vm390, %v353, 0
      %v446 = vsel %vm390, %v354, 0
      %v449 = vsel %vm390, %v355, 0
      %v452 = vsel %vm390, %v356, 0
      %v455 = vsel %vm390, %v357, 0
      %v458 = vsel %vm390, %v358, 0
      %v461 = vsel %vm390, %v359, 0
      %463 = vmatprep.subr.bf16.mxu0 0
      %464 = vmatpush1.bf16.msra.mxu0 %v380
      %465 = vmatprep.subr.bf16.mxu0 0
      %466 = vmatpush1.bf16.msra.mxu0 %v381
      %467 = vmatprep.subr.bf16.mxu0 0
      %468 = vmatpush1.bf16.msra.mxu0 %v382
      %469 = vmatprep.subr.bf16.mxu0 0
      %470 = vmatpush1.bf16.msra.mxu0 %v383
      %471 = vmatprep.subr.bf16.mxu0 0
      %472 = vmatpush1.bf16.msra.mxu0 %v384
      %473 = vmatprep.subr.bf16.mxu0 0
      %474 = vmatpush1.bf16.msra.mxu0 0
      %475 = vmatprep.subr.bf16.mxu0 0
      %476 = vmatpush1.bf16.msra.mxu0 0
      %477 = vmatprep.subr.bf16.mxu0 0
      %478 = vmatpush1.bf16.msra.mxu0 0
      %479 = vmatprep.subr.bf16.mxu0 0
      %480 = vmatpush1.bf16.msra.mxu0 0
      %481 = vmatprep.subr.bf16.mxu0 0
      %482 = vmatpush1.bf16.msra.mxu0 0
      %483 = vmatprep.subr.bf16.mxu0 0
      %484 = vmatpush1.bf16.msra.mxu0 0
      %485 = vmatprep.subr.bf16.mxu0 0
      %486 = vmatpush1.bf16.msra.mxu0 0
      %487 = vmatprep.subr.bf16.mxu0 0
      %488 = vmatpush1.bf16.msra.mxu0 0
      %489 = vmatprep.subr.bf16.mxu0 0
      %490 = vmatpush1.bf16.msra.mxu0 0
      %491 = vmatprep.subr.bf16.mxu0 0
      %492 = vmatpush1.bf16.msra.mxu0 0
      %493 = vmatprep.subr.bf16.mxu0 0
      %494 = vmatpush1.bf16.msra.mxu0 0
      %495 = vmatprep.mubr.bf16.mxu0 0
      %496 = vmatmul.mubr.bf16.gmra.mrb[0].mxu0 %v392
      %v497 = vpop.f32.mrb[0].mxu0
      %v498 = vadd.f32 %v238, %v497
      %v499 = vpop.f32.mrb[0].mxu0
      %v500 = vpop.f32.mrb[0].mxu0
      %v501 = vadd.f32 %v238, %v500
      %v502 = vpop.f32.mrb[0].mxu0
      %503 = vmatprep.mubr.bf16.mxu0 0
      %504 = vmatmul.mubr.bf16.gmra.mrb[0].mxu0 %v395
      %v505 = vpop.f32.mrb[0].mxu0
      %v506 = vadd.f32 %v238, %v505
      %v507 = vpop.f32.mrb[0].mxu0
      %v508 = vpop.f32.mrb[0].mxu0
      %v509 = vadd.f32 %v238, %v508
      %v510 = vpop.f32.mrb[0].mxu0
      %511 = vmatprep.mubr.bf16.mxu0 0
      %512 = vmatmul.mubr.bf16.gmra.mrb[0].mxu0 %v398
      %v513 = vpop.f32.mrb[0].mxu0
      %v514 = vadd.f32 %v238, %v513
      %v515 = vpop.f32.mrb[0].mxu0
      %v516 = vpop.f32.mrb[0].mxu0
      %v517 = vadd.f32 %v238, %v516
      %v518 = vpop.f32.mrb[0].mxu0
      %519 = vmatprep.mubr.bf16.mxu0 0
      %520 = vmatmul.mubr.bf16.gmra.mrb[0].mxu0 %v401
      %v521 = vpop.f32.mrb[0].mxu0
      %v522 = vadd.f32 %v238, %v521
      %v523 = vpop.f32.mrb[0].mxu0
      %v524 = vpop.f32.mrb[0].mxu0
      %v525 = vadd.f32 %v238, %v524
      %v526 = vpop.f32.mrb[0].mxu0
      %527 = vmatprep.mubr.bf16.mxu0 0
      %528 = vmatmul.mubr.bf16.gmra.mrb[0].mxu0 %v404
      %v529 = vpop.f32.mrb[0].mxu0
      %v530 = vadd.f32 %v238, %v529
      %v531 = vpop.f32.mrb[0].mxu0
      %v532 = vpop.f32.mrb[0].mxu0
      %v533 = vadd.f32 %v238, %v532
      %v534 = vpop.f32.mrb[0].mxu0
      %535 = vmatprep.mubr.bf16.mxu0 0
      %536 = vmatmul.mubr.bf16.gmra.mrb[0].mxu0 %v407
      %v537 = vpop.f32.mrb[0].mxu0
      %v538 = vadd.f32 %v238, %v537
      %v539 = vpop.f32.mrb[0].mxu0
      %v540 = vpop.f32.mrb[0].mxu0
      %v541 = vadd.f32 %v238, %v540
      %v542 = vpop.f32.mrb[0].mxu0
      %543 = vmatprep.mubr.bf16.mxu0 0
      %544 = vmatmul.mubr.bf16.gmra.mrb[0].mxu0 %v410
      %v545 = vpop.f32.mrb[0].mxu0
      %v546 = vadd.f32 %v238, %v545
      %v547 = vpop.f32.mrb[0].mxu0
      %v548 = vpop.f32.mrb[0].mxu0
      %v549 = vadd.f32 %v238, %v548
      %v550 = vpop.f32.mrb[0].mxu0
      %551 = vmatprep.mubr.bf16.mxu0 0
      %552 = vmatmul.mubr.bf16.gmra.mrb[0].mxu0 %v413
      %v553 = vpop.f32.mrb[0].mxu0
      %v554 = vadd.f32 %v238, %v553
      %v555 = vpop.f32.mrb[0].mxu0
      %v556 = vpop.f32.mrb[0].mxu0
      %v557 = vadd.f32 %v238, %v556
      %v558 = vpop.f32.mrb[0].mxu0
      %559 = vmatprep.mubr.bf16.mxu0 0
      %560 = vmatmul.mubr.bf16.gmra.mrb[0].mxu0 %v416
      %v561 = vpop.f32.mrb[0].mxu0
      %v562 = vadd.f32 %v238, %v561
      %v563 = vpop.f32.mrb[0].mxu0
      %v564 = vpop.f32.mrb[0].mxu0
      %v565 = vadd.f32 %v238, %v564
      %v566 = vpop.f32.mrb[0].mxu0
      %567 = vmatprep.mubr.bf16.mxu0 0
      %568 = vmatmul.mubr.bf16.gmra.mrb[0].mxu0 %v419
      %v569 = vpop.f32.mrb[0].mxu0
      %v570 = vadd.f32 %v238, %v569
      %v571 = vpop.f32.mrb[0].mxu0
      %v572 = vpop.f32.mrb[0].mxu0
      %v573 = vadd.f32 %v238, %v572
      %v574 = vpop.f32.mrb[0].mxu0
      %575 = vmatprep.mubr.bf16.mxu0 0
      %576 = vmatmul.mubr.bf16.gmra.mrb[0].mxu0 %v422
      %v577 = vpop.f32.mrb[0].mxu0
      %v578 = vadd.f32 %v238, %v577
      %v579 = vpop.f32.mrb[0].mxu0
      %v580 = vpop.f32.mrb[0].mxu0
      %v581 = vadd.f32 %v238, %v580
      %v582 = vpop.f32.mrb[0].mxu0
      %583 = vmatprep.mubr.bf16.mxu0 0
      %584 = vmatmul.mubr.bf16.gmra.mrb[0].mxu0 %v425
      %v585 = vpop.f32.mrb[0].mxu0
      %v586 = vadd.f32 %v238, %v585
      %v587 = vpop.f32.mrb[0].mxu0
      %v588 = vpop.f32.mrb[0].mxu0
      %v589 = vadd.f32 %v238, %v588
      %v590 = vpop.f32.mrb[0].mxu0
      %591 = vmatprep.mubr.bf16.mxu0 0
      %592 = vmatmul.mubr.bf16.gmra.mrb[0].mxu0 %v428
      %v593 = vpop.f32.mrb[0].mxu0
      %v594 = vadd.f32 %v238, %v593
      %v595 = vpop.f32.mrb[0].mxu0
      %v596 = vpop.f32.mrb[0].mxu0
      %v597 = vadd.f32 %v238, %v596
      %v598 = vpop.f32.mrb[0].mxu0
      %599 = vmatprep.mubr.bf16.mxu0 0
      %600 = vmatmul.mubr.bf16.gmra.mrb[0].mxu0 %v431
      %v601 = vpop.f32.mrb[0].mxu0
      %v602 = vadd.f32 %v238, %v601
      %v603 = vpop.f32.mrb[0].mxu0
      %v604 = vpop.f32.mrb[0].mxu0
      %v605 = vadd.f32 %v238, %v604
      %v606 = vpop.f32.mrb[0].mxu0
      %607 = vmatprep.mubr.bf16.mxu0 0
      %608 = vmatmul.mubr.bf16.gmra.mrb[0].mxu0 %v434
      %v609 = vpop.f32.mrb[0].mxu0
      %v610 = vadd.f32 %v238, %v609
      %v611 = vpop.f32.mrb[0].mxu0
      %v612 = vpop.f32.mrb[0].mxu0
      %v613 = vadd.f32 %v238, %v612
      %v614 = vpop.f32.mrb[0].mxu0
      %615 = vmatprep.mubr.bf16.mxu0 0
      %616 = vmatmul.mubr.bf16.gmra.mrb[0].mxu0 %v437
      %v617 = vpop.f32.mrb[0].mxu0
      %v618 = vadd.f32 %v238, %v617
      %v619 = vpop.f32.mrb[0].mxu0
      %v620 = vpop.f32.mrb[0].mxu0
      %v621 = vadd.f32 %v238, %v620
      %v622 = vpop.f32.mrb[0].mxu0
      %623 = vmatprep.mubr.bf16.mxu0 0
      %624 = vmatmul.mubr.bf16.gmra.mrb[0].mxu0 %v440
      %v625 = vpop.f32.mrb[0].mxu0
      %v626 = vadd.f32 %v238, %v625
      %v627 = vpop.f32.mrb[0].mxu0
      %v628 = vpop.f32.mrb[0].mxu0
      %v629 = vadd.f32 %v238, %v628
      %v630 = vpop.f32.mrb[0].mxu0
      %631 = vmatprep.mubr.bf16.mxu0 0
      %632 = vmatmul.mubr.bf16.gmra.mrb[0].mxu0 %v443
      %v633 = vpop.f32.mrb[0].mxu0
      %v634 = vadd.f32 %v238, %v633
      %v635 = vpop.f32.mrb[0].mxu0
      %v636 = vpop.f32.mrb[0].mxu0
      %v637 = vadd.f32 %v238, %v636
      %v638 = vpop.f32.mrb[0].mxu0
      %639 = vmatprep.mubr.bf16.mxu0 0
      %640 = vmatmul.mubr.bf16.gmra.mrb[0].mxu0 %v446
      %v641 = vpop.f32.mrb[0].mxu0
      %v642 = vadd.f32 %v238, %v641
      %v643 = vpop.f32.mrb[0].mxu0
      %v644 = vpop.f32.mrb[0].mxu0
      %v645 = vadd.f32 %v238, %v644
      %v646 = vpop.f32.mrb[0].mxu0
      %647 = vmatprep.mubr.bf16.mxu0 0
      %648 = vmatmul.mubr.bf16.gmra.mrb[0].mxu0 %v449
      %v649 = vpop.f32.mrb[0].mxu0
      %v650 = vadd.f32 %v238, %v649
      %v651 = vpop.f32.mrb[0].mxu0
      %v652 = vpop.f32.mrb[0].mxu0
      %v653 = vadd.f32 %v238, %v652
      %v654 = vpop.f32.mrb[0].mxu0
      %655 = vmatprep.mubr.bf16.mxu0 0
      %656 = vmatmul.mubr.bf16.gmra.mrb[0].mxu0 %v452
      %v657 = vpop.f32.mrb[0].mxu0
      %v658 = vadd.f32 %v238, %v657
      %v659 = vpop.f32.mrb[0].mxu0
      %v660 = vpop.f32.mrb[0].mxu0
      %v661 = vadd.f32 %v238, %v660
      %v662 = vpop.f32.mrb[0].mxu0
      %663 = vmatprep.mubr.bf16.mxu0 0
      %664 = vmatmul.mubr.bf16.gmra.mrb[0].mxu0 %v455
      %v665 = vpop.f32.mrb[0].mxu0
      %v666 = vadd.f32 %v238, %v665
      %v667 = vpop.f32.mrb[0].mxu0
      %v668 = vpop.f32.mrb[0].mxu0
      %v669 = vadd.f32 %v238, %v668
      %v670 = vpop.f32.mrb[0].mxu0
      %671 = vmatprep.mubr.bf16.mxu0 0
      %672 = vmatmul.mubr.bf16.gmra.mrb[0].mxu0 %v458
      %v673 = vpop.f32.mrb[0].mxu0
      %v674 = vadd.f32 %v238, %v673
      %v675 = vpop.f32.mrb[0].mxu0
      %v676 = vpop.f32.mrb[0].mxu0
      %v677 = vadd.f32 %v238, %v676
      %v678 = vpop.f32.mrb[0].mxu0
      %679 = vmatprep.mubr.bf16.mxu0 0
      %680 = vmatmul.mubr.bf16.gmra.mrb[0].mxu0 %v461
      %v681 = vpop.f32.mrb[0].mxu0
      %v682 = vadd.f32 %v238, %v681
      %v683 = vpop.f32.mrb[0].mxu0
      %v684 = vpop.f32.mrb[0].mxu0
      %v685 = vadd.f32 %v238, %v684
      %v686 = vpop.f32.mrb[0].mxu0
      %687 = vdwg.mxu0
      %v688 = vmax.f32 %v498, 0.0
      %v689 = vmax.f32 %v501, 0.0
      %v690 = vmax.f32 %v506, 0.0
      %v691 = vmax.f32 %v509, 0.0
      %v692 = vmax.f32 %v514, 0.0
      %v693 = vmax.f32 %v517, 0.0
      %v694 = vmax.f32 %v522, 0.0
      %v695 = vmax.f32 %v525, 0.0
      %v696 = vmax.f32 %v530, 0.0
      %v697 = vmax.f32 %v533, 0.0
      %v698 = vmax.f32 %v538, 0.0
      %v699 = vmax.f32 %v541, 0.0
      %v700 = vmax.f32 %v546, 0.0
      %v701 = vmax.f32 %v549, 0.0
      %v702 = vmax.f32 %v554, 0.0
      %v703 = vmax.f32 %v557, 0.0
      %v704 = vmax.f32 %v562, 0.0
      %v705 = vmax.f32 %v565, 0.0
      %v706 = vmax.f32 %v570, 0.0
      %v707 = vmax.f32 %v573, 0.0
      %v708 = vmax.f32 %v578, 0.0
      %v709 = vmax.f32 %v581, 0.0
      %v710 = vmax.f32 %v586, 0.0
      %v711 = vmax.f32 %v589, 0.0
      %v712 = vmax.f32 %v594, 0.0
      %v713 = vmax.f32 %v597, 0.0
      %v714 = vmax.f32 %v602, 0.0
      %v715 = vmax.f32 %v605, 0.0
      %v716 = vmax.f32 %v610, 0.0
      %v717 = vmax.f32 %v613, 0.0
      %v718 = vmax.f32 %v618, 0.0
      %v719 = vmax.f32 %v621, 0.0
      %v720 = vmax.f32 %v626, 0.0
      %v721 = vmax.f32 %v629, 0.0
      %v722 = vmax.f32 %v634, 0.0
      %v723 = vmax.f32 %v637, 0.0
      %v724 = vmax.f32 %v642, 0.0
      %v725 = vmax.f32 %v645, 0.0
      %v726 = vmax.f32 %v650, 0.0
      %v727 = vmax.f32 %v653, 0.0
      %v728 = vmax.f32 %v658, 0.0
      %v729 = vmax.f32 %v661, 0.0
      %v730 = vmax.f32 %v666, 0.0
      %v731 = vmax.f32 %v669, 0.0
      %v732 = vmax.f32 %v674, 0.0
      %v733 = vmax.f32 %v677, 0.0
      %v734 = vmax.f32 %v682, 0.0
      %v735 = vmax.f32 %v685, 0.0
      %736 = vst [vmem:[%s172] sm:$0xff] %v688
      %737 = vst [vmem:[%s172 + $0x8] sm:$0xff] %v689
      %738 = vst [vmem:[%s172 + $0x10] sm:$0xff] %v690
      %739 = vst [vmem:[%s172 + $0x18] sm:$0xff] %v691
      %740 = vst [vmem:[%s172 + $0x20] sm:$0xff] %v692
      %741 = vst [vmem:[%s172 + $0x28] sm:$0xff] %v693
      %742 = vst [vmem:[%s172 + $0x30] sm:$0xff] %v694
      %743 = vst [vmem:[%s172 + $0x38] sm:$0xff] %v695
      %744 = vst [vmem:[%s172 + $0x40] sm:$0xff] %v696
      %745 = vst [vmem:[%s172 + $0x48] sm:$0xff] %v697
      %746 = vst [vmem:[%s172 + $0x50] sm:$0xff] %v698
      %747 = vst [vmem:[%s172 + $0x58] sm:$0xff] %v699
      %748 = vst [vmem:[%s172 + $0x60] sm:$0xff] %v700
      %749 = vst [vmem:[%s172 + $0x68] sm:$0xff] %v701
      %750 = vst [vmem:[%s172 + $0x70] sm:$0xff] %v702
      %751 = vst [vmem:[%s172 + $0x78] sm:$0xff] %v703
      %752 = vst [vmem:[%s172 + $0x80] sm:$0xff] %v704
      %753 = vst [vmem:[%s172 + $0x88] sm:$0xff] %v705
      %754 = vst [vmem:[%s172 + $0x90] sm:$0xff] %v706
      %755 = vst [vmem:[%s172 + $0x98] sm:$0xff] %v707
      %756 = vst [vmem:[%s172 + $0xa0] sm:$0xff] %v708
      %757 = vst [vmem:[%s172 + $0xa8] sm:$0xff] %v709
      %758 = vst [vmem:[%s172 + $0xb0] sm:$0xff] %v710
      %759 = vst [vmem:[%s172 + $0xb8] sm:$0xff] %v711
      %760 = vst [vmem:[%s172 + $0xc0] sm:$0xff] %v712
      %761 = vst [vmem:[%s172 + $0xc8] sm:$0xff] %v713
      %762 = vst [vmem:[%s172 + $0xd0] sm:$0xff] %v714
      %763 = vst [vmem:[%s172 + $0xd8] sm:$0xff] %v715
      %764 = vst [vmem:[%s172 + $0xe0] sm:$0xff] %v716
      %765 = vst [vmem:[%s172 + $0xe8] sm:$0xff] %v717
      %766 = vst [vmem:[%s172 + $0xf0] sm:$0xff] %v718
      %767 = vst [vmem:[%s172 + $0xf8] sm:$0xff] %v719
      %768 = vst [vmem:[%s172 + $0x100] sm:$0xff] %v720
      %769 = vst [vmem:[%s172 + $0x108] sm:$0xff] %v721
      %770 = vst [vmem:[%s172 + $0x110] sm:$0xff] %v722
      %771 = vst [vmem:[%s172 + $0x118] sm:$0xff] %v723
      %772 = vst [vmem:[%s172 + $0x120] sm:$0xff] %v724
      %773 = vst [vmem:[%s172 + $0x128] sm:$0xff] %v725
      %774 = vst [vmem:[%s172 + $0x130] sm:$0xff] %v726
      %775 = vst [vmem:[%s172 + $0x138] sm:$0xff] %v727
      %776 = vst [vmem:[%s172 + $0x140] sm:$0xff] %v728
      %777 = vst [vmem:[%s172 + $0x148] sm:$0xff] %v729
      %778 = vst [vmem:[%s172 + $0x150] sm:$0xff] %v730
      %779 = vst [vmem:[%s172 + $0x158] sm:$0xff] %v731
      %780 = vst [vmem:[%s172 + $0x160] sm:$0xff] %v732
      %781 = vst [vmem:[%s172 + $0x168] sm:$0xff] %v733
      %782 = vst [vmem:[%s172 + $0x170] sm:$0xff] %v734
      %783 = vst [vmem:[%s172 + $0x178] sm:$0xff] %v735
      %s784 = smul.u32 48, %s14
      %p785 = scmp.lt.s32.totalorder %s784, 143
      %s786 = scalar_select %p785, %s784, 143
      %s787 = smul.addr %s786, 8
      %s788 = scalar_lea.vmem %s3, %s787
      // Predicated region
      $region33: #{net_forward_pallas.3} parent=31 // pred_check
        %p789 = pneg %p100
      $region34: #{net_forward_pallas.3} parent=31 // pred_check_branch
        %791 = sbr.rel (%p789) target = $region36
      $region35: #{net_forward_pallas.3} parent=31 // pred_region
        %s792 = smul.u32 48, %s14
      $region36: #{net_forward_pallas.3} parent=31 // pred_fallthru
        _
    $region32: #{net_forward_pallas.3} parent=5 // pred_fallthru
      _
    %p793 = scmp.le.s32.totalorder 2, %s9
    // Predicated region
    $region37: #{net_forward_pallas.3} parent=5 // pred_check
      %p794 = pneg %p793
    $region38: #{net_forward_pallas.3} parent=5 // pred_check_branch
      %796 = sbr.rel (%p794) target = $region40
    $region39: #{net_forward_pallas.3} parent=5 // pred_region
      %s797 = ssub.s32 %s9, 2
      // Predicated region
      $region41: #{net_forward_pallas.3} parent=39 // pred_check
        %p798 = pneg %p106
      $region42: #{net_forward_pallas.3} parent=39 // pred_check_branch
        %800 = sbr.rel (%p798) target = $region44
      $region43: #{net_forward_pallas.3} parent=39 // pred_region
        %s801 = smul.u32 48, %s15
        %p802 = scmp.lt.s32.totalorder %s801, 143
        %s803 = scalar_select %p802, %s801, 143
        %s804 = smul.addr %s803, 8
        %s805 = scalar_lea.vmem %s3, %s804
      $region44: #{net_forward_pallas.3} parent=39 // pred_fallthru
        _
    $region40: #{net_forward_pallas.3} parent=5 // pred_fallthru
      _
  $region6: #{net_forward_pallas.3} parent=0 // loop_footer
    %s13 = sadd.s32 1, %s9
  $region7: #{net_forward_pallas.3} parent=0 // loop_footer_branch
    %8 = sbr.rel target = $region3
  $region8: #{net_forward_pallas.3} parent=0 // loop_exit
    _

// kernel: net_forward_pallas.4
$region0: #{net_forward_pallas.4}
  #allocation0 [shape = 'u32[]', space=smem, size = 0x4, offset = 0x4, fixed_abs, tag = 'smem constant byte address 0x4 - core index']
  #allocation1 [shape = 'u32[144,128]{1,0:T(1,128)}', space=vmem, size = 0x12000, scoped, tag = 'internal scratch']
  %s0 = inlined_call_operand.vmem [shape: bf16[128,512], index: 0, kind: input, shape index: {}]
  %s1 = inlined_call_operand.vmem [shape: bf16[512,128], index: 1, kind: input, shape index: {}]
  %s2 = inlined_call_operand.vmem [shape: f32[1,128], index: 2, kind: input, shape index: {}]
  %s3 = inlined_call_operand.vmem [shape: f32[128,128], index: 3, kind: output, shape index: {}]
  %s4 = sld [smem:[#allocation0]]
  $region22: #{net_forward_pallas.4} parent=0
    _
  %s6 = ssub.s32 1, %s4
  %s7 = scalar_select 0, %s6, %s4
  // Predicated region
  $region2: #{net_forward_pallas.4} parent=0 // pred_check
    _
  $region3: #{net_forward_pallas.4} parent=0 // pred_check_branch
    %9 = sbr.rel (0) target = $region5
  $region4: #{net_forward_pallas.4} parent=0 // pred_region
    _
  $region5: #{net_forward_pallas.4} parent=0 // pred_fallthru
    _
  // Predicated region
  $region6: #{net_forward_pallas.4} parent=0 // pred_check
    _
  $region7: #{net_forward_pallas.4} parent=0 // pred_check_branch
    %11 = sbr.rel (0) target = $region9
  $region8: #{net_forward_pallas.4} parent=0 // pred_region
    _
  $region9: #{net_forward_pallas.4} parent=0 // pred_fallthru
    _
  // Predicated region
  $region10: #{net_forward_pallas.4} parent=0 // pred_check
    _
  $region11: #{net_forward_pallas.4} parent=0 // pred_check_branch
    %13 = sbr.rel (0) target = $region13
  $region12: #{net_forward_pallas.4} parent=0 // pred_region
    _
  $region13: #{net_forward_pallas.4} parent=0 // pred_fallthru
    _
  %v15 = vld [vmem:[%s0] sm:$0xff]
  %v16 = vld [vmem:[%s0 + $0x8] sm:$0xff]
  %v17 = vld [vmem:[%s0 + $0x10] sm:$0xff]
  %v18 = vld [vmem:[%s0 + $0x18] sm:$0xff]
  %v19 = vld [vmem:[%s0 + $0x20] sm:$0xff]
  %v20 = vld [vmem:[%s0 + $0x28] sm:$0xff]
  %v21 = vld [vmem:[%s0 + $0x30] sm:$0xff]
  %v22 = vld [vmem:[%s0 + $0x38] sm:$0xff]
  %v23 = vld [vmem:[%s0 + $0x40] sm:$0xff]
  %v24 = vld [vmem:[%s0 + $0x48] sm:$0xff]
  %v25 = vld [vmem:[%s0 + $0x50] sm:$0xff]
  %v26 = vld [vmem:[%s0 + $0x58] sm:$0xff]
  %v27 = vld [vmem:[%s0 + $0x60] sm:$0xff]
  %v28 = vld [vmem:[%s0 + $0x68] sm:$0xff]
  %v29 = vld [vmem:[%s0 + $0x70] sm:$0xff]
  %v30 = vld [vmem:[%s0 + $0x78] sm:$0xff]
  %v31 = vld [vmem:[%s0 + $0x80] sm:$0xff]
  %v32 = vld [vmem:[%s0 + $0x88] sm:$0xff]
  %v33 = vld [vmem:[%s0 + $0x90] sm:$0xff]
  %v34 = vld [vmem:[%s0 + $0x98] sm:$0xff]
  %v35 = vld [vmem:[%s0 + $0xa0] sm:$0xff]
  %v36 = vld [vmem:[%s0 + $0xa8] sm:$0xff]
  %v37 = vld [vmem:[%s0 + $0xb0] sm:$0xff]
  %v38 = vld [vmem:[%s0 + $0xb8] sm:$0xff]
  %v39 = vld [vmem:[%s0 + $0xc0] sm:$0xff]
  %v40 = vld [vmem:[%s0 + $0xc8] sm:$0xff]
  %v41 = vld [vmem:[%s0 + $0xd0] sm:$0xff]
  %v42 = vld [vmem:[%s0 + $0xd8] sm:$0xff]
  %v43 = vld [vmem:[%s0 + $0xe0] sm:$0xff]
  %v44 = vld [vmem:[%s0 + $0xe8] sm:$0xff]
  %v45 = vld [vmem:[%s0 + $0xf0] sm:$0xff]
  %v46 = vld [vmem:[%s0 + $0xf8] sm:$0xff]
  %v47 = vld [vmem:[%s1] sm:$0xf]
  %v48 = vld [vmem:[%s1 + $0x4] sm:$0xf]
  %v49 = vld [vmem:[%s1 + $0x8] sm:$0xf]
  %v50 = vld [vmem:[%s1 + $0xc] sm:$0xf]
  %v51 = vld [vmem:[%s1 + $0x10] sm:$0xf]
  %v52 = vld [vmem:[%s1 + $0x14] sm:$0xf]
  %v53 = vld [vmem:[%s1 + $0x18] sm:$0xf]
  %v54 = vld [vmem:[%s1 + $0x1c] sm:$0xf]
  %v55 = vld [vmem:[%s1 + $0x20] sm:$0xf]
  %v56 = vld [vmem:[%s1 + $0x24] sm:$0xf]
  %v57 = vld [vmem:[%s1 + $0x28] sm:$0xf]
  %v58 = vld [vmem:[%s1 + $0x2c] sm:$0xf]
  %v59 = vld [vmem:[%s1 + $0x30] sm:$0xf]
  %v60 = vld [vmem:[%s1 + $0x34] sm:$0xf]
  %v61 = vld [vmem:[%s1 + $0x38] sm:$0xf]
  %v62 = vld [vmem:[%s1 + $0x3c] sm:$0xf]
  %v63 = vld [vmem:[%s1 + $0x40] sm:$0xf]
  %v64 = vld [vmem:[%s1 + $0x44] sm:$0xf]
  %v65 = vld [vmem:[%s1 + $0x48] sm:$0xf]
  %v66 = vld [vmem:[%s1 + $0x4c] sm:$0xf]
  %v67 = vld [vmem:[%s1 + $0x50] sm:$0xf]
  %v68 = vld [vmem:[%s1 + $0x54] sm:$0xf]
  %v69 = vld [vmem:[%s1 + $0x58] sm:$0xf]
  %v70 = vld [vmem:[%s1 + $0x5c] sm:$0xf]
  %v71 = vld [vmem:[%s1 + $0x60] sm:$0xf]
  %v72 = vld [vmem:[%s1 + $0x64] sm:$0xf]
  %v73 = vld [vmem:[%s1 + $0x68] sm:$0xf]
  %v74 = vld [vmem:[%s1 + $0x6c] sm:$0xf]
  %v75 = vld [vmem:[%s1 + $0x70] sm:$0xf]
  %v76 = vld [vmem:[%s1 + $0x74] sm:$0xf]
  %v77 = vld [vmem:[%s1 + $0x78] sm:$0xf]
  %v78 = vld [vmem:[%s1 + $0x7c] sm:$0xf]
  %v79 = vld [vmem:[%s1 + $0x80] sm:$0xf]
  %v80 = vld [vmem:[%s1 + $0x84] sm:$0xf]
  %v81 = vld [vmem:[%s1 + $0x88] sm:$0xf]
  %v82 = vld [vmem:[%s1 + $0x8c] sm:$0xf]
  %v83 = vld [vmem:[%s1 + $0x90] sm:$0xf]
  %v84 = vld [vmem:[%s1 + $0x94] sm:$0xf]
  %v85 = vld [vmem:[%s1 + $0x98] sm:$0xf]
  %v86 = vld [vmem:[%s1 + $0x9c] sm:$0xf]
  %v87 = vld [vmem:[%s1 + $0xa0] sm:$0xf]
  %v88 = vld [vmem:[%s1 + $0xa4] sm:$0xf]
  %v89 = vld [vmem:[%s1 + $0xa8] sm:$0xf]
  %v90 = vld [vmem:[%s1 + $0xac] sm:$0xf]
  %v91 = vld [vmem:[%s1 + $0xb0] sm:$0xf]
  %v92 = vld [vmem:[%s1 + $0xb4] sm:$0xf]
  %v93 = vld [vmem:[%s1 + $0xb8] sm:$0xf]
  %v94 = vld [vmem:[%s1 + $0xbc] sm:$0xf]
  %v95 = vld [vmem:[%s1 + $0xc0] sm:$0xf]
  %v96 = vld [vmem:[%s1 + $0xc4] sm:$0xf]
  %v97 = vld [vmem:[%s1 + $0xc8] sm:$0xf]
  %v98 = vld [vmem:[%s1 + $0xcc] sm:$0xf]
  %v99 = vld [vmem:[%s1 + $0xd0] sm:$0xf]
  %v100 = vld [vmem:[%s1 + $0xd4] sm:$0xf]
  %v101 = vld [vmem:[%s1 + $0xd8] sm:$0xf]
  %v102 = vld [vmem:[%s1 + $0xdc] sm:$0xf]
  %v103 = vld [vmem:[%s1 + $0xe0] sm:$0xf]
  %v104 = vld [vmem:[%s1 + $0xe4] sm:$0xf]
  %v105 = vld [vmem:[%s1 + $0xe8] sm:$0xf]
  %v106 = vld [vmem:[%s1 + $0xec] sm:$0xf]
  %v107 = vld [vmem:[%s1 + $0xf0] sm:$0xf]
  %v108 = vld [vmem:[%s1 + $0xf4] sm:$0xf]
  %v109 = vld [vmem:[%s1 + $0xf8] sm:$0xf]
  %v110 = vld [vmem:[%s1 + $0xfc] sm:$0xf]
  %v111 = vld [vmem:[%s2] sm:$0x1]
  %v113 = vlaneseq
  %v114 = vshrl.u32 %v113, 7
  %v115 = vsub.s32 0, %v114
  %v116 = vrot.slane %v111, %v115
  %v150 = vunpack.c.l.b16 %v15
  %v151 = vunpack.c.h.b16 %v15
  %v152 = vunpack.c.l.b16 %v16
  %v153 = vunpack.c.h.b16 %v16
  %v154 = vunpack.c.l.b16 %v17
  %v155 = vunpack.c.h.b16 %v17
  %v156 = vunpack.c.l.b16 %v18
  %v157 = vunpack.c.h.b16 %v18
  %v158 = vunpack.c.l.b16 %v19
  %v159 = vunpack.c.h.b16 %v19
  %v160 = vunpack.c.l.b16 %v20
  %v161 = vunpack.c.h.b16 %v20
  %v162 = vunpack.c.l.b16 %v21
  %v163 = vunpack.c.h.b16 %v21
  %v164 = vunpack.c.l.b16 %v22
  %v165 = vunpack.c.h.b16 %v22
  %v166 = vunpack.c.l.b16 %v23
  %v167 = vunpack.c.h.b16 %v23
  %v168 = vunpack.c.l.b16 %v24
  %v169 = vunpack.c.h.b16 %v24
  %v170 = vunpack.c.l.b16 %v25
  %v171 = vunpack.c.h.b16 %v25
  %v172 = vunpack.c.l.b16 %v26
  %v173 = vunpack.c.h.b16 %v26
  %v174 = vunpack.c.l.b16 %v27
  %v175 = vunpack.c.h.b16 %v27
  %v176 = vunpack.c.l.b16 %v28
  %v177 = vunpack.c.h.b16 %v28
  %v178 = vunpack.c.l.b16 %v29
  %v179 = vunpack.c.h.b16 %v29
  %v180 = vunpack.c.l.b16 %v30
  %v181 = vunpack.c.h.b16 %v30
  %v182 = vunpack.c.l.b16 %v31
  %v183 = vunpack.c.h.b16 %v31
  %v184 = vunpack.c.l.b16 %v32
  %v185 = vunpack.c.h.b16 %v32
  %v186 = vunpack.c.l.b16 %v33
  %v187 = vunpack.c.h.b16 %v33
  %v188 = vunpack.c.l.b16 %v34
  %v189 = vunpack.c.h.b16 %v34
  %v190 = vunpack.c.l.b16 %v35
  %v191 = vunpack.c.h.b16 %v35
  %v192 = vunpack.c.l.b16 %v36
  %v193 = vunpack.c.h.b16 %v36
  %v194 = vunpack.c.l.b16 %v37
  %v195 = vunpack.c.h.b16 %v37
  %v196 = vunpack.c.l.b16 %v38
  %v197 = vunpack.c.h.b16 %v38
  %v198 = vunpack.c.l.b16 %v39
  %v199 = vunpack.c.h.b16 %v39
  %v200 = vunpack.c.l.b16 %v40
  %v201 = vunpack.c.h.b16 %v40
  %v202 = vunpack.c.l.b16 %v41
  %v203 = vunpack.c.h.b16 %v41
  %v204 = vunpack.c.l.b16 %v42
  %v205 = vunpack.c.h.b16 %v42
  %v206 = vunpack.c.l.b16 %v43
  %v207 = vunpack.c.h.b16 %v43
  %v208 = vunpack.c.l.b16 %v44
  %v209 = vunpack.c.h.b16 %v44
  %v210 = vunpack.c.l.b16 %v45
  %v211 = vunpack.c.h.b16 %v45
  %v212 = vunpack.c.l.b16 %v46
  %v213 = vunpack.c.h.b16 %v46
  %v214 = vpack.c.b16 %v154, %v150
  %v215 = vpack.c.b16 %v155, %v151
  %v216 = vpack.c.b16 %v156, %v152
  %v217 = vpack.c.b16 %v157, %v153
  %v218 = vpack.c.b16 %v162, %v158
  %v219 = vpack.c.b16 %v163, %v159
  %v220 = vpack.c.b16 %v164, %v160
  %v221 = vpack.c.b16 %v165, %v161
  %v222 = vpack.c.b16 %v170, %v166
  %v223 = vpack.c.b16 %v171, %v167
  %v224 = vpack.c.b16 %v172, %v168
  %v225 = vpack.c.b16 %v173, %v169
  %v226 = vpack.c.b16 %v178, %v174
  %v227 = vpack.c.b16 %v179, %v175
  %v228 = vpack.c.b16 %v180, %v176
  %v229 = vpack.c.b16 %v181, %v177
  %v230 = vpack.c.b16 %v186, %v182
  %v231 = vpack.c.b16 %v187, %v183
  %v232 = vpack.c.b16 %v188, %v184
  %v233 = vpack.c.b16 %v189, %v185
  %v234 = vpack.c.b16 %v194, %v190
  %v235 = vpack.c.b16 %v195, %v191
  %v236 = vpack.c.b16 %v196, %v192
  %v237 = vpack.c.b16 %v197, %v193
  %v238 = vpack.c.b16 %v202, %v198
  %v239 = vpack.c.b16 %v203, %v199
  %v240 = vpack.c.b16 %v204, %v200
  %v241 = vpack.c.b16 %v205, %v201
  %v242 = vpack.c.b16 %v210, %v206
  %v243 = vpack.c.b16 %v211, %v207
  %v244 = vpack.c.b16 %v212, %v208
  %v245 = vpack.c.b16 %v213, %v209
  %v342 = vunpack.c.l.b16 %v47
  %v343 = vunpack.c.l.b16 %v48
  %v344 = vunpack.c.l.b16 %v49
  %v345 = vunpack.c.l.b16 %v50
  %v346 = vunpack.c.l.b16 %v51
  %v347 = vunpack.c.l.b16 %v52
  %v348 = vunpack.c.l.b16 %v53
  %v349 = vunpack.c.l.b16 %v54
  %v350 = vunpack.c.l.b16 %v55
  %v351 = vunpack.c.l.b16 %v56
  %v352 = vunpack.c.l.b16 %v57
  %v353 = vunpack.c.l.b16 %v58
  %v354 = vunpack.c.l.b16 %v59
  %v355 = vunpack.c.l.b16 %v60
  %v356 = vunpack.c.l.b16 %v61
  %v357 = vunpack.c.l.b16 %v62
  %v358 = vunpack.c.l.b16 %v63
  %v359 = vunpack.c.l.b16 %v64
  %v360 = vunpack.c.l.b16 %v65
  %v361 = vunpack.c.l.b16 %v66
  %v362 = vunpack.c.l.b16 %v67
  %v363 = vunpack.c.l.b16 %v68
  %v364 = vunpack.c.l.b16 %v69
  %v365 = vunpack.c.l.b16 %v70
  %v366 = vunpack.c.l.b16 %v71
  %v367 = vunpack.c.l.b16 %v72
  %v368 = vunpack.c.l.b16 %v73
  %v369 = vunpack.c.l.b16 %v74
  %v370 = vunpack.c.l.b16 %v75
  %v371 = vunpack.c.l.b16 %v76
  %v372 = vunpack.c.l.b16 %v77
  %v373 = vunpack.c.l.b16 %v78
  %v374 = vunpack.c.l.b16 %v79
  %v375 = vunpack.c.l.b16 %v80
  %v376 = vunpack.c.l.b16 %v81
  %v377 = vunpack.c.l.b16 %v82
  %v378 = vunpack.c.l.b16 %v83
  %v379 = vunpack.c.l.b16 %v84
  %v380 = vunpack.c.l.b16 %v85
  %v381 = vunpack.c.l.b16 %v86
  %v382 = vunpack.c.l.b16 %v87
  %v383 = vunpack.c.l.b16 %v88
  %v384 = vunpack.c.l.b16 %v89
  %v385 = vunpack.c.l.b16 %v90
  %v386 = vunpack.c.l.b16 %v91
  %v387 = vunpack.c.l.b16 %v92
  %v388 = vunpack.c.l.b16 %v93
  %v389 = vunpack.c.l.b16 %v94
  %v390 = vunpack.c.l.b16 %v95
  %v391 = vunpack.c.l.b16 %v96
  %v392 = vunpack.c.l.b16 %v97
  %v393 = vunpack.c.l.b16 %v98
  %v394 = vunpack.c.l.b16 %v99
  %v395 = vunpack.c.l.b16 %v100
  %v396 = vunpack.c.l.b16 %v101
  %v397 = vunpack.c.l.b16 %v102
  %v398 = vunpack.c.l.b16 %v103
  %v399 = vunpack.c.l.b16 %v104
  %v400 = vunpack.c.l.b16 %v105
  %v401 = vunpack.c.l.b16 %v106
  %v402 = vunpack.c.l.b16 %v107
  %v403 = vunpack.c.l.b16 %v108
  %v404 = vunpack.c.l.b16 %v109
  %v405 = vunpack.c.l.b16 %v110
  %v406 = vpack.c.b16 %v343, %v342
  %v407 = vpack.c.b16 %v345, %v344
  %v408 = vpack.c.b16 %v347, %v346
  %v409 = vpack.c.b16 %v349, %v348
  %v410 = vpack.c.b16 %v351, %v350
  %v411 = vpack.c.b16 %v353, %v352
  %v412 = vpack.c.b16 %v355, %v354
  %v413 = vpack.c.b16 %v357, %v356
  %v414 = vpack.c.b16 %v359, %v358
  %v415 = vpack.c.b16 %v361, %v360
  %v416 = vpack.c.b16 %v363, %v362
  %v417 = vpack.c.b16 %v365, %v364
  %v418 = vpack.c.b16 %v367, %v366
  %v419 = vpack.c.b16 %v369, %v368
  %v420 = vpack.c.b16 %v371, %v370
  %v421 = vpack.c.b16 %v373, %v372
  %v422 = vpack.c.b16 %v375, %v374
  %v423 = vpack.c.b16 %v377, %v376
  %v424 = vpack.c.b16 %v379, %v378
  %v425 = vpack.c.b16 %v381, %v380
  %v426 = vpack.c.b16 %v383, %v382
  %v427 = vpack.c.b16 %v385, %v384
  %v428 = vpack.c.b16 %v387, %v386
  %v429 = vpack.c.b16 %v389, %v388
  %v430 = vpack.c.b16 %v391, %v390
  %v431 = vpack.c.b16 %v393, %v392
  %v432 = vpack.c.b16 %v395, %v394
  %v433 = vpack.c.b16 %v397, %v396
  %v434 = vpack.c.b16 %v399, %v398
  %v435 = vpack.c.b16 %v401, %v400
  %v436 = vpack.c.b16 %v403, %v402
  %v437 = vpack.c.b16 %v405, %v404
  %470 = vmatprep.subr.bf16.mxu0 0
  %471 = vmatpush1.bf16.msra.mxu0 %v406
  %472 = vmatprep.subr.bf16.mxu0 0
  %473 = vmatpush1.bf16.msra.mxu0 %v407
  %474 = vmatprep.subr.bf16.mxu0 0
  %475 = vmatpush1.bf16.msra.mxu0 %v408
  %476 = vmatprep.subr.bf16.mxu0 0
  %477 = vmatpush1.bf16.msra.mxu0 %v409
  %478 = vmatprep.subr.bf16.mxu0 0
  %479 = vmatpush1.bf16.msra.mxu0 %v410
  %480 = vmatprep.subr.bf16.mxu0 0
  %481 = vmatpush1.bf16.msra.mxu0 %v411
  %482 = vmatprep.subr.bf16.mxu0 0
  %483 = vmatpush1.bf16.msra.mxu0 %v412
  %484 = vmatprep.subr.bf16.mxu0 0
  %485 = vmatpush1.bf16.msra.mxu0 %v413
  %486 = vmatprep.subr.bf16.mxu0 0
  %487 = vmatpush1.bf16.msra.mxu0 %v414
  %488 = vmatprep.subr.bf16.mxu0 0
  %489 = vmatpush1.bf16.msra.mxu0 %v415
  %490 = vmatprep.subr.bf16.mxu0 0
  %491 = vmatpush1.bf16.msra.mxu0 %v416
  %492 = vmatprep.subr.bf16.mxu0 0
  %493 = vmatpush1.bf16.msra.mxu0 %v417
  %494 = vmatprep.subr.bf16.mxu0 0
  %495 = vmatpush1.bf16.msra.mxu0 %v418
  %496 = vmatprep.subr.bf16.mxu0 0
  %497 = vmatpush1.bf16.msra.mxu0 %v419
  %498 = vmatprep.subr.bf16.mxu0 0
  %499 = vmatpush1.bf16.msra.mxu0 %v420
  %500 = vmatprep.subr.bf16.mxu0 0
  %501 = vmatpush1.bf16.msra.mxu0 %v421
  %502 = vmatprep.mubr.bf16.mxu0 %v215
  %503 = vmatmul.mubr.bf16.gmra.mrb[0].mxu0 %v214
  %v504 = vpop.f32.mrb[0].mxu0
  %v505 = vadd.f32 %v116, %v504
  %v506 = vpop.f32.mrb[0].mxu0
  %v507 = vpop.f32.mrb[0].mxu0
  %v508 = vadd.f32 %v116, %v507
  %v509 = vpop.f32.mrb[0].mxu0
  %510 = vmatprep.mubr.bf16.mxu0 %v219
  %511 = vmatmul.mubr.bf16.gmra.mrb[0].mxu0 %v218
  %v512 = vpop.f32.mrb[0].mxu0
  %v513 = vadd.f32 %v116, %v512
  %v514 = vpop.f32.mrb[0].mxu0
  %v515 = vpop.f32.mrb[0].mxu0
  %v516 = vadd.f32 %v116, %v515
  %v517 = vpop.f32.mrb[0].mxu0
  %518 = vmatprep.mubr.bf16.mxu0 %v223
  %519 = vmatmul.mubr.bf16.gmra.mrb[0].mxu0 %v222
  %v520 = vpop.f32.mrb[0].mxu0
  %v521 = vadd.f32 %v116, %v520
  %v522 = vpop.f32.mrb[0].mxu0
  %v523 = vpop.f32.mrb[0].mxu0
  %v524 = vadd.f32 %v116, %v523
  %v525 = vpop.f32.mrb[0].mxu0
  %526 = vmatprep.mubr.bf16.mxu0 %v227
  %527 = vmatmul.mubr.bf16.gmra.mrb[0].mxu0 %v226
  %v528 = vpop.f32.mrb[0].mxu0
  %v529 = vadd.f32 %v116, %v528
  %v530 = vpop.f32.mrb[0].mxu0
  %v531 = vpop.f32.mrb[0].mxu0
  %v532 = vadd.f32 %v116, %v531
  %v533 = vpop.f32.mrb[0].mxu0
  %534 = vmatprep.mubr.bf16.mxu0 %v231
  %535 = vmatmul.mubr.bf16.gmra.mrb[0].mxu0 %v230
  %v536 = vpop.f32.mrb[0].mxu0
  %v537 = vadd.f32 %v116, %v536
  %v538 = vpop.f32.mrb[0].mxu0
  %v539 = vpop.f32.mrb[0].mxu0
  %v540 = vadd.f32 %v116, %v539
  %v541 = vpop.f32.mrb[0].mxu0
  %542 = vmatprep.mubr.bf16.mxu0 %v235
  %543 = vmatmul.mubr.bf16.gmra.mrb[0].mxu0 %v234
  %v544 = vpop.f32.mrb[0].mxu0
  %v545 = vadd.f32 %v116, %v544
  %v546 = vpop.f32.mrb[0].mxu0
  %v547 = vpop.f32.mrb[0].mxu0
  %v548 = vadd.f32 %v116, %v547
  %v549 = vpop.f32.mrb[0].mxu0
  %550 = vmatprep.mubr.bf16.mxu0 %v239
  %551 = vmatmul.mubr.bf16.gmra.mrb[0].mxu0 %v238
  %v552 = vpop.f32.mrb[0].mxu0
  %v553 = vadd.f32 %v116, %v552
  %v554 = vpop.f32.mrb[0].mxu0
  %v555 = vpop.f32.mrb[0].mxu0
  %v556 = vadd.f32 %v116, %v555
  %v557 = vpop.f32.mrb[0].mxu0
  %558 = vmatprep.mubr.bf16.mxu0 %v243
  %559 = vmatmul.mubr.bf16.gmra.mrb[0].mxu0 %v242
  %v560 = vpop.f32.mrb[0].mxu0
  %v561 = vadd.f32 %v116, %v560
  %v562 = vpop.f32.mrb[0].mxu0
  %v563 = vpop.f32.mrb[0].mxu0
  %v564 = vadd.f32 %v116, %v563
  %v565 = vpop.f32.mrb[0].mxu0
  %566 = vdwg.mxu0
  %567 = vmatprep.subr.bf16.mxu0 0
  %568 = vmatpush1.bf16.msra.mxu0 %v422
  %569 = vmatprep.subr.bf16.mxu0 0
  %570 = vmatpush1.bf16.msra.mxu0 %v423
  %571 = vmatprep.subr.bf16.mxu0 0
  %572 = vmatpush1.bf16.msra.mxu0 %v424
  %573 = vmatprep.subr.bf16.mxu0 0
  %574 = vmatpush1.bf16.msra.mxu0 %v425
  %575 = vmatprep.subr.bf16.mxu0 0
  %576 = vmatpush1.bf16.msra.mxu0 %v426
  %577 = vmatprep.subr.bf16.mxu0 0
  %578 = vmatpush1.bf16.msra.mxu0 %v427
  %579 = vmatprep.subr.bf16.mxu0 0
  %580 = vmatpush1.bf16.msra.mxu0 %v428
  %581 = vmatprep.subr.bf16.mxu0 0
  %582 = vmatpush1.bf16.msra.mxu0 %v429
  %583 = vmatprep.subr.bf16.mxu0 0
  %584 = vmatpush1.bf16.msra.mxu0 %v430
  %585 = vmatprep.subr.bf16.mxu0 0
  %586 = vmatpush1.bf16.msra.mxu0 %v431
  %587 = vmatprep.subr.bf16.mxu0 0
  %588 = vmatpush1.bf16.msra.mxu0 %v432
  %589 = vmatprep.subr.bf16.mxu0 0
  %590 = vmatpush1.bf16.msra.mxu0 %v433
  %591 = vmatprep.subr.bf16.mxu0 0
  %592 = vmatpush1.bf16.msra.mxu0 %v434
  %593 = vmatprep.subr.bf16.mxu0 0
  %594 = vmatpush1.bf16.msra.mxu0 %v435
  %595 = vmatprep.subr.bf16.mxu0 0
  %596 = vmatpush1.bf16.msra.mxu0 %v436
  %597 = vmatprep.subr.bf16.mxu0 0
  %598 = vmatpush1.bf16.msra.mxu0 %v437
  %599 = vmatprep.mubr.bf16.mxu0 %v217
  %600 = vmatmul.mubr.bf16.gmra.mrb[0].mxu0 %v216
  %v601 = vpop.f32.mrb[0].mxu0
  %v602 = vadd.f32 %v505, %v601
  %v603 = vpop.f32.mrb[0].mxu0
  %v604 = vpop.f32.mrb[0].mxu0
  %v605 = vadd.f32 %v508, %v604
  %v606 = vpop.f32.mrb[0].mxu0
  %607 = vmatprep.mubr.bf16.mxu0 %v221
  %608 = vmatmul.mubr.bf16.gmra.mrb[0].mxu0 %v220
  %v609 = vpop.f32.mrb[0].mxu0
  %v610 = vadd.f32 %v513, %v609
  %v611 = vpop.f32.mrb[0].mxu0
  %v612 = vpop.f32.mrb[0].mxu0
  %v613 = vadd.f32 %v516, %v612
  %v614 = vpop.f32.mrb[0].mxu0
  %615 = vmatprep.mubr.bf16.mxu0 %v225
  %616 = vmatmul.mubr.bf16.gmra.mrb[0].mxu0 %v224
  %v617 = vpop.f32.mrb[0].mxu0
  %v618 = vadd.f32 %v521, %v617
  %v619 = vpop.f32.mrb[0].mxu0
  %v620 = vpop.f32.mrb[0].mxu0
  %v621 = vadd.f32 %v524, %v620
  %v622 = vpop.f32.mrb[0].mxu0
  %623 = vmatprep.mubr.bf16.mxu0 %v229
  %624 = vmatmul.mubr.bf16.gmra.mrb[0].mxu0 %v228
  %v625 = vpop.f32.mrb[0].mxu0
  %v626 = vadd.f32 %v529, %v625
  %v627 = vpop.f32.mrb[0].mxu0
  %v628 = vpop.f32.mrb[0].mxu0
  %v629 = vadd.f32 %v532, %v628
  %v630 = vpop.f32.mrb[0].mxu0
  %631 = vmatprep.mubr.bf16.mxu0 %v233
  %632 = vmatmul.mubr.bf16.gmra.mrb[0].mxu0 %v232
  %v633 = vpop.f32.mrb[0].mxu0
  %v634 = vadd.f32 %v537, %v633
  %v635 = vpop.f32.mrb[0].mxu0
  %v636 = vpop.f32.mrb[0].mxu0
  %v637 = vadd.f32 %v540, %v636
  %v638 = vpop.f32.mrb[0].mxu0
  %639 = vmatprep.mubr.bf16.mxu0 %v237
  %640 = vmatmul.mubr.bf16.gmra.mrb[0].mxu0 %v236
  %v641 = vpop.f32.mrb[0].mxu0
  %v642 = vadd.f32 %v545, %v641
  %v643 = vpop.f32.mrb[0].mxu0
  %v644 = vpop.f32.mrb[0].mxu0
  %v645 = vadd.f32 %v548, %v644
  %v646 = vpop.f32.mrb[0].mxu0
  %647 = vmatprep.mubr.bf16.mxu0 %v241
  %648 = vmatmul.mubr.bf16.gmra.mrb[0].mxu0 %v240
  %v649 = vpop.f32.mrb[0].mxu0
  %v650 = vadd.f32 %v553, %v649
  %v651 = vpop.f32.mrb[0].mxu0
  %v652 = vpop.f32.mrb[0].mxu0
  %v653 = vadd.f32 %v556, %v652
  %v654 = vpop.f32.mrb[0].mxu0
  %655 = vmatprep.mubr.bf16.mxu0 %v245
  %656 = vmatmul.mubr.bf16.gmra.mrb[0].mxu0 %v244
  %v657 = vpop.f32.mrb[0].mxu0
  %v658 = vadd.f32 %v561, %v657
  %v659 = vpop.f32.mrb[0].mxu0
  %v660 = vpop.f32.mrb[0].mxu0
  %v661 = vadd.f32 %v564, %v660
  %v662 = vpop.f32.mrb[0].mxu0
  %663 = vdwg.mxu0
  %v664 = vmax.f32 %v602, 0.0
  %v665 = vmax.f32 %v605, 0.0
  %v666 = vmax.f32 %v610, 0.0
  %v667 = vmax.f32 %v613, 0.0
  %v668 = vmax.f32 %v618, 0.0
  %v669 = vmax.f32 %v621, 0.0
  %v670 = vmax.f32 %v626, 0.0
  %v671 = vmax.f32 %v629, 0.0
  %v672 = vmax.f32 %v634, 0.0
  %v673 = vmax.f32 %v637, 0.0
  %v674 = vmax.f32 %v642, 0.0
  %v675 = vmax.f32 %v645, 0.0
  %v676 = vmax.f32 %v650, 0.0
  %v677 = vmax.f32 %v653, 0.0
  %v678 = vmax.f32 %v658, 0.0
  %v679 = vmax.f32 %v661, 0.0
  %680 = vst [vmem:[%s3] sm:$0xff] %v664
  %681 = vst [vmem:[%s3 + $0x8] sm:$0xff] %v665
  %682 = vst [vmem:[%s3 + $0x10] sm:$0xff] %v666
  %683 = vst [vmem:[%s3 + $0x18] sm:$0xff] %v667
  %684 = vst [vmem:[%s3 + $0x20] sm:$0xff] %v668
  %685 = vst [vmem:[%s3 + $0x28] sm:$0xff] %v669
  %686 = vst [vmem:[%s3 + $0x30] sm:$0xff] %v670
  %687 = vst [vmem:[%s3 + $0x38] sm:$0xff] %v671
  %688 = vst [vmem:[%s3 + $0x40] sm:$0xff] %v672
  %689 = vst [vmem:[%s3 + $0x48] sm:$0xff] %v673
  %690 = vst [vmem:[%s3 + $0x50] sm:$0xff] %v674
  %691 = vst [vmem:[%s3 + $0x58] sm:$0xff] %v675
  %692 = vst [vmem:[%s3 + $0x60] sm:$0xff] %v676
  %693 = vst [vmem:[%s3 + $0x68] sm:$0xff] %v677
  %694 = vst [vmem:[%s3 + $0x70] sm:$0xff] %v678
  %695 = vst [vmem:[%s3 + $0x78] sm:$0xff] %v679
  // Predicated region
  $region14: #{net_forward_pallas.4} parent=0 // pred_check
    _
  $region15: #{net_forward_pallas.4} parent=0 // pred_check_branch
    %697 = sbr.rel (0) target = $region17
  $region16: #{net_forward_pallas.4} parent=0 // pred_region
    _
  $region17: #{net_forward_pallas.4} parent=0 // pred_fallthru
    _
  // Predicated region
  $region18: #{net_forward_pallas.4} parent=0 // pred_check
    _
  $region19: #{net_forward_pallas.4} parent=0 // pred_check_branch
    %699 = sbr.rel (0) target = $region21
  $region20: #{net_forward_pallas.4} parent=0 // pred_region
    _
  $region21: #{net_forward_pallas.4} parent=0 // pred_fallthru
    _

// kernel: net_forward_pallas.5
$region0: #{net_forward_pallas.5}
  #allocation0 [shape = 'u32[]', space=smem, size = 0x4, offset = 0x4, fixed_abs, tag = 'smem constant byte address 0x4 - core index']
  #allocation1 [shape = 'u32[144,128]{1,0:T(1,128)}', space=vmem, size = 0x12000, scoped, tag = 'internal scratch']
  %s0 = inlined_call_operand.vmem [shape: bf16[2,800], index: 0, kind: input, shape index: {}]
  %s1 = inlined_call_operand.vmem [shape: bf16[800,512], index: 1, kind: input, shape index: {}]
  %s2 = inlined_call_operand.vmem [shape: f32[1,512], index: 2, kind: input, shape index: {}]
  %s3 = inlined_call_operand.vmem [shape: bf16[512,128], index: 3, kind: input, shape index: {}]
  %s4 = inlined_call_operand.vmem [shape: f32[1,128], index: 4, kind: input, shape index: {}]
  %s5 = inlined_call_operand.vmem [shape: bf16[512,128], index: 5, kind: input, shape index: {}]
  %s6 = inlined_call_operand.vmem [shape: f32[1,128], index: 6, kind: input, shape index: {}]
  %s7 = inlined_call_operand.hbm [shape: f32[2,128], index: 7, kind: output, shape index: {0}]
  %s8 = inlined_call_operand.hbm [shape: f32[2,128], index: 8, kind: output, shape index: {1}]
  %9 = xla_tuple %s7, %s8
  %s10 = sld [smem:[#allocation0]]
  $region46: #{net_forward_pallas.5} parent=0
    _
  %s12 = ssub.s32 1, %s10
  %s13 = scalar_select 0, %s12, %s10
  $region1: #{net_forward_pallas.5} parent=0
    #allocation2 [shape = 'u8[1024]{0}', space=vmem, size = 0x400, scoped, tag = 'output window, operand 0, single buffered']
    #allocation3 [shape = 's32[1]{0}', space=sflag, size = 0x4, scoped, tag = 'scoped memory for net_forward_pallas.5']
    #allocation4 [shape = 'u8[1024]{0}', space=vmem, size = 0x400, scoped, tag = 'output window, operand 1, single buffered']
    #allocation5 [shape = 's32[1]{0}', space=sflag, size = 0x4, scoped, tag = 'scoped memory for net_forward_pallas.5']
    %14 = vsyncpa [#allocation3], 0
    %15 = vsyncpa [#allocation5], 0
    // Predicated region
    $region2: #{net_forward_pallas.5} parent=1 // pred_check
      _
    $region3: #{net_forward_pallas.5} parent=1 // pred_check_branch
      %17 = sbr.rel (0) target = $region5
    $region4: #{net_forward_pallas.5} parent=1 // pred_region
      _
    $region5: #{net_forward_pallas.5} parent=1 // pred_fallthru
      _
    // Predicated region
    $region6: #{net_forward_pallas.5} parent=1 // pred_check
      _
    $region7: #{net_forward_pallas.5} parent=1 // pred_check_branch
      %19 = sbr.rel (0) target = $region9
    $region8: #{net_forward_pallas.5} parent=1 // pred_region
      _
    $region9: #{net_forward_pallas.5} parent=1 // pred_fallthru
      _
    // Predicated region
    $region10: #{net_forward_pallas.5} parent=1 // pred_check
      _
    $region11: #{net_forward_pallas.5} parent=1 // pred_check_branch
      %21 = sbr.rel (0) target = $region13
    $region12: #{net_forward_pallas.5} parent=1 // pred_region
      _
    $region13: #{net_forward_pallas.5} parent=1 // pred_fallthru
      _
    // Predicated region
    $region14: #{net_forward_pallas.5} parent=1 // pred_check
      _
    $region15: #{net_forward_pallas.5} parent=1 // pred_check_branch
      %23 = sbr.rel (0) target = $region17
    $region16: #{net_forward_pallas.5} parent=1 // pred_region
      _
    $region17: #{net_forward_pallas.5} parent=1 // pred_fallthru
      _
    // Predicated region
    $region18: #{net_forward_pallas.5} parent=1 // pred_check
      _
    $region19: #{net_forward_pallas.5} parent=1 // pred_check_branch
      %25 = sbr.rel (0) target = $region21
    $region20: #{net_forward_pallas.5} parent=1 // pred_region
      _
    $region21: #{net_forward_pallas.5} parent=1 // pred_fallthru
      _
    // Predicated region
    $region22: #{net_forward_pallas.5} parent=1 // pred_check
      _
    $region23: #{net_forward_pallas.5} parent=1 // pred_check_branch
      %27 = sbr.rel (0) target = $region25
    $region24: #{net_forward_pallas.5} parent=1 // pred_region
      _
    $region25: #{net_forward_pallas.5} parent=1 // pred_fallthru
      _
    // Predicated region
    $region26: #{net_forward_pallas.5} parent=1 // pred_check
      _
    $region27: #{net_forward_pallas.5} parent=1 // pred_check_branch
      %29 = sbr.rel (0) target = $region29
    $region28: #{net_forward_pallas.5} parent=1 // pred_region
      _
    $region29: #{net_forward_pallas.5} parent=1 // pred_fallthru
      _
    %v31 = vld [vmem:[%s0] sm:$0x7f]
    %v32 = vld [vmem:[%s1] sm:$0xff]
    %v33 = vld [vmem:[%s1 + $0x8] sm:$0xff]
    %v34 = vld [vmem:[%s1 + $0x10] sm:$0xff]
    %v35 = vld [vmem:[%s1 + $0x18] sm:$0xff]
    %v36 = vld [vmem:[%s1 + $0x20] sm:$0xff]
    %v37 = vld [vmem:[%s1 + $0x28] sm:$0xff]
    %v38 = vld [vmem:[%s1 + $0x30] sm:$0xff]
    %v39 = vld [vmem:[%s1 + $0x38] sm:$0xff]
    %v40 = vld [vmem:[%s1 + $0x40] sm:$0xff]
    %v41 = vld [vmem:[%s1 + $0x48] sm:$0xff]
    %v42 = vld [vmem:[%s1 + $0x50] sm:$0xff]
    %v43 = vld [vmem:[%s1 + $0x58] sm:$0xff]
    %v44 = vld [vmem:[%s1 + $0x60] sm:$0xff]
    %v45 = vld [vmem:[%s1 + $0x68] sm:$0xff]
    %v46 = vld [vmem:[%s1 + $0x70] sm:$0xff]
    %v47 = vld [vmem:[%s1 + $0x78] sm:$0xff]
    %v48 = vld [vmem:[%s1 + $0x80] sm:$0xff]
    %v49 = vld [vmem:[%s1 + $0x88] sm:$0xff]
    %v50 = vld [vmem:[%s1 + $0x90] sm:$0xff]
    %v51 = vld [vmem:[%s1 + $0x98] sm:$0xff]
    %v52 = vld [vmem:[%s1 + $0xa0] sm:$0xff]
    %v53 = vld [vmem:[%s1 + $0xa8] sm:$0xff]
    %v54 = vld [vmem:[%s1 + $0xb0] sm:$0xff]
    %v55 = vld [vmem:[%s1 + $0xb8] sm:$0xff]
    %v56 = vld [vmem:[%s1 + $0xc0] sm:$0xff]
    %v57 = vld [vmem:[%s1 + $0xc8] sm:$0xff]
    %v58 = vld [vmem:[%s1 + $0xd0] sm:$0xff]
    %v59 = vld [vmem:[%s1 + $0xd8] sm:$0xff]
    %v60 = vld [vmem:[%s1 + $0xe0] sm:$0xff]
    %v61 = vld [vmem:[%s1 + $0xe8] sm:$0xff]
    %v62 = vld [vmem:[%s1 + $0xf0] sm:$0xff]
    %v63 = vld [vmem:[%s1 + $0xf8] sm:$0xff]
    %v64 = vld [vmem:[%s1 + $0x100] sm:$0xff]
    %v65 = vld [vmem:[%s1 + $0x108] sm:$0xff]
    %v66 = vld [vmem:[%s1 + $0x110] sm:$0xff]
    %v67 = vld [vmem:[%s1 + $0x118] sm:$0xff]
    %v68 = vld [vmem:[%s1 + $0x120] sm:$0xff]
    %v69 = vld [vmem:[%s1 + $0x128] sm:$0xff]
    %v70 = vld [vmem:[%s1 + $0x130] sm:$0xff]
    %v71 = vld [vmem:[%s1 + $0x138] sm:$0xff]
    %v72 = vld [vmem:[%s1 + $0x140] sm:$0xff]
    %v73 = vld [vmem:[%s1 + $0x148] sm:$0xff]
    %v74 = vld [vmem:[%s1 + $0x150] sm:$0xff]
    %v75 = vld [vmem:[%s1 + $0x158] sm:$0xff]
    %v76 = vld [vmem:[%s1 + $0x160] sm:$0xff]
    %v77 = vld [vmem:[%s1 + $0x168] sm:$0xff]
    %v78 = vld [vmem:[%s1 + $0x170] sm:$0xff]
    %v79 = vld [vmem:[%s1 + $0x178] sm:$0xff]
    %v80 = vld [vmem:[%s1 + $0x180] sm:$0xff]
    %v81 = vld [vmem:[%s1 + $0x188] sm:$0xff]
    %v82 = vld [vmem:[%s1 + $0x190] sm:$0xff]
    %v83 = vld [vmem:[%s1 + $0x198] sm:$0xff]
    %v84 = vld [vmem:[%s1 + $0x1a0] sm:$0xff]
    %v85 = vld [vmem:[%s1 + $0x1a8] sm:$0xff]
    %v86 = vld [vmem:[%s1 + $0x1b0] sm:$0xff]
    %v87 = vld [vmem:[%s1 + $0x1b8] sm:$0xff]
    %v88 = vld [vmem:[%s1 + $0x1c0] sm:$0xff]
    %v89 = vld [vmem:[%s1 + $0x1c8] sm:$0xff]
    %v90 = vld [vmem:[%s1 + $0x1d0] sm:$0xff]
    %v91 = vld [vmem:[%s1 + $0x1d8] sm:$0xff]
    %v92 = vld [vmem:[%s1 + $0x1e0] sm:$0xff]
    %v93 = vld [vmem:[%s1 + $0x1e8] sm:$0xff]
    %v94 = vld [vmem:[%s1 + $0x1f0] sm:$0xff]
    %v95 = vld [vmem:[%s1 + $0x1f8] sm:$0xff]
    %v96 = vld [vmem:[%s1 + $0x200] sm:$0xff]
    %v97 = vld [vmem:[%s1 + $0x208] sm:$0xff]
    %v98 = vld [vmem:[%s1 + $0x210] sm:$0xff]
    %v99 = vld [vmem:[%s1 + $0x218] sm:$0xff]
    %v100 = vld [vmem:[%s1 + $0x220] sm:$0xff]
    %v101 = vld [vmem:[%s1 + $0x228] sm:$0xff]
    %v102 = vld [vmem:[%s1 + $0x230] sm:$0xff]
    %v103 = vld [vmem:[%s1 + $0x238] sm:$0xff]
    %v104 = vld [vmem:[%s1 + $0x240] sm:$0xff]
    %v105 = vld [vmem:[%s1 + $0x248] sm:$0xff]
    %v106 = vld [vmem:[%s1 + $0x250] sm:$0xff]
    %v107 = vld [vmem:[%s1 + $0x258] sm:$0xff]
    %v108 = vld [vmem:[%s1 + $0x260] sm:$0xff]
    %v109 = vld [vmem:[%s1 + $0x268] sm:$0xff]
    %v110 = vld [vmem:[%s1 + $0x270] sm:$0xff]
    %v111 = vld [vmem:[%s1 + $0x278] sm:$0xff]
    %v112 = vld [vmem:[%s1 + $0x280] sm:$0xff]
    %v113 = vld [vmem:[%s1 + $0x288] sm:$0xff]
    %v114 = vld [vmem:[%s1 + $0x290] sm:$0xff]
    %v115 = vld [vmem:[%s1 + $0x298] sm:$0xff]
    %v116 = vld [vmem:[%s1 + $0x2a0] sm:$0xff]
    %v117 = vld [vmem:[%s1 + $0x2a8] sm:$0xff]
    %v118 = vld [vmem:[%s1 + $0x2b0] sm:$0xff]
    %v119 = vld [vmem:[%s1 + $0x2b8] sm:$0xff]
    %v120 = vld [vmem:[%s1 + $0x2c0] sm:$0xff]
    %v121 = vld [vmem:[%s1 + $0x2c8] sm:$0xff]
    %v122 = vld [vmem:[%s1 + $0x2d0] sm:$0xff]
    %v123 = vld [vmem:[%s1 + $0x2d8] sm:$0xff]
    %v124 = vld [vmem:[%s1 + $0x2e0] sm:$0xff]
    %v125 = vld [vmem:[%s1 + $0x2e8] sm:$0xff]
    %v126 = vld [vmem:[%s1 + $0x2f0] sm:$0xff]
    %v127 = vld [vmem:[%s1 + $0x2f8] sm:$0xff]
    %v128 = vld [vmem:[%s1 + $0x300] sm:$0xff]
    %v129 = vld [vmem:[%s1 + $0x308] sm:$0xff]
    %v130 = vld [vmem:[%s1 + $0x310] sm:$0xff]
    %v131 = vld [vmem:[%s1 + $0x318] sm:$0xff]
    %v132 = vld [vmem:[%s1 + $0x320] sm:$0xff]
    %v133 = vld [vmem:[%s1 + $0x328] sm:$0xff]
    %v134 = vld [vmem:[%s1 + $0x330] sm:$0xff]
    %v135 = vld [vmem:[%s1 + $0x338] sm:$0xff]
    %v136 = vld [vmem:[%s1 + $0x340] sm:$0xff]
    %v137 = vld [vmem:[%s1 + $0x348] sm:$0xff]
    %v138 = vld [vmem:[%s1 + $0x350] sm:$0xff]
    %v139 = vld [vmem:[%s1 + $0x358] sm:$0xff]
    %v140 = vld [vmem:[%s1 + $0x360] sm:$0xff]
    %v141 = vld [vmem:[%s1 + $0x368] sm:$0xff]
    %v142 = vld [vmem:[%s1 + $0x370] sm:$0xff]
    %v143 = vld [vmem:[%s1 + $0x378] sm:$0xff]
    %v144 = vld [vmem:[%s1 + $0x380] sm:$0xff]
    %v145 = vld [vmem:[%s1 + $0x388] sm:$0xff]
    %v146 = vld [vmem:[%s1 + $0x390] sm:$0xff]
    %v147 = vld [vmem:[%s1 + $0x398] sm:$0xff]
    %v148 = vld [vmem:[%s1 + $0x3a0] sm:$0xff]
    %v149 = vld [vmem:[%s1 + $0x3a8] sm:$0xff]
    %v150 = vld [vmem:[%s1 + $0x3b0] sm:$0xff]
    %v151 = vld [vmem:[%s1 + $0x3b8] sm:$0xff]
    %v152 = vld [vmem:[%s1 + $0x3c0] sm:$0xff]
    %v153 = vld [vmem:[%s1 + $0x3c8] sm:$0xff]
    %v154 = vld [vmem:[%s1 + $0x3d0] sm:$0xff]
    %v155 = vld [vmem:[%s1 + $0x3d8] sm:$0xff]
    %v156 = vld [vmem:[%s1 + $0x3e0] sm:$0xff]
    %v157 = vld [vmem:[%s1 + $0x3e8] sm:$0xff]
    %v158 = vld [vmem:[%s1 + $0x3f0] sm:$0xff]
    %v159 = vld [vmem:[%s1 + $0x3f8] sm:$0xff]
    %v160 = vld [vmem:[%s1 + $0x400] sm:$0xff]
    %v161 = vld [vmem:[%s1 + $0x408] sm:$0xff]
    %v162 = vld [vmem:[%s1 + $0x410] sm:$0xff]
    %v163 = vld [vmem:[%s1 + $0x418] sm:$0xff]
    %v164 = vld [vmem:[%s1 + $0x420] sm:$0xff]
    %v165 = vld [vmem:[%s1 + $0x428] sm:$0xff]
    %v166 = vld [vmem:[%s1 + $0x430] sm:$0xff]
    %v167 = vld [vmem:[%s1 + $0x438] sm:$0xff]
    %v168 = vld [vmem:[%s1 + $0x440] sm:$0xff]
    %v169 = vld [vmem:[%s1 + $0x448] sm:$0xff]
    %v170 = vld [vmem:[%s1 + $0x450] sm:$0xff]
    %v171 = vld [vmem:[%s1 + $0x458] sm:$0xff]
    %v172 = vld [vmem:[%s1 + $0x460] sm:$0xff]
    %v173 = vld [vmem:[%s1 + $0x468] sm:$0xff]
    %v174 = vld [vmem:[%s1 + $0x470] sm:$0xff]
    %v175 = vld [vmem:[%s1 + $0x478] sm:$0xff]
    %v176 = vld [vmem:[%s1 + $0x480] sm:$0xff]
    %v177 = vld [vmem:[%s1 + $0x488] sm:$0xff]
    %v178 = vld [vmem:[%s1 + $0x490] sm:$0xff]
    %v179 = vld [vmem:[%s1 + $0x498] sm:$0xff]
    %v180 = vld [vmem:[%s1 + $0x4a0] sm:$0xff]
    %v181 = vld [vmem:[%s1 + $0x4a8] sm:$0xff]
    %v182 = vld [vmem:[%s1 + $0x4b0] sm:$0xff]
    %v183 = vld [vmem:[%s1 + $0x4b8] sm:$0xff]
    %v184 = vld [vmem:[%s1 + $0x4c0] sm:$0xff]
    %v185 = vld [vmem:[%s1 + $0x4c8] sm:$0xff]
    %v186 = vld [vmem:[%s1 + $0x4d0] sm:$0xff]
    %v187 = vld [vmem:[%s1 + $0x4d8] sm:$0xff]
    %v188 = vld [vmem:[%s1 + $0x4e0] sm:$0xff]
    %v189 = vld [vmem:[%s1 + $0x4e8] sm:$0xff]
    %v190 = vld [vmem:[%s1 + $0x4f0] sm:$0xff]
    %v191 = vld [vmem:[%s1 + $0x4f8] sm:$0xff]
    %v192 = vld [vmem:[%s1 + $0x500] sm:$0xff]
    %v193 = vld [vmem:[%s1 + $0x508] sm:$0xff]
    %v194 = vld [vmem:[%s1 + $0x510] sm:$0xff]
    %v195 = vld [vmem:[%s1 + $0x518] sm:$0xff]
    %v196 = vld [vmem:[%s1 + $0x520] sm:$0xff]
    %v197 = vld [vmem:[%s1 + $0x528] sm:$0xff]
    %v198 = vld [vmem:[%s1 + $0x530] sm:$0xff]
    %v199 = vld [vmem:[%s1 + $0x538] sm:$0xff]
    %v200 = vld [vmem:[%s1 + $0x540] sm:$0xff]
    %v201 = vld [vmem:[%s1 + $0x548] sm:$0xff]
    %v202 = vld [vmem:[%s1 + $0x550] sm:$0xff]
    %v203 = vld [vmem:[%s1 + $0x558] sm:$0xff]
    %v204 = vld [vmem:[%s1 + $0x560] sm:$0xff]
    %v205 = vld [vmem:[%s1 + $0x568] sm:$0xff]
    %v206 = vld [vmem:[%s1 + $0x570] sm:$0xff]
    %v207 = vld [vmem:[%s1 + $0x578] sm:$0xff]
    %v208 = vld [vmem:[%s1 + $0x580] sm:$0xff]
    %v209 = vld [vmem:[%s1 + $0x588] sm:$0xff]
    %v210 = vld [vmem:[%s1 + $0x590] sm:$0xff]
    %v211 = vld [vmem:[%s1 + $0x598] sm:$0xff]
    %v212 = vld [vmem:[%s1 + $0x5a0] sm:$0xff]
    %v213 = vld [vmem:[%s1 + $0x5a8] sm:$0xff]
    %v214 = vld [vmem:[%s1 + $0x5b0] sm:$0xff]
    %v215 = vld [vmem:[%s1 + $0x5b8] sm:$0xff]
    %v216 = vld [vmem:[%s1 + $0x5c0] sm:$0xff]
    %v217 = vld [vmem:[%s1 + $0x5c8] sm:$0xff]
    %v218 = vld [vmem:[%s1 + $0x5d0] sm:$0xff]
    %v219 = vld [vmem:[%s1 + $0x5d8] sm:$0xff]
    %v220 = vld [vmem:[%s1 + $0x5e0] sm:$0xff]
    %v221 = vld [vmem:[%s1 + $0x5e8] sm:$0xff]
    %v222 = vld [vmem:[%s1 + $0x5f0] sm:$0xff]
    %v223 = vld [vmem:[%s1 + $0x5f8] sm:$0xff]
    %v224 = vld [vmem:[%s1 + $0x600] sm:$0xff]
    %v225 = vld [vmem:[%s1 + $0x608] sm:$0xff]
    %v226 = vld [vmem:[%s1 + $0x610] sm:$0xff]
    %v227 = vld [vmem:[%s1 + $0x618] sm:$0xff]
    %v228 = vld [vmem:[%s1 + $0x620] sm:$0xff]
    %v229 = vld [vmem:[%s1 + $0x628] sm:$0xff]
    %v230 = vld [vmem:[%s1 + $0x630] sm:$0xff]
    %v231 = vld [vmem:[%s1 + $0x638] sm:$0xff]
    %v232 = vld [vmem:[%s2] sm:$0xf]
    %v234 = vlaneseq
    %v235 = vshrl.u32 %v234, 7
    %v236 = vsub.s32 0, %v235
    %v237 = vrot.slane %v232, %v236
    %v238 = vlaneseq
    %v239 = vshrl.u32 %v238, 7
    %v240 = vsub.s32 1, %v239
    %v241 = vrot.slane %v232, %v240
    %v242 = vlaneseq
    %v243 = vshrl.u32 %v242, 7
    %v244 = vsub.s32 2, %v243
    %v245 = vrot.slane %v232, %v244
    %v246 = vlaneseq
    %v247 = vshrl.u32 %v246, 7
    %v248 = vsub.s32 3, %v247
    %v249 = vrot.slane %v232, %v248
    %v255 = vcombine.high %v31, %v31
    %v257 = vunpack.c.l.s4 1966171168
    %v258 = vunpack.c.0.s8 %v257
    %v259 = vlaneseq
    %v260 = vshrl.u32 %v259, 7
    %v261 = vsub.s32 %v258, %v260
    %v262 = vrot.slane %v31, %v261
    %v264 = vunpack.c.l.s4 1966171168
    %v265 = vunpack.c.0.s8 %v264
    %v266 = vlaneseq
    %v267 = vshrl.u32 %v266, 7
    %v268 = vsub.s32 %v265, %v267
    %v269 = vrot.slane %v255, %v268
    %v270 = vcombine.high %v262, %v262
    %v271 = vcombine.high %v269, %v269
    %v273 = vunpack.c.l.s4 1966171168
    %v274 = vunpack.c.0.s8 %v273
    %v275 = vlaneseq
    %v276 = vshrl.u32 %v275, 7
    %v277 = vsub.s32 %v274, %v276
    %v278 = vrot.slane %v262, %v277
    %v280 = vunpack.c.l.s4 1966171168
    %v281 = vunpack.c.0.s8 %v280
    %v282 = vlaneseq
    %v283 = vshrl.u32 %v282, 7
    %v284 = vsub.s32 %v281, %v283
    %v285 = vrot.slane %v269, %v284
    %v287 = vunpack.c.l.s4 1966171168
    %v288 = vunpack.c.0.s8 %v287
    %v289 = vlaneseq
    %v290 = vshrl.u32 %v289, 7
    %v291 = vsub.s32 %v288, %v290
    %v292 = vrot.slane %v270, %v291
    %v294 = vunpack.c.l.s4 1966171168
    %v295 = vunpack.c.0.s8 %v294
    %v296 = vlaneseq
    %v297 = vshrl.u32 %v296, 7
    %v298 = vsub.s32 %v295, %v297
    %v299 = vrot.slane %v271, %v298
    %v300 = vcombine.high %v278, %v278
    %v301 = vcombine.high %v285, %v285
    %v302 = vcombine.high %v292, %v292
    %v509 = vunpack.c.l.b16 %v32
    %v510 = vunpack.c.h.b16 %v32
    %v511 = vunpack.c.l.b16 %v33
    %v512 = vunpack.c.h.b16 %v33
    %v513 = vunpack.c.l.b16 %v34
    %v514 = vunpack.c.h.b16 %v34
    %v515 = vunpack.c.l.b16 %v35
    %v516 = vunpack.c.h.b16 %v35
    %v517 = vunpack.c.l.b16 %v36
    %v518 = vunpack.c.h.b16 %v36
    %v519 = vunpack.c.l.b16 %v37
    %v520 = vunpack.c.h.b16 %v37
    %v521 = vunpack.c.l.b16 %v38
    %v522 = vunpack.c.h.b16 %v38
    %v523 = vunpack.c.l.b16 %v39
    %v524 = vunpack.c.h.b16 %v39
    %v525 = vunpack.c.l.b16 %v40
    %v526 = vunpack.c.h.b16 %v40
    %v527 = vunpack.c.l.b16 %v41
    %v528 = vunpack.c.h.b16 %v41
    %v529 = vunpack.c.l.b16 %v42
    %v530 = vunpack.c.h.b16 %v42
    %v531 = vunpack.c.l.b16 %v43
    %v532 = vunpack.c.h.b16 %v43
    %v533 = vunpack.c.l.b16 %v44
    %v534 = vunpack.c.h.b16 %v44
    %v535 = vunpack.c.l.b16 %v45
    %v536 = vunpack.c.h.b16 %v45
    %v537 = vunpack.c.l.b16 %v46
    %v538 = vunpack.c.h.b16 %v46
    %v539 = vunpack.c.l.b16 %v47
    %v540 = vunpack.c.h.b16 %v47
    %v541 = vunpack.c.l.b16 %v48
    %v542 = vunpack.c.h.b16 %v48
    %v543 = vunpack.c.l.b16 %v49
    %v544 = vunpack.c.h.b16 %v49
    %v545 = vunpack.c.l.b16 %v50
    %v546 = vunpack.c.h.b16 %v50
    %v547 = vunpack.c.l.b16 %v51
    %v548 = vunpack.c.h.b16 %v51
    %v549 = vunpack.c.l.b16 %v52
    %v550 = vunpack.c.h.b16 %v52
    %v551 = vunpack.c.l.b16 %v53
    %v552 = vunpack.c.h.b16 %v53
    %v553 = vunpack.c.l.b16 %v54
    %v554 = vunpack.c.h.b16 %v54
    %v555 = vunpack.c.l.b16 %v55
    %v556 = vunpack.c.h.b16 %v55
    %v557 = vunpack.c.l.b16 %v56
    %v558 = vunpack.c.h.b16 %v56
    %v559 = vunpack.c.l.b16 %v57
    %v560 = vunpack.c.h.b16 %v57
    %v561 = vunpack.c.l.b16 %v58
    %v562 = vunpack.c.h.b16 %v58
    %v563 = vunpack.c.l.b16 %v59
    %v564 = vunpack.c.h.b16 %v59
    %v565 = vunpack.c.l.b16 %v60
    %v566 = vunpack.c.h.b16 %v60
    %v567 = vunpack.c.l.b16 %v61
    %v568 = vunpack.c.h.b16 %v61
    %v569 = vunpack.c.l.b16 %v62
    %v570 = vunpack.c.h.b16 %v62
    %v571 = vunpack.c.l.b16 %v63
    %v572 = vunpack.c.h.b16 %v63
    %v573 = vunpack.c.l.b16 %v64
    %v574 = vunpack.c.h.b16 %v64
    %v575 = vunpack.c.l.b16 %v65
    %v576 = vunpack.c.h.b16 %v65
    %v577 = vunpack.c.l.b16 %v66
    %v578 = vunpack.c.h.b16 %v66
    %v579 = vunpack.c.l.b16 %v67
    %v580 = vunpack.c.h.b16 %v67
    %v581 = vunpack.c.l.b16 %v68
    %v582 = vunpack.c.h.b16 %v68
    %v583 = vunpack.c.l.b16 %v69
    %v584 = vunpack.c.h.b16 %v69
    %v585 = vunpack.c.l.b16 %v70
    %v586 = vunpack.c.h.b16 %v70
    %v587 = vunpack.c.l.b16 %v71
    %v588 = vunpack.c.h.b16 %v71
    %v589 = vunpack.c.l.b16 %v72
    %v590 = vunpack.c.h.b16 %v72
    %v591 = vunpack.c.l.b16 %v73
    %v592 = vunpack.c.h.b16 %v73
    %v593 = vunpack.c.l.b16 %v74
    %v594 = vunpack.c.h.b16 %v74
    %v595 = vunpack.c.l.b16 %v75
    %v596 = vunpack.c.h.b16 %v75
    %v597 = vunpack.c.l.b16 %v76
    %v598 = vunpack.c.h.b16 %v76
    %v599 = vunpack.c.l.b16 %v77
    %v600 = vunpack.c.h.b16 %v77
    %v601 = vunpack.c.l.b16 %v78
    %v602 = vunpack.c.h.b16 %v78
    %v603 = vunpack.c.l.b16 %v79
    %v604 = vunpack.c.h.b16 %v79
    %v605 = vunpack.c.l.b16 %v80
    %v606 = vunpack.c.h.b16 %v80
    %v607 = vunpack.c.l.b16 %v81
    %v608 = vunpack.c.h.b16 %v81
    %v609 = vunpack.c.l.b16 %v82
    %v610 = vunpack.c.h.b16 %v82
    %v611 = vunpack.c.l.b16 %v83
    %v612 = vunpack.c.h.b16 %v83
    %v613 = vunpack.c.l.b16 %v84
    %v614 = vunpack.c.h.b16 %v84
    %v615 = vunpack.c.l.b16 %v85
    %v616 = vunpack.c.h.b16 %v85
    %v617 = vunpack.c.l.b16 %v86
    %v618 = vunpack.c.h.b16 %v86
    %v619 = vunpack.c.l.b16 %v87
    %v620 = vunpack.c.h.b16 %v87
    %v621 = vunpack.c.l.b16 %v88
    %v622 = vunpack.c.h.b16 %v88
    %v623 = vunpack.c.l.b16 %v89
    %v624 = vunpack.c.h.b16 %v89
    %v625 = vunpack.c.l.b16 %v90
    %v626 = vunpack.c.h.b16 %v90
    %v627 = vunpack.c.l.b16 %v91
    %v628 = vunpack.c.h.b16 %v91
    %v629 = vunpack.c.l.b16 %v92
    %v630 = vunpack.c.h.b16 %v92
    %v631 = vunpack.c.l.b16 %v93
    %v632 = vunpack.c.h.b16 %v93
    %v633 = vunpack.c.l.b16 %v94
    %v634 = vunpack.c.h.b16 %v94
    %v635 = vunpack.c.l.b16 %v95
    %v636 = vunpack.c.h.b16 %v95
    %v637 = vunpack.c.l.b16 %v96
    %v638 = vunpack.c.h.b16 %v96
    %v639 = vunpack.c.l.b16 %v97
    %v640 = vunpack.c.h.b16 %v97
    %v641 = vunpack.c.l.b16 %v98
    %v642 = vunpack.c.h.b16 %v98
    %v643 = vunpack.c.l.b16 %v99
    %v644 = vunpack.c.h.b16 %v99
    %v645 = vunpack.c.l.b16 %v100
    %v646 = vunpack.c.h.b16 %v100
    %v647 = vunpack.c.l.b16 %v101
    %v648 = vunpack.c.h.b16 %v101
    %v649 = vunpack.c.l.b16 %v102
    %v650 = vunpack.c.h.b16 %v102
    %v651 = vunpack.c.l.b16 %v103
    %v652 = vunpack.c.h.b16 %v103
    %v653 = vunpack.c.l.b16 %v104
    %v654 = vunpack.c.h.b16 %v104
    %v655 = vunpack.c.l.b16 %v105
    %v656 = vunpack.c.h.b16 %v105
    %v657 = vunpack.c.l.b16 %v106
    %v658 = vunpack.c.h.b16 %v106
    %v659 = vunpack.c.l.b16 %v107
    %v660 = vunpack.c.h.b16 %v107
    %v661 = vunpack.c.l.b16 %v108
    %v662 = vunpack.c.h.b16 %v108
    %v663 = vunpack.c.l.b16 %v109
    %v664 = vunpack.c.h.b16 %v109
    %v665 = vunpack.c.l.b16 %v110
    %v666 = vunpack.c.h.b16 %v110
    %v667 = vunpack.c.l.b16 %v111
    %v668 = vunpack.c.h.b16 %v111
    %v669 = vunpack.c.l.b16 %v112
    %v670 = vunpack.c.h.b16 %v112
    %v671 = vunpack.c.l.b16 %v113
    %v672 = vunpack.c.h.b16 %v113
    %v673 = vunpack.c.l.b16 %v114
    %v674 = vunpack.c.h.b16 %v114
    %v675 = vunpack.c.l.b16 %v115
    %v676 = vunpack.c.h.b16 %v115
    %v677 = vunpack.c.l.b16 %v116
    %v678 = vunpack.c.h.b16 %v116
    %v679 = vunpack.c.l.b16 %v117
    %v680 = vunpack.c.h.b16 %v117
    %v681 = vunpack.c.l.b16 %v118
    %v682 = vunpack.c.h.b16 %v118
    %v683 = vunpack.c.l.b16 %v119
    %v684 = vunpack.c.h.b16 %v119
    %v685 = vunpack.c.l.b16 %v120
    %v686 = vunpack.c.h.b16 %v120
    %v687 = vunpack.c.l.b16 %v121
    %v688 = vunpack.c.h.b16 %v121
    %v689 = vunpack.c.l.b16 %v122
    %v690 = vunpack.c.h.b16 %v122
    %v691 = vunpack.c.l.b16 %v123
    %v692 = vunpack.c.h.b16 %v123
    %v693 = vunpack.c.l.b16 %v124
    %v694 = vunpack.c.h.b16 %v124
    %v695 = vunpack.c.l.b16 %v125
    %v696 = vunpack.c.h.b16 %v125
    %v697 = vunpack.c.l.b16 %v126
    %v698 = vunpack.c.h.b16 %v126
    %v699 = vunpack.c.l.b16 %v127
    %v700 = vunpack.c.h.b16 %v127
    %v701 = vunpack.c.l.b16 %v128
    %v702 = vunpack.c.h.b16 %v128
    %v703 = vunpack.c.l.b16 %v129
    %v704 = vunpack.c.h.b16 %v129
    %v705 = vunpack.c.l.b16 %v130
    %v706 = vunpack.c.h.b16 %v130
    %v707 = vunpack.c.l.b16 %v131
    %v708 = vunpack.c.h.b16 %v131
    %v709 = vunpack.c.l.b16 %v132
    %v710 = vunpack.c.h.b16 %v132
    %v711 = vunpack.c.l.b16 %v133
    %v712 = vunpack.c.h.b16 %v133
    %v713 = vunpack.c.l.b16 %v134
    %v714 = vunpack.c.h.b16 %v134
    %v715 = vunpack.c.l.b16 %v135
    %v716 = vunpack.c.h.b16 %v135
    %v717 = vunpack.c.l.b16 %v136
    %v718 = vunpack.c.h.b16 %v136
    %v719 = vunpack.c.l.b16 %v137
    %v720 = vunpack.c.h.b16 %v137
    %v721 = vunpack.c.l.b16 %v138
    %v722 = vunpack.c.h.b16 %v138
    %v723 = vunpack.c.l.b16 %v139
    %v724 = vunpack.c.h.b16 %v139
    %v725 = vunpack.c.l.b16 %v140
    %v726 = vunpack.c.h.b16 %v140
    %v727 = vunpack.c.l.b16 %v141
    %v728 = vunpack.c.h.b16 %v141
    %v729 = vunpack.c.l.b16 %v142
    %v730 = vunpack.c.h.b16 %v142
    %v731 = vunpack.c.l.b16 %v143
    %v732 = vunpack.c.h.b16 %v143
    %v733 = vunpack.c.l.b16 %v144
    %v734 = vunpack.c.h.b16 %v144
    %v735 = vunpack.c.l.b16 %v145
    %v736 = vunpack.c.h.b16 %v145
    %v737 = vunpack.c.l.b16 %v146
    %v738 = vunpack.c.h.b16 %v146
    %v739 = vunpack.c.l.b16 %v147
    %v740 = vunpack.c.h.b16 %v147
    %v741 = vunpack.c.l.b16 %v148
    %v742 = vunpack.c.h.b16 %v148
    %v743 = vunpack.c.l.b16 %v149
    %v744 = vunpack.c.h.b16 %v149
    %v745 = vunpack.c.l.b16 %v150
    %v746 = vunpack.c.h.b16 %v150
    %v747 = vunpack.c.l.b16 %v151
    %v748 = vunpack.c.h.b16 %v151
    %v749 = vunpack.c.l.b16 %v152
    %v750 = vunpack.c.h.b16 %v152
    %v751 = vunpack.c.l.b16 %v153
    %v752 = vunpack.c.h.b16 %v153
    %v753 = vunpack.c.l.b16 %v154
    %v754 = vunpack.c.h.b16 %v154
    %v755 = vunpack.c.l.b16 %v155
    %v756 = vunpack.c.h.b16 %v155
    %v757 = vunpack.c.l.b16 %v156
    %v758 = vunpack.c.h.b16 %v156
    %v759 = vunpack.c.l.b16 %v157
    %v760 = vunpack.c.h.b16 %v157
    %v761 = vunpack.c.l.b16 %v158
    %v762 = vunpack.c.h.b16 %v158
    %v763 = vunpack.c.l.b16 %v159
    %v764 = vunpack.c.h.b16 %v159
    %v765 = vunpack.c.l.b16 %v160
    %v766 = vunpack.c.h.b16 %v160
    %v767 = vunpack.c.l.b16 %v161
    %v768 = vunpack.c.h.b16 %v161
    %v769 = vunpack.c.l.b16 %v162
    %v770 = vunpack.c.h.b16 %v162
    %v771 = vunpack.c.l.b16 %v163
    %v772 = vunpack.c.h.b16 %v163
    %v773 = vunpack.c.l.b16 %v164
    %v774 = vunpack.c.h.b16 %v164
    %v775 = vunpack.c.l.b16 %v165
    %v776 = vunpack.c.h.b16 %v165
    %v777 = vunpack.c.l.b16 %v166
    %v778 = vunpack.c.h.b16 %v166
    %v779 = vunpack.c.l.b16 %v167
    %v780 = vunpack.c.h.b16 %v167
    %v781 = vunpack.c.l.b16 %v168
    %v782 = vunpack.c.h.b16 %v168
    %v783 = vunpack.c.l.b16 %v169
    %v784 = vunpack.c.h.b16 %v169
    %v785 = vunpack.c.l.b16 %v170
    %v786 = vunpack.c.h.b16 %v170
    %v787 = vunpack.c.l.b16 %v171
    %v788 = vunpack.c.h.b16 %v171
    %v789 = vunpack.c.l.b16 %v172
    %v790 = vunpack.c.h.b16 %v172
    %v791 = vunpack.c.l.b16 %v173
    %v792 = vunpack.c.h.b16 %v173
    %v793 = vunpack.c.l.b16 %v174
    %v794 = vunpack.c.h.b16 %v174
    %v795 = vunpack.c.l.b16 %v175
    %v796 = vunpack.c.h.b16 %v175
    %v797 = vunpack.c.l.b16 %v176
    %v798 = vunpack.c.h.b16 %v176
    %v799 = vunpack.c.l.b16 %v177
    %v800 = vunpack.c.h.b16 %v177
    %v801 = vunpack.c.l.b16 %v178
    %v802 = vunpack.c.h.b16 %v178
    %v803 = vunpack.c.l.b16 %v179
    %v804 = vunpack.c.h.b16 %v179
    %v805 = vunpack.c.l.b16 %v180
    %v806 = vunpack.c.h.b16 %v180
    %v807 = vunpack.c.l.b16 %v181
    %v808 = vunpack.c.h.b16 %v181
    %v809 = vunpack.c.l.b16 %v182
    %v810 = vunpack.c.h.b16 %v182
    %v811 = vunpack.c.l.b16 %v183
    %v812 = vunpack.c.h.b16 %v183
    %v813 = vunpack.c.l.b16 %v184
    %v814 = vunpack.c.h.b16 %v184
    %v815 = vunpack.c.l.b16 %v185
    %v816 = vunpack.c.h.b16 %v185
    %v817 = vunpack.c.l.b16 %v186
    %v818 = vunpack.c.h.b16 %v186
    %v819 = vunpack.c.l.b16 %v187
    %v820 = vunpack.c.h.b16 %v187
    %v821 = vunpack.c.l.b16 %v188
    %v822 = vunpack.c.h.b16 %v188
    %v823 = vunpack.c.l.b16 %v189
    %v824 = vunpack.c.h.b16 %v189
    %v825 = vunpack.c.l.b16 %v190
    %v826 = vunpack.c.h.b16 %v190
    %v827 = vunpack.c.l.b16 %v191
    %v828 = vunpack.c.h.b16 %v191
    %v829 = vunpack.c.l.b16 %v192
    %v830 = vunpack.c.h.b16 %v192
    %v831 = vunpack.c.l.b16 %v193
    %v832 = vunpack.c.h.b16 %v193
    %v833 = vunpack.c.l.b16 %v194
    %v834 = vunpack.c.h.b16 %v194
    %v835 = vunpack.c.l.b16 %v195
    %v836 = vunpack.c.h.b16 %v195
    %v837 = vunpack.c.l.b16 %v196
    %v838 = vunpack.c.h.b16 %v196
    %v839 = vunpack.c.l.b16 %v197
    %v840 = vunpack.c.h.b16 %v197
    %v841 = vunpack.c.l.b16 %v198
    %v842 = vunpack.c.h.b16 %v198
    %v843 = vunpack.c.l.b16 %v199
    %v844 = vunpack.c.h.b16 %v199
    %v845 = vunpack.c.l.b16 %v200
    %v846 = vunpack.c.h.b16 %v200
    %v847 = vunpack.c.l.b16 %v201
    %v848 = vunpack.c.h.b16 %v201
    %v849 = vunpack.c.l.b16 %v202
    %v850 = vunpack.c.h.b16 %v202
    %v851 = vunpack.c.l.b16 %v203
    %v852 = vunpack.c.h.b16 %v203
    %v853 = vunpack.c.l.b16 %v204
    %v854 = vunpack.c.h.b16 %v204
    %v855 = vunpack.c.l.b16 %v205
    %v856 = vunpack.c.h.b16 %v205
    %v857 = vunpack.c.l.b16 %v206
    %v858 = vunpack.c.h.b16 %v206
    %v859 = vunpack.c.l.b16 %v207
    %v860 = vunpack.c.h.b16 %v207
    %v861 = vunpack.c.l.b16 %v208
    %v862 = vunpack.c.h.b16 %v208
    %v863 = vunpack.c.l.b16 %v209
    %v864 = vunpack.c.h.b16 %v209
    %v865 = vunpack.c.l.b16 %v210
    %v866 = vunpack.c.h.b16 %v210
    %v867 = vunpack.c.l.b16 %v211
    %v868 = vunpack.c.h.b16 %v211
    %v869 = vunpack.c.l.b16 %v212
    %v870 = vunpack.c.h.b16 %v212
    %v871 = vunpack.c.l.b16 %v213
    %v872 = vunpack.c.h.b16 %v213
    %v873 = vunpack.c.l.b16 %v214
    %v874 = vunpack.c.h.b16 %v214
    %v875 = vunpack.c.l.b16 %v215
    %v876 = vunpack.c.h.b16 %v215
    %v877 = vunpack.c.l.b16 %v216
    %v878 = vunpack.c.h.b16 %v216
    %v879 = vunpack.c.l.b16 %v217
    %v880 = vunpack.c.h.b16 %v217
    %v881 = vunpack.c.l.b16 %v218
    %v882 = vunpack.c.h.b16 %v218
    %v883 = vunpack.c.l.b16 %v219
    %v884 = vunpack.c.h.b16 %v219
    %v885 = vunpack.c.l.b16 %v220
    %v886 = vunpack.c.h.b16 %v220
    %v887 = vunpack.c.l.b16 %v221
    %v888 = vunpack.c.h.b16 %v221
    %v889 = vunpack.c.l.b16 %v222
    %v890 = vunpack.c.h.b16 %v222
    %v891 = vunpack.c.l.b16 %v223
    %v892 = vunpack.c.h.b16 %v223
    %v893 = vunpack.c.l.b16 %v224
    %v894 = vunpack.c.h.b16 %v224
    %v895 = vunpack.c.l.b16 %v225
    %v896 = vunpack.c.h.b16 %v225
    %v897 = vunpack.c.l.b16 %v226
    %v898 = vunpack.c.h.b16 %v226
    %v899 = vunpack.c.l.b16 %v227
    %v900 = vunpack.c.h.b16 %v227
    %v901 = vunpack.c.l.b16 %v228
    %v902 = vunpack.c.h.b16 %v228
    %v903 = vunpack.c.l.b16 %v229
    %v904 = vunpack.c.h.b16 %v229
    %v905 = vunpack.c.l.b16 %v230
    %v906 = vunpack.c.h.b16 %v230
    %v907 = vunpack.c.l.b16 %v231
    %v908 = vunpack.c.h.b16 %v231
    %v909 = vpack.c.b16 %v513, %v509
    %v910 = vpack.c.b16 %v514, %v510
    %v911 = vpack.c.b16 %v515, %v511
    %v912 = vpack.c.b16 %v516, %v512
    %v913 = vpack.c.b16 %v521, %v517
    %v914 = vpack.c.b16 %v522, %v518
    %v915 = vpack.c.b16 %v523, %v519
    %v916 = vpack.c.b16 %v524, %v520
    %v917 = vpack.c.b16 %v529, %v525
    %v918 = vpack.c.b16 %v530, %v526
    %v919 = vpack.c.b16 %v531, %v527
    %v920 = vpack.c.b16 %v532, %v528
    %v921 = vpack.c.b16 %v537, %v533
    %v922 = vpack.c.b16 %v538, %v534
    %v923 = vpack.c.b16 %v539, %v535
    %v924 = vpack.c.b16 %v540, %v536
    %v925 = vpack.c.b16 %v545, %v541
    %v926 = vpack.c.b16 %v546, %v542
    %v927 = vpack.c.b16 %v547, %v543
    %v928 = vpack.c.b16 %v548, %v544
    %v929 = vpack.c.b16 %v553, %v549
    %v930 = vpack.c.b16 %v554, %v550
    %v931 = vpack.c.b16 %v555, %v551
    %v932 = vpack.c.b16 %v556, %v552
    %v933 = vpack.c.b16 %v561, %v557
    %v934 = vpack.c.b16 %v562, %v558
    %v935 = vpack.c.b16 %v563, %v559
    %v936 = vpack.c.b16 %v564, %v560
    %v937 = vpack.c.b16 %v569, %v565
    %v938 = vpack.c.b16 %v570, %v566
    %v939 = vpack.c.b16 %v571, %v567
    %v940 = vpack.c.b16 %v572, %v568
    %v941 = vpack.c.b16 %v577, %v573
    %v942 = vpack.c.b16 %v578, %v574
    %v943 = vpack.c.b16 %v579, %v575
    %v944 = vpack.c.b16 %v580, %v576
    %v945 = vpack.c.b16 %v585, %v581
    %v946 = vpack.c.b16 %v586, %v582
    %v947 = vpack.c.b16 %v587, %v583
    %v948 = vpack.c.b16 %v588, %v584
    %v949 = vpack.c.b16 %v593, %v589
    %v950 = vpack.c.b16 %v594, %v590
    %v951 = vpack.c.b16 %v595, %v591
    %v952 = vpack.c.b16 %v596, %v592
    %v953 = vpack.c.b16 %v601, %v597
    %v954 = vpack.c.b16 %v602, %v598
    %v955 = vpack.c.b16 %v603, %v599
    %v956 = vpack.c.b16 %v604, %v600
    %v957 = vpack.c.b16 %v609, %v605
    %v958 = vpack.c.b16 %v610, %v606
    %v959 = vpack.c.b16 %v611, %v607
    %v960 = vpack.c.b16 %v612, %v608
    %v961 = vpack.c.b16 %v617, %v613
    %v962 = vpack.c.b16 %v618, %v614
    %v963 = vpack.c.b16 %v619, %v615
    %v964 = vpack.c.b16 %v620, %v616
    %v965 = vpack.c.b16 %v625, %v621
    %v966 = vpack.c.b16 %v626, %v622
    %v967 = vpack.c.b16 %v627, %v623
    %v968 = vpack.c.b16 %v628, %v624
    %v969 = vpack.c.b16 %v633, %v629
    %v970 = vpack.c.b16 %v634, %v630
    %v971 = vpack.c.b16 %v635, %v631
    %v972 = vpack.c.b16 %v636, %v632
    %v973 = vpack.c.b16 %v641, %v637
    %v974 = vpack.c.b16 %v642, %v638
    %v975 = vpack.c.b16 %v643, %v639
    %v976 = vpack.c.b16 %v644, %v640
    %v977 = vpack.c.b16 %v649, %v645
    %v978 = vpack.c.b16 %v650, %v646
    %v979 = vpack.c.b16 %v651, %v647
    %v980 = vpack.c.b16 %v652, %v648
    %v981 = vpack.c.b16 %v657, %v653
    %v982 = vpack.c.b16 %v658, %v654
    %v983 = vpack.c.b16 %v659, %v655
    %v984 = vpack.c.b16 %v660, %v656
    %v985 = vpack.c.b16 %v665, %v661
    %v986 = vpack.c.b16 %v666, %v662
    %v987 = vpack.c.b16 %v667, %v663
    %v988 = vpack.c.b16 %v668, %v664
    %v989 = vpack.c.b16 %v673, %v669
    %v990 = vpack.c.b16 %v674, %v670
    %v991 = vpack.c.b16 %v675, %v671
    %v992 = vpack.c.b16 %v676, %v672
    %v993 = vpack.c.b16 %v681, %v677
    %v994 = vpack.c.b16 %v682, %v678
    %v995 = vpack.c.b16 %v683, %v679
    %v996 = vpack.c.b16 %v684, %v680
    %v997 = vpack.c.b16 %v689, %v685
    %v998 = vpack.c.b16 %v690, %v686
    %v999 = vpack.c.b16 %v691, %v687
    %v1000 = vpack.c.b16 %v692, %v688
    %v1001 = vpack.c.b16 %v697, %v693
    %v1002 = vpack.c.b16 %v698, %v694
    %v1003 = vpack.c.b16 %v699, %v695
    %v1004 = vpack.c.b16 %v700, %v696
    %v1005 = vpack.c.b16 %v705, %v701
    %v1006 = vpack.c.b16 %v706, %v702
    %v1007 = vpack.c.b16 %v707, %v703
    %v1008 = vpack.c.b16 %v708, %v704
    %v1009 = vpack.c.b16 %v713, %v709
    %v1010 = vpack.c.b16 %v714, %v710
    %v1011 = vpack.c.b16 %v715, %v711
    %v1012 = vpack.c.b16 %v716, %v712
    %v1013 = vpack.c.b16 %v721, %v717
    %v1014 = vpack.c.b16 %v722, %v718
    %v1015 = vpack.c.b16 %v723, %v719
    %v1016 = vpack.c.b16 %v724, %v720
    %v1017 = vpack.c.b16 %v729, %v725
    %v1018 = vpack.c.b16 %v730, %v726
    %v1019 = vpack.c.b16 %v731, %v727
    %v1020 = vpack.c.b16 %v732, %v728
    %v1021 = vpack.c.b16 %v737, %v733
    %v1022 = vpack.c.b16 %v738, %v734
    %v1023 = vpack.c.b16 %v739, %v735
    %v1024 = vpack.c.b16 %v740, %v736
    %v1025 = vpack.c.b16 %v745, %v741
    %v1026 = vpack.c.b16 %v746, %v742
    %v1027 = vpack.c.b16 %v747, %v743
    %v1028 = vpack.c.b16 %v748, %v744
    %v1029 = vpack.c.b16 %v753, %v749
    %v1030 = vpack.c.b16 %v754, %v750
    %v1031 = vpack.c.b16 %v755, %v751
    %v1032 = vpack.c.b16 %v756, %v752
    %v1033 = vpack.c.b16 %v761, %v757
    %v1034 = vpack.c.b16 %v762, %v758
    %v1035 = vpack.c.b16 %v763, %v759
    %v1036 = vpack.c.b16 %v764, %v760
    %v1037 = vpack.c.b16 %v769, %v765
    %v1038 = vpack.c.b16 %v770, %v766
    %v1039 = vpack.c.b16 %v771, %v767
    %v1040 = vpack.c.b16 %v772, %v768
    %v1041 = vpack.c.b16 %v777, %v773
    %v1042 = vpack.c.b16 %v778, %v774
    %v1043 = vpack.c.b16 %v779, %v775
    %v1044 = vpack.c.b16 %v780, %v776
    %v1045 = vpack.c.b16 %v785, %v781
    %v1046 = vpack.c.b16 %v786, %v782
    %v1047 = vpack.c.b16 %v787, %v783
    %v1048 = vpack.c.b16 %v788, %v784
    %v1049 = vpack.c.b16 %v793, %v789
    %v1050 = vpack.c.b16 %v794, %v790
    %v1051 = vpack.c.b16 %v795, %v791
    %v1052 = vpack.c.b16 %v796, %v792
    %v1053 = vpack.c.b16 %v801, %v797
    %v1054 = vpack.c.b16 %v802, %v798
    %v1055 = vpack.c.b16 %v803, %v799
    %v1056 = vpack.c.b16 %v804, %v800
    %v1057 = vpack.c.b16 %v809, %v805
    %v1058 = vpack.c.b16 %v810, %v806
    %v1059 = vpack.c.b16 %v811, %v807
    %v1060 = vpack.c.b16 %v812, %v808
    %v1061 = vpack.c.b16 %v817, %v813
    %v1062 = vpack.c.b16 %v818, %v814
    %v1063 = vpack.c.b16 %v819, %v815
    %v1064 = vpack.c.b16 %v820, %v816
    %v1065 = vpack.c.b16 %v825, %v821
    %v1066 = vpack.c.b16 %v826, %v822
    %v1067 = vpack.c.b16 %v827, %v823
    %v1068 = vpack.c.b16 %v828, %v824
    %v1069 = vpack.c.b16 %v833, %v829
    %v1070 = vpack.c.b16 %v834, %v830
    %v1071 = vpack.c.b16 %v835, %v831
    %v1072 = vpack.c.b16 %v836, %v832
    %v1073 = vpack.c.b16 %v841, %v837
    %v1074 = vpack.c.b16 %v842, %v838
    %v1075 = vpack.c.b16 %v843, %v839
    %v1076 = vpack.c.b16 %v844, %v840
    %v1077 = vpack.c.b16 %v849, %v845
    %v1078 = vpack.c.b16 %v850, %v846
    %v1079 = vpack.c.b16 %v851, %v847
    %v1080 = vpack.c.b16 %v852, %v848
    %v1081 = vpack.c.b16 %v857, %v853
    %v1082 = vpack.c.b16 %v858, %v854
    %v1083 = vpack.c.b16 %v859, %v855
    %v1084 = vpack.c.b16 %v860, %v856
    %v1085 = vpack.c.b16 %v865, %v861
    %v1086 = vpack.c.b16 %v866, %v862
    %v1087 = vpack.c.b16 %v867, %v863
    %v1088 = vpack.c.b16 %v868, %v864
    %v1089 = vpack.c.b16 %v873, %v869
    %v1090 = vpack.c.b16 %v874, %v870
    %v1091 = vpack.c.b16 %v875, %v871
    %v1092 = vpack.c.b16 %v876, %v872
    %v1093 = vpack.c.b16 %v881, %v877
    %v1094 = vpack.c.b16 %v882, %v878
    %v1095 = vpack.c.b16 %v883, %v879
    %v1096 = vpack.c.b16 %v884, %v880
    %v1097 = vpack.c.b16 %v889, %v885
    %v1098 = vpack.c.b16 %v890, %v886
    %v1099 = vpack.c.b16 %v891, %v887
    %v1100 = vpack.c.b16 %v892, %v888
    %v1101 = vpack.c.b16 %v897, %v893
    %v1102 = vpack.c.b16 %v898, %v894
    %v1103 = vpack.c.b16 %v899, %v895
    %v1104 = vpack.c.b16 %v900, %v896
    %v1105 = vpack.c.b16 %v905, %v901
    %v1106 = vpack.c.b16 %v906, %v902
    %v1107 = vpack.c.b16 %v907, %v903
    %v1108 = vpack.c.b16 %v908, %v904
    %vm1309 = vcmask 261120
    %v1311 = vsel %vm1309, %v301, 0
    %1313 = vmatprep.subr.bf16.mxu0 %v910
    %1314 = vmatpush1.bf16.msra.mxu0 %v909
    %1315 = vmatprep.subr.bf16.mxu0 %v914
    %1316 = vmatpush1.bf16.msra.mxu0 %v913
    %1317 = vmatprep.subr.bf16.mxu0 %v918
    %1318 = vmatpush1.bf16.msra.mxu0 %v917
    %1319 = vmatprep.subr.bf16.mxu0 %v922
    %1320 = vmatpush1.bf16.msra.mxu0 %v921
    %1321 = vmatprep.subr.bf16.mxu0 %v926
    %1322 = vmatpush1.bf16.msra.mxu0 %v925
    %1323 = vmatprep.subr.bf16.mxu0 %v930
    %1324 = vmatpush1.bf16.msra.mxu0 %v929
    %1325 = vmatprep.subr.bf16.mxu0 %v934
    %1326 = vmatpush1.bf16.msra.mxu0 %v933
    %1327 = vmatprep.subr.bf16.mxu0 %v938
    %1328 = vmatpush1.bf16.msra.mxu0 %v937
    %1329 = vmatprep.subr.bf16.mxu0 %v942
    %1330 = vmatpush1.bf16.msra.mxu0 %v941
    %1331 = vmatprep.subr.bf16.mxu0 %v946
    %1332 = vmatpush1.bf16.msra.mxu0 %v945
    %1333 = vmatprep.subr.bf16.mxu0 %v950
    %1334 = vmatpush1.bf16.msra.mxu0 %v949
    %1335 = vmatprep.subr.bf16.mxu0 %v954
    %1336 = vmatpush1.bf16.msra.mxu0 %v953
    %1337 = vmatprep.subr.bf16.mxu0 %v958
    %1338 = vmatpush1.bf16.msra.mxu0 %v957
    %1339 = vmatprep.subr.bf16.mxu0 %v962
    %1340 = vmatpush1.bf16.msra.mxu0 %v961
    %1341 = vmatprep.subr.bf16.mxu0 %v966
    %1342 = vmatpush1.bf16.msra.mxu0 %v965
    %1343 = vmatprep.subr.bf16.mxu0 %v970
    %1344 = vmatpush1.bf16.msra.mxu0 %v969
    %1345 = vmatprep.mubr.bf16.mxu0 %v292
    %1346 = vmatmul.mubr.bf16.gmra.mrb[0].mxu0 %v278
    %v1347 = vpop.f32.mrb[0].mxu0
    %v1348 = vadd.f32 %v237, %v1347
    %v1349 = vpop.f32.mrb[0].mxu0
    %v1350 = vadd.f32 %v241, %v1349
    %v1351 = vpop.f32.mrb[0].mxu0
    %v1352 = vpop.f32.mrb[0].mxu0
    %1353 = vdwg.mxu0
    %1354 = vmatprep.subr.bf16.mxu0 %v974
    %1355 = vmatpush1.bf16.msra.mxu0 %v973
    %1356 = vmatprep.subr.bf16.mxu0 %v978
    %1357 = vmatpush1.bf16.msra.mxu0 %v977
    %1358 = vmatprep.subr.bf16.mxu0 %v982
    %1359 = vmatpush1.bf16.msra.mxu0 %v981
    %1360 = vmatprep.subr.bf16.mxu0 %v986
    %1361 = vmatpush1.bf16.msra.mxu0 %v985
    %1362 = vmatprep.subr.bf16.mxu0 %v990
    %1363 = vmatpush1.bf16.msra.mxu0 %v989
    %1364 = vmatprep.subr.bf16.mxu0 %v994
    %1365 = vmatpush1.bf16.msra.mxu0 %v993
    %1366 = vmatprep.subr.bf16.mxu0 %v998
    %1367 = vmatpush1.bf16.msra.mxu0 %v997
    %1368 = vmatprep.subr.bf16.mxu0 %v1002
    %1369 = vmatpush1.bf16.msra.mxu0 %v1001
    %1370 = vmatprep.subr.bf16.mxu0 %v1006
    %1371 = vmatpush1.bf16.msra.mxu0 %v1005
    %1372 = vmatprep.subr.bf16.mxu0 %v1010
    %1373 = vmatpush1.bf16.msra.mxu0 %v1009
    %1374 = vmatprep.subr.bf16.mxu0 %v1014
    %1375 = vmatpush1.bf16.msra.mxu0 %v1013
    %1376 = vmatprep.subr.bf16.mxu0 %v1018
    %1377 = vmatpush1.bf16.msra.mxu0 %v1017
    %1378 = vmatprep.subr.bf16.mxu0 %v1022
    %1379 = vmatpush1.bf16.msra.mxu0 %v1021
    %1380 = vmatprep.subr.bf16.mxu0 %v1026
    %1381 = vmatpush1.bf16.msra.mxu0 %v1025
    %1382 = vmatprep.subr.bf16.mxu0 %v1030
    %1383 = vmatpush1.bf16.msra.mxu0 %v1029
    %1384 = vmatprep.subr.bf16.mxu0 %v1034
    %1385 = vmatpush1.bf16.msra.mxu0 %v1033
    %1386 = vmatprep.mubr.bf16.mxu0 %v302
    %1387 = vmatmul.mubr.bf16.gmra.mrb[0].mxu0 %v300
    %v1388 = vpop.f32.mrb[0].mxu0
    %v1389 = vadd.f32 %v1348, %v1388
    %v1390 = vpop.f32.mrb[0].mxu0
    %v1391 = vadd.f32 %v1350, %v1390
    %v1392 = vpop.f32.mrb[0].mxu0
    %v1393 = vpop.f32.mrb[0].mxu0
    %1394 = vdwg.mxu0
    %1395 = vmatprep.subr.bf16.mxu0 %v1038
    %1396 = vmatpush1.bf16.msra.mxu0 %v1037
    %1397 = vmatprep.subr.bf16.mxu0 %v1042
    %1398 = vmatpush1.bf16.msra.mxu0 %v1041
    %1399 = vmatprep.subr.bf16.mxu0 %v1046
    %1400 = vmatpush1.bf16.msra.mxu0 %v1045
    %1401 = vmatprep.subr.bf16.mxu0 %v1050
    %1402 = vmatpush1.bf16.msra.mxu0 %v1049
    %1403 = vmatprep.subr.bf16.mxu0 %v1054
    %1404 = vmatpush1.bf16.msra.mxu0 %v1053
    %1405 = vmatprep.subr.bf16.mxu0 %v1058
    %1406 = vmatpush1.bf16.msra.mxu0 %v1057
    %1407 = vmatprep.subr.bf16.mxu0 %v1062
    %1408 = vmatpush1.bf16.msra.mxu0 %v1061
    %1409 = vmatprep.subr.bf16.mxu0 %v1066
    %1410 = vmatpush1.bf16.msra.mxu0 %v1065
    %1411 = vmatprep.subr.bf16.mxu0 %v1070
    %1412 = vmatpush1.bf16.msra.mxu0 %v1069
    %1413 = vmatprep.subr.bf16.mxu0 %v1074
    %1414 = vmatpush1.bf16.msra.mxu0 %v1073
    %1415 = vmatprep.subr.bf16.mxu0 %v1078
    %1416 = vmatpush1.bf16.msra.mxu0 %v1077
    %1417 = vmatprep.subr.bf16.mxu0 %v1082
    %1418 = vmatpush1.bf16.msra.mxu0 %v1081
    %1419 = vmatprep.subr.bf16.mxu0 %v1086
    %1420 = vmatpush1.bf16.msra.mxu0 %v1085
    %1421 = vmatprep.subr.bf16.mxu0 %v1090
    %1422 = vmatpush1.bf16.msra.mxu0 %v1089
    %1423 = vmatprep.subr.bf16.mxu0 %v1094
    %1424 = vmatpush1.bf16.msra.mxu0 %v1093
    %1425 = vmatprep.subr.bf16.mxu0 %v1098
    %1426 = vmatpush1.bf16.msra.mxu0 %v1097
    %1427 = vmatprep.mubr.bf16.mxu0 %v299
    %1428 = vmatmul.mubr.bf16.gmra.mrb[0].mxu0 %v285
    %v1429 = vpop.f32.mrb[0].mxu0
    %v1430 = vadd.f32 %v1389, %v1429
    %v1431 = vpop.f32.mrb[0].mxu0
    %v1432 = vadd.f32 %v1391, %v1431
    %v1433 = vpop.f32.mrb[0].mxu0
    %v1434 = vpop.f32.mrb[0].mxu0
    %1435 = vdwg.mxu0
    %1436 = vmatprep.subr.bf16.mxu0 %v1102
    %1437 = vmatpush1.bf16.msra.mxu0 %v1101
    %1438 = vmatprep.subr.bf16.mxu0 %v1106
    %1439 = vmatpush1.bf16.msra.mxu0 %v1105
    %1440 = vmatprep.subr.bf16.mxu0 0
    %1441 = vmatpush1.bf16.msra.mxu0 0
    %1442 = vmatprep.subr.bf16.mxu0 0
    %1443 = vmatpush1.bf16.msra.mxu0 0
    %1444 = vmatprep.subr.bf16.mxu0 0
    %1445 = vmatpush1.bf16.msra.mxu0 0
    %1446 = vmatprep.subr.bf16.mxu0 0
    %1447 = vmatpush1.bf16.msra.mxu0 0
    %1448 = vmatprep.subr.bf16.mxu0 0
    %1449 = vmatpush1.bf16.msra.mxu0 0
    %1450 = vmatprep.subr.bf16.mxu0 0
    %1451 = vmatpush1.bf16.msra.mxu0 0
    %1452 = vmatprep.subr.bf16.mxu0 0
    %1453 = vmatpush1.bf16.msra.mxu0 0
    %1454 = vmatprep.subr.bf16.mxu0 0
    %1455 = vmatpush1.bf16.msra.mxu0 0
    %1456 = vmatprep.subr.bf16.mxu0 0
    %1457 = vmatpush1.bf16.msra.mxu0 0
    %1458 = vmatprep.subr.bf16.mxu0 0
    %1459 = vmatpush1.bf16.msra.mxu0 0
    %1460 = vmatprep.subr.bf16.mxu0 0
    %1461 = vmatpush1.bf16.msra.mxu0 0
    %1462 = vmatprep.subr.bf16.mxu0 0
    %1463 = vmatpush1.bf16.msra.mxu0 0
    %1464 = vmatprep.subr.bf16.mxu0 0
    %1465 = vmatpush1.bf16.msra.mxu0 0
    %1466 = vmatprep.subr.bf16.mxu0 0
    %1467 = vmatpush1.bf16.msra.mxu0 0
    %1468 = vmatprep.mubr.bf16.mxu0 0
    %1469 = vmatmul.mubr.bf16.gmra.mrb[0].mxu0 %v1311
    %v1470 = vpop.f32.mrb[0].mxu0
    %v1471 = vadd.f32 %v1430, %v1470
    %v1472 = vpop.f32.mrb[0].mxu0
    %v1473 = vadd.f32 %v1432, %v1472
    %v1474 = vpop.f32.mrb[0].mxu0
    %v1475 = vpop.f32.mrb[0].mxu0
    %1476 = vdwg.mxu0
    %1477 = vmatprep.subr.bf16.mxu0 %v912
    %1478 = vmatpush1.bf16.msra.mxu0 %v911
    %1479 = vmatprep.subr.bf16.mxu0 %v916
    %1480 = vmatpush1.bf16.msra.mxu0 %v915
    %1481 = vmatprep.subr.bf16.mxu0 %v920
    %1482 = vmatpush1.bf16.msra.mxu0 %v919
    %1483 = vmatprep.subr.bf16.mxu0 %v924
    %1484 = vmatpush1.bf16.msra.mxu0 %v923
    %1485 = vmatprep.subr.bf16.mxu0 %v928
    %1486 = vmatpush1.bf16.msra.mxu0 %v927
    %1487 = vmatprep.subr.bf16.mxu0 %v932
    %1488 = vmatpush1.bf16.msra.mxu0 %v931
    %1489 = vmatprep.subr.bf16.mxu0 %v936
    %1490 = vmatpush1.bf16.msra.mxu0 %v935
    %1491 = vmatprep.subr.bf16.mxu0 %v940
    %1492 = vmatpush1.bf16.msra.mxu0 %v939
    %1493 = vmatprep.subr.bf16.mxu0 %v944
    %1494 = vmatpush1.bf16.msra.mxu0 %v943
    %1495 = vmatprep.subr.bf16.mxu0 %v948
    %1496 = vmatpush1.bf16.msra.mxu0 %v947
    %1497 = vmatprep.subr.bf16.mxu0 %v952
    %1498 = vmatpush1.bf16.msra.mxu0 %v951
    %1499 = vmatprep.subr.bf16.mxu0 %v956
    %1500 = vmatpush1.bf16.msra.mxu0 %v955
    %1501 = vmatprep.subr.bf16.mxu0 %v960
    %1502 = vmatpush1.bf16.msra.mxu0 %v959
    %1503 = vmatprep.subr.bf16.mxu0 %v964
    %1504 = vmatpush1.bf16.msra.mxu0 %v963
    %1505 = vmatprep.subr.bf16.mxu0 %v968
    %1506 = vmatpush1.bf16.msra.mxu0 %v967
    %1507 = vmatprep.subr.bf16.mxu0 %v972
    %1508 = vmatpush1.bf16.msra.mxu0 %v971
    %1509 = vmatprep.mubr.bf16.mxu0 %v292
    %1510 = vmatmul.mubr.bf16.gmra.mrb[0].mxu0 %v278
    %v1511 = vpop.f32.mrb[0].mxu0
    %v1512 = vadd.f32 %v245, %v1511
    %v1513 = vpop.f32.mrb[0].mxu0
    %v1514 = vadd.f32 %v249, %v1513
    %v1515 = vpop.f32.mrb[0].mxu0
    %v1516 = vpop.f32.mrb[0].mxu0
    %1517 = vdwg.mxu0
    %1518 = vmatprep.subr.bf16.mxu0 %v976
    %1519 = vmatpush1.bf16.msra.mxu0 %v975
    %1520 = vmatprep.subr.bf16.mxu0 %v980
    %1521 = vmatpush1.bf16.msra.mxu0 %v979
    %1522 = vmatprep.subr.bf16.mxu0 %v984
    %1523 = vmatpush1.bf16.msra.mxu0 %v983
    %1524 = vmatprep.subr.bf16.mxu0 %v988
    %1525 = vmatpush1.bf16.msra.mxu0 %v987
    %1526 = vmatprep.subr.bf16.mxu0 %v992
    %1527 = vmatpush1.bf16.msra.mxu0 %v991
    %1528 = vmatprep.subr.bf16.mxu0 %v996
    %1529 = vmatpush1.bf16.msra.mxu0 %v995
    %1530 = vmatprep.subr.bf16.mxu0 %v1000
    %1531 = vmatpush1.bf16.msra.mxu0 %v999
    %1532 = vmatprep.subr.bf16.mxu0 %v1004
    %1533 = vmatpush1.bf16.msra.mxu0 %v1003
    %1534 = vmatprep.subr.bf16.mxu0 %v1008
    %1535 = vmatpush1.bf16.msra.mxu0 %v1007
    %1536 = vmatprep.subr.bf16.mxu0 %v1012
    %1537 = vmatpush1.bf16.msra.mxu0 %v1011
    %1538 = vmatprep.subr.bf16.mxu0 %v1016
    %1539 = vmatpush1.bf16.msra.mxu0 %v1015
    %1540 = vmatprep.subr.bf16.mxu0 %v1020
    %1541 = vmatpush1.bf16.msra.mxu0 %v1019
    %1542 = vmatprep.subr.bf16.mxu0 %v1024
    %1543 = vmatpush1.bf16.msra.mxu0 %v1023
    %1544 = vmatprep.subr.bf16.mxu0 %v1028
    %1545 = vmatpush1.bf16.msra.mxu0 %v1027
    %1546 = vmatprep.subr.bf16.mxu0 %v1032
    %1547 = vmatpush1.bf16.msra.mxu0 %v1031
    %1548 = vmatprep.subr.bf16.mxu0 %v1036
    %1549 = vmatpush1.bf16.msra.mxu0 %v1035
    %1550 = vmatprep.mubr.bf16.mxu0 %v302
    %1551 = vmatmul.mubr.bf16.gmra.mrb[0].mxu0 %v300
    %v1552 = vpop.f32.mrb[0].mxu0
    %v1553 = vadd.f32 %v1512, %v1552
    %v1554 = vpop.f32.mrb[0].mxu0
    %v1555 = vadd.f32 %v1514, %v1554
    %v1556 = vpop.f32.mrb[0].mxu0
    %v1557 = vpop.f32.mrb[0].mxu0
    %1558 = vdwg.mxu0
    %1559 = vmatprep.subr.bf16.mxu0 %v1040
    %1560 = vmatpush1.bf16.msra.mxu0 %v1039
    %1561 = vmatprep.subr.bf16.mxu0 %v1044
    %1562 = vmatpush1.bf16.msra.mxu0 %v1043
    %1563 = vmatprep.subr.bf16.mxu0 %v1048
    %1564 = vmatpush1.bf16.msra.mxu0 %v1047
    %1565 = vmatprep.subr.bf16.mxu0 %v1052
    %1566 = vmatpush1.bf16.msra.mxu0 %v1051
    %1567 = vmatprep.subr.bf16.mxu0 %v1056
    %1568 = vmatpush1.bf16.msra.mxu0 %v1055
    %1569 = vmatprep.subr.bf16.mxu0 %v1060
    %1570 = vmatpush1.bf16.msra.mxu0 %v1059
    %1571 = vmatprep.subr.bf16.mxu0 %v1064
    %1572 = vmatpush1.bf16.msra.mxu0 %v1063
    %1573 = vmatprep.subr.bf16.mxu0 %v1068
    %1574 = vmatpush1.bf16.msra.mxu0 %v1067
    %1575 = vmatprep.subr.bf16.mxu0 %v1072
    %1576 = vmatpush1.bf16.msra.mxu0 %v1071
    %1577 = vmatprep.subr.bf16.mxu0 %v1076
    %1578 = vmatpush1.bf16.msra.mxu0 %v1075
    %1579 = vmatprep.subr.bf16.mxu0 %v1080
    %1580 = vmatpush1.bf16.msra.mxu0 %v1079
    %1581 = vmatprep.subr.bf16.mxu0 %v1084
    %1582 = vmatpush1.bf16.msra.mxu0 %v1083
    %1583 = vmatprep.subr.bf16.mxu0 %v1088
    %1584 = vmatpush1.bf16.msra.mxu0 %v1087
    %1585 = vmatprep.subr.bf16.mxu0 %v1092
    %1586 = vmatpush1.bf16.msra.mxu0 %v1091
    %1587 = vmatprep.subr.bf16.mxu0 %v1096
    %1588 = vmatpush1.bf16.msra.mxu0 %v1095
    %1589 = vmatprep.subr.bf16.mxu0 %v1100
    %1590 = vmatpush1.bf16.msra.mxu0 %v1099
    %1591 = vmatprep.mubr.bf16.mxu0 %v299
    %1592 = vmatmul.mubr.bf16.gmra.mrb[0].mxu0 %v285
    %v1593 = vpop.f32.mrb[0].mxu0
    %v1594 = vadd.f32 %v1553, %v1593
    %v1595 = vpop.f32.mrb[0].mxu0
    %v1596 = vadd.f32 %v1555, %v1595
    %v1597 = vpop.f32.mrb[0].mxu0
    %v1598 = vpop.f32.mrb[0].mxu0
    %1599 = vdwg.mxu0
    %1600 = vmatprep.subr.bf16.mxu0 %v1104
    %1601 = vmatpush1.bf16.msra.mxu0 %v1103
    %1602 = vmatprep.subr.bf16.mxu0 %v1108
    %1603 = vmatpush1.bf16.msra.mxu0 %v1107
    %1604 = vmatprep.subr.bf16.mxu0 0
    %1605 = vmatpush1.bf16.msra.mxu0 0
    %1606 = vmatprep.subr.bf16.mxu0 0
    %1607 = vmatpush1.bf16.msra.mxu0 0
    %1608 = vmatprep.subr.bf16.mxu0 0
    %1609 = vmatpush1.bf16.msra.mxu0 0
    %1610 = vmatprep.subr.bf16.mxu0 0
    %1611 = vmatpush1.bf16.msra.mxu0 0
    %1612 = vmatprep.subr.bf16.mxu0 0
    %1613 = vmatpush1.bf16.msra.mxu0 0
    %1614 = vmatprep.subr.bf16.mxu0 0
    %1615 = vmatpush1.bf16.msra.mxu0 0
    %1616 = vmatprep.subr.bf16.mxu0 0
    %1617 = vmatpush1.bf16.msra.mxu0 0
    %1618 = vmatprep.subr.bf16.mxu0 0
    %1619 = vmatpush1.bf16.msra.mxu0 0
    %1620 = vmatprep.subr.bf16.mxu0 0
    %1621 = vmatpush1.bf16.msra.mxu0 0
    %1622 = vmatprep.subr.bf16.mxu0 0
    %1623 = vmatpush1.bf16.msra.mxu0 0
    %1624 = vmatprep.subr.bf16.mxu0 0
    %1625 = vmatpush1.bf16.msra.mxu0 0
    %1626 = vmatprep.subr.bf16.mxu0 0
    %1627 = vmatpush1.bf16.msra.mxu0 0
    %1628 = vmatprep.subr.bf16.mxu0 0
    %1629 = vmatpush1.bf16.msra.mxu0 0
    %1630 = vmatprep.subr.bf16.mxu0 0
    %1631 = vmatpush1.bf16.msra.mxu0 0
    %1632 = vmatprep.mubr.bf16.mxu0 0
    %1633 = vmatmul.mubr.bf16.gmra.mrb[0].mxu0 %v1311
    %v1634 = vpop.f32.mrb[0].mxu0
    %v1635 = vadd.f32 %v1594, %v1634
    %v1636 = vpop.f32.mrb[0].mxu0
    %v1637 = vadd.f32 %v1596, %v1636
    %v1638 = vpop.f32.mrb[0].mxu0
    %v1639 = vpop.f32.mrb[0].mxu0
    %1640 = vdwg.mxu0
    %v1641 = vmax.f32 %v1471, 0.0
    %v1642 = vmax.f32 %v1473, 0.0
    %v1643 = vmax.f32 %v1635, 0.0
    %v1644 = vmax.f32 %v1637, 0.0
    %v1645 = vpack.c.bf16 %v1641, %v1641
    %v1646 = vpack.c.bf16 %v1642, %v1642
    %v1647 = vpack.c.bf16 %v1643, %v1643
    %v1648 = vpack.c.bf16 %v1644, %v1644
    %v1649 = vld [vmem:[%s3] sm:$0xf]
    %v1650 = vld [vmem:[%s3 + $0x4] sm:$0xf]
    %v1651 = vld [vmem:[%s3 + $0x8] sm:$0xf]
    %v1652 = vld [vmem:[%s3 + $0xc] sm:$0xf]
    %v1653 = vld [vmem:[%s3 + $0x10] sm:$0xf]
    %v1654 = vld [vmem:[%s3 + $0x14] sm:$0xf]
    %v1655 = vld [vmem:[%s3 + $0x18] sm:$0xf]
    %v1656 = vld [vmem:[%s3 + $0x1c] sm:$0xf]
    %v1657 = vld [vmem:[%s3 + $0x20] sm:$0xf]
    %v1658 = vld [vmem:[%s3 + $0x24] sm:$0xf]
    %v1659 = vld [vmem:[%s3 + $0x28] sm:$0xf]
    %v1660 = vld [vmem:[%s3 + $0x2c] sm:$0xf]
    %v1661 = vld [vmem:[%s3 + $0x30] sm:$0xf]
    %v1662 = vld [vmem:[%s3 + $0x34] sm:$0xf]
    %v1663 = vld [vmem:[%s3 + $0x38] sm:$0xf]
    %v1664 = vld [vmem:[%s3 + $0x3c] sm:$0xf]
    %v1665 = vld [vmem:[%s3 + $0x40] sm:$0xf]
    %v1666 = vld [vmem:[%s3 + $0x44] sm:$0xf]
    %v1667 = vld [vmem:[%s3 + $0x48] sm:$0xf]
    %v1668 = vld [vmem:[%s3 + $0x4c] sm:$0xf]
    %v1669 = vld [vmem:[%s3 + $0x50] sm:$0xf]
    %v1670 = vld [vmem:[%s3 + $0x54] sm:$0xf]
    %v1671 = vld [vmem:[%s3 + $0x58] sm:$0xf]
    %v1672 = vld [vmem:[%s3 + $0x5c] sm:$0xf]
    %v1673 = vld [vmem:[%s3 + $0x60] sm:$0xf]
    %v1674 = vld [vmem:[%s3 + $0x64] sm:$0xf]
    %v1675 = vld [vmem:[%s3 + $0x68] sm:$0xf]
    %v1676 = vld [vmem:[%s3 + $0x6c] sm:$0xf]
    %v1677 = vld [vmem:[%s3 + $0x70] sm:$0xf]
    %v1678 = vld [vmem:[%s3 + $0x74] sm:$0xf]
    %v1679 = vld [vmem:[%s3 + $0x78] sm:$0xf]
    %v1680 = vld [vmem:[%s3 + $0x7c] sm:$0xf]
    %v1681 = vld [vmem:[%s3 + $0x80] sm:$0xf]
    %v1682 = vld [vmem:[%s3 + $0x84] sm:$0xf]
    %v1683 = vld [vmem:[%s3 + $0x88] sm:$0xf]
    %v1684 = vld [vmem:[%s3 + $0x8c] sm:$0xf]
    %v1685 = vld [vmem:[%s3 + $0x90] sm:$0xf]
    %v1686 = vld [vmem:[%s3 + $0x94] sm:$0xf]
    %v1687 = vld [vmem:[%s3 + $0x98] sm:$0xf]
    %v1688 = vld [vmem:[%s3 + $0x9c] sm:$0xf]
    %v1689 = vld [vmem:[%s3 + $0xa0] sm:$0xf]
    %v1690 = vld [vmem:[%s3 + $0xa4] sm:$0xf]
    %v1691 = vld [vmem:[%s3 + $0xa8] sm:$0xf]
    %v1692 = vld [vmem:[%s3 + $0xac] sm:$0xf]
    %v1693 = vld [vmem:[%s3 + $0xb0] sm:$0xf]
    %v1694 = vld [vmem:[%s3 + $0xb4] sm:$0xf]
    %v1695 = vld [vmem:[%s3 + $0xb8] sm:$0xf]
    %v1696 = vld [vmem:[%s3 + $0xbc] sm:$0xf]
    %v1697 = vld [vmem:[%s3 + $0xc0] sm:$0xf]
    %v1698 = vld [vmem:[%s3 + $0xc4] sm:$0xf]
    %v1699 = vld [vmem:[%s3 + $0xc8] sm:$0xf]
    %v1700 = vld [vmem:[%s3 + $0xcc] sm:$0xf]
    %v1701 = vld [vmem:[%s3 + $0xd0] sm:$0xf]
    %v1702 = vld [vmem:[%s3 + $0xd4] sm:$0xf]
    %v1703 = vld [vmem:[%s3 + $0xd8] sm:$0xf]
    %v1704 = vld [vmem:[%s3 + $0xdc] sm:$0xf]
    %v1705 = vld [vmem:[%s3 + $0xe0] sm:$0xf]
    %v1706 = vld [vmem:[%s3 + $0xe4] sm:$0xf]
    %v1707 = vld [vmem:[%s3 + $0xe8] sm:$0xf]
    %v1708 = vld [vmem:[%s3 + $0xec] sm:$0xf]
    %v1709 = vld [vmem:[%s3 + $0xf0] sm:$0xf]
    %v1710 = vld [vmem:[%s3 + $0xf4] sm:$0xf]
    %v1711 = vld [vmem:[%s3 + $0xf8] sm:$0xf]
    %v1712 = vld [vmem:[%s3 + $0xfc] sm:$0xf]
    %v1713 = vld [vmem:[%s4] sm:$0x1]
    %v1715 = vlaneseq
    %v1716 = vshrl.u32 %v1715, 7
    %v1717 = vsub.s32 0, %v1716
    %v1718 = vrot.slane %v1713, %v1717
    %v1784 = vunpack.c.l.b16 %v1649
    %v1785 = vunpack.c.l.b16 %v1650
    %v1786 = vunpack.c.l.b16 %v1651
    %v1787 = vunpack.c.l.b16 %v1652
    %v1788 = vunpack.c.l.b16 %v1653
    %v1789 = vunpack.c.l.b16 %v1654
    %v1790 = vunpack.c.l.b16 %v1655
    %v1791 = vunpack.c.l.b16 %v1656
    %v1792 = vunpack.c.l.b16 %v1657
    %v1793 = vunpack.c.l.b16 %v1658
    %v1794 = vunpack.c.l.b16 %v1659
    %v1795 = vunpack.c.l.b16 %v1660
    %v1796 = vunpack.c.l.b16 %v1661
    %v1797 = vunpack.c.l.b16 %v1662
    %v1798 = vunpack.c.l.b16 %v1663
    %v1799 = vunpack.c.l.b16 %v1664
    %v1800 = vunpack.c.l.b16 %v1665
    %v1801 = vunpack.c.l.b16 %v1666
    %v1802 = vunpack.c.l.b16 %v1667
    %v1803 = vunpack.c.l.b16 %v1668
    %v1804 = vunpack.c.l.b16 %v1669
    %v1805 = vunpack.c.l.b16 %v1670
    %v1806 = vunpack.c.l.b16 %v1671
    %v1807 = vunpack.c.l.b16 %v1672
    %v1808 = vunpack.c.l.b16 %v1673
    %v1809 = vunpack.c.l.b16 %v1674
    %v1810 = vunpack.c.l.b16 %v1675
    %v1811 = vunpack.c.l.b16 %v1676
    %v1812 = vunpack.c.l.b16 %v1677
    %v1813 = vunpack.c.l.b16 %v1678
    %v1814 = vunpack.c.l.b16 %v1679
    %v1815 = vunpack.c.l.b16 %v1680
    %v1816 = vunpack.c.l.b16 %v1681
    %v1817 = vunpack.c.l.b16 %v1682
    %v1818 = vunpack.c.l.b16 %v1683
    %v1819 = vunpack.c.l.b16 %v1684
    %v1820 = vunpack.c.l.b16 %v1685
    %v1821 = vunpack.c.l.b16 %v1686
    %v1822 = vunpack.c.l.b16 %v1687
    %v1823 = vunpack.c.l.b16 %v1688
    %v1824 = vunpack.c.l.b16 %v1689
    %v1825 = vunpack.c.l.b16 %v1690
    %v1826 = vunpack.c.l.b16 %v1691
    %v1827 = vunpack.c.l.b16 %v1692
    %v1828 = vunpack.c.l.b16 %v1693
    %v1829 = vunpack.c.l.b16 %v1694
    %v1830 = vunpack.c.l.b16 %v1695
    %v1831 = vunpack.c.l.b16 %v1696
    %v1832 = vunpack.c.l.b16 %v1697
    %v1833 = vunpack.c.l.b16 %v1698
    %v1834 = vunpack.c.l.b16 %v1699
    %v1835 = vunpack.c.l.b16 %v1700
    %v1836 = vunpack.c.l.b16 %v1701
    %v1837 = vunpack.c.l.b16 %v1702
    %v1838 = vunpack.c.l.b16 %v1703
    %v1839 = vunpack.c.l.b16 %v1704
    %v1840 = vunpack.c.l.b16 %v1705
    %v1841 = vunpack.c.l.b16 %v1706
    %v1842 = vunpack.c.l.b16 %v1707
    %v1843 = vunpack.c.l.b16 %v1708
    %v1844 = vunpack.c.l.b16 %v1709
    %v1845 = vunpack.c.l.b16 %v1710
    %v1846 = vunpack.c.l.b16 %v1711
    %v1847 = vunpack.c.l.b16 %v1712
    %v1848 = vpack.c.b16 %v1785, %v1784
    %v1849 = vpack.c.b16 %v1787, %v1786
    %v1850 = vpack.c.b16 %v1789, %v1788
    %v1851 = vpack.c.b16 %v1791, %v1790
    %v1852 = vpack.c.b16 %v1793, %v1792
    %v1853 = vpack.c.b16 %v1795, %v1794
    %v1854 = vpack.c.b16 %v1797, %v1796
    %v1855 = vpack.c.b16 %v1799, %v1798
    %v1856 = vpack.c.b16 %v1801, %v1800
    %v1857 = vpack.c.b16 %v1803, %v1802
    %v1858 = vpack.c.b16 %v1805, %v1804
    %v1859 = vpack.c.b16 %v1807, %v1806
    %v1860 = vpack.c.b16 %v1809, %v1808
    %v1861 = vpack.c.b16 %v1811, %v1810
    %v1862 = vpack.c.b16 %v1813, %v1812
    %v1863 = vpack.c.b16 %v1815, %v1814
    %v1864 = vpack.c.b16 %v1817, %v1816
    %v1865 = vpack.c.b16 %v1819, %v1818
    %v1866 = vpack.c.b16 %v1821, %v1820
    %v1867 = vpack.c.b16 %v1823, %v1822
    %v1868 = vpack.c.b16 %v1825, %v1824
    %v1869 = vpack.c.b16 %v1827, %v1826
    %v1870 = vpack.c.b16 %v1829, %v1828
    %v1871 = vpack.c.b16 %v1831, %v1830
    %v1872 = vpack.c.b16 %v1833, %v1832
    %v1873 = vpack.c.b16 %v1835, %v1834
    %v1874 = vpack.c.b16 %v1837, %v1836
    %v1875 = vpack.c.b16 %v1839, %v1838
    %v1876 = vpack.c.b16 %v1841, %v1840
    %v1877 = vpack.c.b16 %v1843, %v1842
    %v1878 = vpack.c.b16 %v1845, %v1844
    %v1879 = vpack.c.b16 %v1847, %v1846
    %1912 = vmatprep.subr.bf16.mxu0 0
    %1913 = vmatpush1.bf16.msra.mxu0 %v1848
    %1914 = vmatprep.subr.bf16.mxu0 0
    %1915 = vmatpush1.bf16.msra.mxu0 %v1849
    %1916 = vmatprep.subr.bf16.mxu0 0
    %1917 = vmatpush1.bf16.msra.mxu0 %v1850
    %1918 = vmatprep.subr.bf16.mxu0 0
    %1919 = vmatpush1.bf16.msra.mxu0 %v1851
    %1920 = vmatprep.subr.bf16.mxu0 0
    %1921 = vmatpush1.bf16.msra.mxu0 %v1852
    %1922 = vmatprep.subr.bf16.mxu0 0
    %1923 = vmatpush1.bf16.msra.mxu0 %v1853
    %1924 = vmatprep.subr.bf16.mxu0 0
    %1925 = vmatpush1.bf16.msra.mxu0 %v1854
    %1926 = vmatprep.subr.bf16.mxu0 0
    %1927 = vmatpush1.bf16.msra.mxu0 %v1855
    %1928 = vmatprep.subr.bf16.mxu0 0
    %1929 = vmatpush1.bf16.msra.mxu0 %v1856
    %1930 = vmatprep.subr.bf16.mxu0 0
    %1931 = vmatpush1.bf16.msra.mxu0 %v1857
    %1932 = vmatprep.subr.bf16.mxu0 0
    %1933 = vmatpush1.bf16.msra.mxu0 %v1858
    %1934 = vmatprep.subr.bf16.mxu0 0
    %1935 = vmatpush1.bf16.msra.mxu0 %v1859
    %1936 = vmatprep.subr.bf16.mxu0 0
    %1937 = vmatpush1.bf16.msra.mxu0 %v1860
    %1938 = vmatprep.subr.bf16.mxu0 0
    %1939 = vmatpush1.bf16.msra.mxu0 %v1861
    %1940 = vmatprep.subr.bf16.mxu0 0
    %1941 = vmatpush1.bf16.msra.mxu0 %v1862
    %1942 = vmatprep.subr.bf16.mxu0 0
    %1943 = vmatpush1.bf16.msra.mxu0 %v1863
    %1944 = vmatprep.mubr.bf16.mxu0 %v1646
    %1945 = vmatmul.mubr.bf16.gmra.mrb[0].mxu0 %v1645
    %v1946 = vpop.f32.mrb[0].mxu0
    %v1947 = vadd.f32 %v1718, %v1946
    %v1948 = vpop.f32.mrb[0].mxu0
    %v1949 = vpop.f32.mrb[0].mxu0
    %v1950 = vpop.f32.mrb[0].mxu0
    %1951 = vdwg.mxu0
    %1952 = vmatprep.subr.bf16.mxu0 0
    %1953 = vmatpush1.bf16.msra.mxu0 %v1864
    %1954 = vmatprep.subr.bf16.mxu0 0
    %1955 = vmatpush1.bf16.msra.mxu0 %v1865
    %1956 = vmatprep.subr.bf16.mxu0 0
    %1957 = vmatpush1.bf16.msra.mxu0 %v1866
    %1958 = vmatprep.subr.bf16.mxu0 0
    %1959 = vmatpush1.bf16.msra.mxu0 %v1867
    %1960 = vmatprep.subr.bf16.mxu0 0
    %1961 = vmatpush1.bf16.msra.mxu0 %v1868
    %1962 = vmatprep.subr.bf16.mxu0 0
    %1963 = vmatpush1.bf16.msra.mxu0 %v1869
    %1964 = vmatprep.subr.bf16.mxu0 0
    %1965 = vmatpush1.bf16.msra.mxu0 %v1870
    %1966 = vmatprep.subr.bf16.mxu0 0
    %1967 = vmatpush1.bf16.msra.mxu0 %v1871
    %1968 = vmatprep.subr.bf16.mxu0 0
    %1969 = vmatpush1.bf16.msra.mxu0 %v1872
    %1970 = vmatprep.subr.bf16.mxu0 0
    %1971 = vmatpush1.bf16.msra.mxu0 %v1873
    %1972 = vmatprep.subr.bf16.mxu0 0
    %1973 = vmatpush1.bf16.msra.mxu0 %v1874
    %1974 = vmatprep.subr.bf16.mxu0 0
    %1975 = vmatpush1.bf16.msra.mxu0 %v1875
    %1976 = vmatprep.subr.bf16.mxu0 0
    %1977 = vmatpush1.bf16.msra.mxu0 %v1876
    %1978 = vmatprep.subr.bf16.mxu0 0
    %1979 = vmatpush1.bf16.msra.mxu0 %v1877
    %1980 = vmatprep.subr.bf16.mxu0 0
    %1981 = vmatpush1.bf16.msra.mxu0 %v1878
    %1982 = vmatprep.subr.bf16.mxu0 0
    %1983 = vmatpush1.bf16.msra.mxu0 %v1879
    %1984 = vmatprep.mubr.bf16.mxu0 %v1648
    %1985 = vmatmul.mubr.bf16.gmra.mrb[0].mxu0 %v1647
    %v1986 = vpop.f32.mrb[0].mxu0
    %v1987 = vadd.f32 %v1947, %v1986
    %v1988 = vpop.f32.mrb[0].mxu0
    %v1989 = vpop.f32.mrb[0].mxu0
    %v1990 = vpop.f32.mrb[0].mxu0
    %1991 = vdwg.mxu0
    %vm1992 = vcmask 1041408
    %v1993 = vsel %vm1992, %v1987, -inf
    %1994 = vmax.xlane.f32.xlu0 %v1993
    %v1995 = vpop.xlane.xlu0 %1994
    %v1996 = vsub.f32 %v1987, %v1995
    %v1997 = vmul.f32 %v1996, 1.442695
    %v1998 = vpow.pop %v1997
    %v1999 = vsel %vm1992, %v1998, 0.0
    %2000 = vadd.xlane.f32.xlu0 %v1999
    %v2001 = vpop.xlane.xlu0 %2000
    %v2002 = vlog2.pop %v2001
    %v2003 = vmul.f32 %v2002, 0.6931472
    %v2004 = vsub.f32 %v1996, %v2003
    %2005 = vst [vmem:[#allocation2] sm:$0x3] %v2004
    %v2006 = vld [vmem:[%s5] sm:$0xf]
    %v2007 = vld [vmem:[%s5 + $0x4] sm:$0xf]
    %v2008 = vld [vmem:[%s5 + $0x8] sm:$0xf]
    %v2009 = vld [vmem:[%s5 + $0xc] sm:$0xf]
    %v2010 = vld [vmem:[%s5 + $0x10] sm:$0xf]
    %v2011 = vld [vmem:[%s5 + $0x14] sm:$0xf]
    %v2012 = vld [vmem:[%s5 + $0x18] sm:$0xf]
    %v2013 = vld [vmem:[%s5 + $0x1c] sm:$0xf]
    %v2014 = vld [vmem:[%s5 + $0x20] sm:$0xf]
    %v2015 = vld [vmem:[%s5 + $0x24] sm:$0xf]
    %v2016 = vld [vmem:[%s5 + $0x28] sm:$0xf]
    %v2017 = vld [vmem:[%s5 + $0x2c] sm:$0xf]
    %v2018 = vld [vmem:[%s5 + $0x30] sm:$0xf]
    %v2019 = vld [vmem:[%s5 + $0x34] sm:$0xf]
    %v2020 = vld [vmem:[%s5 + $0x38] sm:$0xf]
    %v2021 = vld [vmem:[%s5 + $0x3c] sm:$0xf]
    %v2022 = vld [vmem:[%s5 + $0x40] sm:$0xf]
    %v2023 = vld [vmem:[%s5 + $0x44] sm:$0xf]
    %v2024 = vld [vmem:[%s5 + $0x48] sm:$0xf]
    %v2025 = vld [vmem:[%s5 + $0x4c] sm:$0xf]
    %v2026 = vld [vmem:[%s5 + $0x50] sm:$0xf]
    %v2027 = vld [vmem:[%s5 + $0x54] sm:$0xf]
    %v2028 = vld [vmem:[%s5 + $0x58] sm:$0xf]
    %v2029 = vld [vmem:[%s5 + $0x5c] sm:$0xf]
    %v2030 = vld [vmem:[%s5 + $0x60] sm:$0xf]
    %v2031 = vld [vmem:[%s5 + $0x64] sm:$0xf]
    %v2032 = vld [vmem:[%s5 + $0x68] sm:$0xf]
    %v2033 = vld [vmem:[%s5 + $0x6c] sm:$0xf]
    %v2034 = vld [vmem:[%s5 + $0x70] sm:$0xf]
    %v2035 = vld [vmem:[%s5 + $0x74] sm:$0xf]
    %v2036 = vld [vmem:[%s5 + $0x78] sm:$0xf]
    %v2037 = vld [vmem:[%s5 + $0x7c] sm:$0xf]
    %v2038 = vld [vmem:[%s5 + $0x80] sm:$0xf]
    %v2039 = vld [vmem:[%s5 + $0x84] sm:$0xf]
    %v2040 = vld [vmem:[%s5 + $0x88] sm:$0xf]
    %v2041 = vld [vmem:[%s5 + $0x8c] sm:$0xf]
    %v2042 = vld [vmem:[%s5 + $0x90] sm:$0xf]
    %v2043 = vld [vmem:[%s5 + $0x94] sm:$0xf]
    %v2044 = vld [vmem:[%s5 + $0x98] sm:$0xf]
    %v2045 = vld [vmem:[%s5 + $0x9c] sm:$0xf]
    %v2046 = vld [vmem:[%s5 + $0xa0] sm:$0xf]
    %v2047 = vld [vmem:[%s5 + $0xa4] sm:$0xf]
    %v2048 = vld [vmem:[%s5 + $0xa8] sm:$0xf]
    %v2049 = vld [vmem:[%s5 + $0xac] sm:$0xf]
    %v2050 = vld [vmem:[%s5 + $0xb0] sm:$0xf]
    %v2051 = vld [vmem:[%s5 + $0xb4] sm:$0xf]
    %v2052 = vld [vmem:[%s5 + $0xb8] sm:$0xf]
    %v2053 = vld [vmem:[%s5 + $0xbc] sm:$0xf]
    %v2054 = vld [vmem:[%s5 + $0xc0] sm:$0xf]
    %v2055 = vld [vmem:[%s5 + $0xc4] sm:$0xf]
    %v2056 = vld [vmem:[%s5 + $0xc8] sm:$0xf]
    %v2057 = vld [vmem:[%s5 + $0xcc] sm:$0xf]
    %v2058 = vld [vmem:[%s5 + $0xd0] sm:$0xf]
    %v2059 = vld [vmem:[%s5 + $0xd4] sm:$0xf]
    %v2060 = vld [vmem:[%s5 + $0xd8] sm:$0xf]
    %v2061 = vld [vmem:[%s5 + $0xdc] sm:$0xf]
    %v2062 = vld [vmem:[%s5 + $0xe0] sm:$0xf]
    %v2063 = vld [vmem:[%s5 + $0xe4] sm:$0xf]
    %v2064 = vld [vmem:[%s5 + $0xe8] sm:$0xf]
    %v2065 = vld [vmem:[%s5 + $0xec] sm:$0xf]
    %v2066 = vld [vmem:[%s5 + $0xf0] sm:$0xf]
    %v2067 = vld [vmem:[%s5 + $0xf4] sm:$0xf]
    %v2068 = vld [vmem:[%s5 + $0xf8] sm:$0xf]
    %v2069 = vld [vmem:[%s5 + $0xfc] sm:$0xf]
    %v2070 = vld [vmem:[%s6] sm:$0x1]
    %v2072 = vlaneseq
    %v2073 = vshrl.u32 %v2072, 7
    %v2074 = vsub.s32 0, %v2073
    %v2075 = vrot.slane %v2070, %v2074
    %v2141 = vunpack.c.l.b16 %v2006
    %v2142 = vunpack.c.l.b16 %v2007
    %v2143 = vunpack.c.l.b16 %v2008
    %v2144 = vunpack.c.l.b16 %v2009
    %v2145 = vunpack.c.l.b16 %v2010
    %v2146 = vunpack.c.l.b16 %v2011
    %v2147 = vunpack.c.l.b16 %v2012
    %v2148 = vunpack.c.l.b16 %v2013
    %v2149 = vunpack.c.l.b16 %v2014
    %v2150 = vunpack.c.l.b16 %v2015
    %v2151 = vunpack.c.l.b16 %v2016
    %v2152 = vunpack.c.l.b16 %v2017
    %v2153 = vunpack.c.l.b16 %v2018
    %v2154 = vunpack.c.l.b16 %v2019
    %v2155 = vunpack.c.l.b16 %v2020
    %v2156 = vunpack.c.l.b16 %v2021
    %v2157 = vunpack.c.l.b16 %v2022
    %v2158 = vunpack.c.l.b16 %v2023
    %v2159 = vunpack.c.l.b16 %v2024
    %v2160 = vunpack.c.l.b16 %v2025
    %v2161 = vunpack.c.l.b16 %v2026
    %v2162 = vunpack.c.l.b16 %v2027
    %v2163 = vunpack.c.l.b16 %v2028
    %v2164 = vunpack.c.l.b16 %v2029
    %v2165 = vunpack.c.l.b16 %v2030
    %v2166 = vunpack.c.l.b16 %v2031
    %v2167 = vunpack.c.l.b16 %v2032
    %v2168 = vunpack.c.l.b16 %v2033
    %v2169 = vunpack.c.l.b16 %v2034
    %v2170 = vunpack.c.l.b16 %v2035
    %v2171 = vunpack.c.l.b16 %v2036
    %v2172 = vunpack.c.l.b16 %v2037
    %v2173 = vunpack.c.l.b16 %v2038
    %v2174 = vunpack.c.l.b16 %v2039
    %v2175 = vunpack.c.l.b16 %v2040
    %v2176 = vunpack.c.l.b16 %v2041
    %v2177 = vunpack.c.l.b16 %v2042
    %v2178 = vunpack.c.l.b16 %v2043
    %v2179 = vunpack.c.l.b16 %v2044
    %v2180 = vunpack.c.l.b16 %v2045
    %v2181 = vunpack.c.l.b16 %v2046
    %v2182 = vunpack.c.l.b16 %v2047
    %v2183 = vunpack.c.l.b16 %v2048
    %v2184 = vunpack.c.l.b16 %v2049
    %v2185 = vunpack.c.l.b16 %v2050
    %v2186 = vunpack.c.l.b16 %v2051
    %v2187 = vunpack.c.l.b16 %v2052
    %v2188 = vunpack.c.l.b16 %v2053
    %v2189 = vunpack.c.l.b16 %v2054
    %v2190 = vunpack.c.l.b16 %v2055
    %v2191 = vunpack.c.l.b16 %v2056
    %v2192 = vunpack.c.l.b16 %v2057
    %v2193 = vunpack.c.l.b16 %v2058
    %v2194 = vunpack.c.l.b16 %v2059
    %v2195 = vunpack.c.l.b16 %v2060
    %v2196 = vunpack.c.l.b16 %v2061
    %v2197 = vunpack.c.l.b16 %v2062
    %v2198 = vunpack.c.l.b16 %v2063
    %v2199 = vunpack.c.l.b16 %v2064
    %v2200 = vunpack.c.l.b16 %v2065
    %v2201 = vunpack.c.l.b16 %v2066
    %v2202 = vunpack.c.l.b16 %v2067
    %v2203 = vunpack.c.l.b16 %v2068
    %v2204 = vunpack.c.l.b16 %v2069
    %v2205 = vpack.c.b16 %v2142, %v2141
    %v2206 = vpack.c.b16 %v2144, %v2143
    %v2207 = vpack.c.b16 %v2146, %v2145
    %v2208 = vpack.c.b16 %v2148, %v2147
    %v2209 = vpack.c.b16 %v2150, %v2149
    %v2210 = vpack.c.b16 %v2152, %v2151
    %v2211 = vpack.c.b16 %v2154, %v2153
    %v2212 = vpack.c.b16 %v2156, %v2155
    %v2213 = vpack.c.b16 %v2158, %v2157
    %v2214 = vpack.c.b16 %v2160, %v2159
    %v2215 = vpack.c.b16 %v2162, %v2161
    %v2216 = vpack.c.b16 %v2164, %v2163
    %v2217 = vpack.c.b16 %v2166, %v2165
    %v2218 = vpack.c.b16 %v2168, %v2167
    %v2219 = vpack.c.b16 %v2170, %v2169
    %v2220 = vpack.c.b16 %v2172, %v2171
    %v2221 = vpack.c.b16 %v2174, %v2173
    %v2222 = vpack.c.b16 %v2176, %v2175
    %v2223 = vpack.c.b16 %v2178, %v2177
    %v2224 = vpack.c.b16 %v2180, %v2179
    %v2225 = vpack.c.b16 %v2182, %v2181
    %v2226 = vpack.c.b16 %v2184, %v2183
    %v2227 = vpack.c.b16 %v2186, %v2185
    %v2228 = vpack.c.b16 %v2188, %v2187
    %v2229 = vpack.c.b16 %v2190, %v2189
    %v2230 = vpack.c.b16 %v2192, %v2191
    %v2231 = vpack.c.b16 %v2194, %v2193
    %v2232 = vpack.c.b16 %v2196, %v2195
    %v2233 = vpack.c.b16 %v2198, %v2197
    %v2234 = vpack.c.b16 %v2200, %v2199
    %v2235 = vpack.c.b16 %v2202, %v2201
    %v2236 = vpack.c.b16 %v2204, %v2203
    %2269 = vmatprep.subr.bf16.mxu0 0
    %2270 = vmatpush1.bf16.msra.mxu0 %v2205
    %2271 = vmatprep.subr.bf16.mxu0 0
    %2272 = vmatpush1.bf16.msra.mxu0 %v2206
    %2273 = vmatprep.subr.bf16.mxu0 0
    %2274 = vmatpush1.bf16.msra.mxu0 %v2207
    %2275 = vmatprep.subr.bf16.mxu0 0
    %2276 = vmatpush1.bf16.msra.mxu0 %v2208
    %2277 = vmatprep.subr.bf16.mxu0 0
    %2278 = vmatpush1.bf16.msra.mxu0 %v2209
    %2279 = vmatprep.subr.bf16.mxu0 0
    %2280 = vmatpush1.bf16.msra.mxu0 %v2210
    %2281 = vmatprep.subr.bf16.mxu0 0
    %2282 = vmatpush1.bf16.msra.mxu0 %v2211
    %2283 = vmatprep.subr.bf16.mxu0 0
    %2284 = vmatpush1.bf16.msra.mxu0 %v2212
    %2285 = vmatprep.subr.bf16.mxu0 0
    %2286 = vmatpush1.bf16.msra.mxu0 %v2213
    %2287 = vmatprep.subr.bf16.mxu0 0
    %2288 = vmatpush1.bf16.msra.mxu0 %v2214
    %2289 = vmatprep.subr.bf16.mxu0 0
    %2290 = vmatpush1.bf16.msra.mxu0 %v2215
    %2291 = vmatprep.subr.bf16.mxu0 0
    %2292 = vmatpush1.bf16.msra.mxu0 %v2216
    %2293 = vmatprep.subr.bf16.mxu0 0
    %2294 = vmatpush1.bf16.msra.mxu0 %v2217
    %2295 = vmatprep.subr.bf16.mxu0 0
    %2296 = vmatpush1.bf16.msra.mxu0 %v2218
    %2297 = vmatprep.subr.bf16.mxu0 0
    %2298 = vmatpush1.bf16.msra.mxu0 %v2219
    %2299 = vmatprep.subr.bf16.mxu0 0
    %2300 = vmatpush1.bf16.msra.mxu0 %v2220
    %2301 = vmatprep.mubr.bf16.mxu0 %v1646
    %2302 = vmatmul.mubr.bf16.gmra.mrb[0].mxu0 %v1645
    %v2303 = vpop.f32.mrb[0].mxu0
    %v2304 = vadd.f32 %v2075, %v2303
    %v2305 = vpop.f32.mrb[0].mxu0
    %v2306 = vpop.f32.mrb[0].mxu0
    %v2307 = vpop.f32.mrb[0].mxu0
    %2308 = vdwg.mxu0
    %2309 = vmatprep.subr.bf16.mxu0 0
    %2310 = vmatpush1.bf16.msra.mxu0 %v2221
    %2311 = vmatprep.subr.bf16.mxu0 0
    %2312 = vmatpush1.bf16.msra.mxu0 %v2222
    %2313 = vmatprep.subr.bf16.mxu0 0
    %2314 = vmatpush1.bf16.msra.mxu0 %v2223
    %2315 = vmatprep.subr.bf16.mxu0 0
    %2316 = vmatpush1.bf16.msra.mxu0 %v2224
    %2317 = vmatprep.subr.bf16.mxu0 0
    %2318 = vmatpush1.bf16.msra.mxu0 %v2225
    %2319 = vmatprep.subr.bf16.mxu0 0
    %2320 = vmatpush1.bf16.msra.mxu0 %v2226
    %2321 = vmatprep.subr.bf16.mxu0 0
    %2322 = vmatpush1.bf16.msra.mxu0 %v2227
    %2323 = vmatprep.subr.bf16.mxu0 0
    %2324 = vmatpush1.bf16.msra.mxu0 %v2228
    %2325 = vmatprep.subr.bf16.mxu0 0
    %2326 = vmatpush1.bf16.msra.mxu0 %v2229
    %2327 = vmatprep.subr.bf16.mxu0 0
    %2328 = vmatpush1.bf16.msra.mxu0 %v2230
    %2329 = vmatprep.subr.bf16.mxu0 0
    %2330 = vmatpush1.bf16.msra.mxu0 %v2231
    %2331 = vmatprep.subr.bf16.mxu0 0
    %2332 = vmatpush1.bf16.msra.mxu0 %v2232
    %2333 = vmatprep.subr.bf16.mxu0 0
    %2334 = vmatpush1.bf16.msra.mxu0 %v2233
    %2335 = vmatprep.subr.bf16.mxu0 0
    %2336 = vmatpush1.bf16.msra.mxu0 %v2234
    %2337 = vmatprep.subr.bf16.mxu0 0
    %2338 = vmatpush1.bf16.msra.mxu0 %v2235
    %2339 = vmatprep.subr.bf16.mxu0 0
    %2340 = vmatpush1.bf16.msra.mxu0 %v2236
    %2341 = vmatprep.mubr.bf16.mxu0 %v1648
    %2342 = vmatmul.mubr.bf16.gmra.mrb[0].mxu0 %v1647
    %v2343 = vpop.f32.mrb[0].mxu0
    %v2344 = vadd.f32 %v2304, %v2343
    %v2345 = vpop.f32.mrb[0].mxu0
    %v2346 = vpop.f32.mrb[0].mxu0
    %v2347 = vpop.f32.mrb[0].mxu0
    %2348 = vdwg.mxu0
    %v2349 = vsel %vm1992, %v2344, -inf
    %2350 = vmax.xlane.f32.xlu0 %v2349
    %v2351 = vpop.xlane.xlu0 %2350
    %v2352 = vsub.f32 %v2344, %v2351
    %v2353 = vmul.f32 %v2352, 1.442695
    %v2354 = vpow.pop %v2353
    %v2355 = vsel %vm1992, %v2354, 0.0
    %2356 = vadd.xlane.f32.xlu0 %v2355
    %v2357 = vpop.xlane.xlu0 %2356
    %v2358 = vlog2.pop %v2357
    %v2359 = vmul.f32 %v2358, 0.6931472
    %v2360 = vsub.f32 %v2352, %v2359
    %2361 = vst [vmem:[#allocation4] sm:$0x3] %v2360
    // Predicated region
    $region30: #{net_forward_pallas.5} parent=1 // pred_check
      _
    $region31: #{net_forward_pallas.5} parent=1 // pred_check_branch
      %2363 = sbr.rel (0) target = $region33
    $region32: #{net_forward_pallas.5} parent=1 // pred_region
      %s2365 = ssub.s32 32, 32
      %2366 = vsyncadd [#allocation3], %s2365
      %s2368 = sshll.u32 [#allocation2], 4
      %s2369 = int_to_ptr.vmem [resolvable:$true] %s2368
      %2371 = dma.vmem_to_hbm [thread:$0]  %s2369, 32, %s7, [#allocation3]
    $region33: #{net_forward_pallas.5} parent=1 // pred_fallthru
      _
    // Predicated region
    $region34: #{net_forward_pallas.5} parent=1 // pred_check
      _
    $region35: #{net_forward_pallas.5} parent=1 // pred_check_branch
      %2373 = sbr.rel (0) target = $region37
    $region36: #{net_forward_pallas.5} parent=1 // pred_region
      %s2375 = ssub.s32 32, 32
      %2376 = vsyncadd [#allocation5], %s2375
      %s2378 = sshll.u32 [#allocation4], 4
      %s2379 = int_to_ptr.vmem [resolvable:$true] %s2378
      %2381 = dma.vmem_to_hbm [thread:$0]  %s2379, 32, %s8, [#allocation5]
    $region37: #{net_forward_pallas.5} parent=1 // pred_fallthru
      _
    // Predicated region
    $region38: #{net_forward_pallas.5} parent=1 // pred_check
      _
    $region39: #{net_forward_pallas.5} parent=1 // pred_check_branch
      %2383 = sbr.rel (0) target = $region41
    $region40: #{net_forward_pallas.5} parent=1 // pred_region
      %2384 = dma.done [#allocation3], 32
    $region41: #{net_forward_pallas.5} parent=1 // pred_fallthru
      _
    // Predicated region
    $region42: #{net_forward_pallas.5} parent=1 // pred_check
      _
    $region43: #{net_forward_pallas.5} parent=1 // pred_check_branch
      %2386 = sbr.rel (0) target = $region45
    $region44: #{net_forward_pallas.5} parent=1 // pred_region
      %2387 = dma.done [#allocation5], 32
    $region45: #{net_forward_pallas.5} parent=1 // pred_fallthru
      _
    %2388 = vsyncpa [#allocation3], 1
    %2389 = vsyncpa [#allocation5], 1

</llo_original>
